<compile_context>
chip_gen: v7x
topology: tpu7x:2x2x1
jax: 0.10.0
libtpu: 0.0.40
codegen_flags: <defaults>
</compile_context>

<pallas_src>
import numpy as np

import jax
import jax.numpy as jnp
from jax import lax
from jax.experimental import pallas as pl
from jax.experimental.pallas import tpu as pltpu


C1P = 8    # conv1 output channels padded 6 -> 8 (keeps conv2 K 8-aligned)
C2 = 16    # conv2 output channels


# ----------------------------------------------------------------------------
# Fused LeNet kernel (one batch element per grid step)
# ----------------------------------------------------------------------------
def _lenet_kernel(z_ref, w1t_ref, b1_ref, w2t_ref, b2_ref,
                  wfc1_ref, bfc1_ref, wfc2_ref, bfc2_ref, wcls_ref, bcls_ref,
                  out_ref, p1a_ref, p1b_ref, p2_ref):
    f32 = jnp.float32

    # --- conv1 + ReLU + 2x2 maxpool : 5 matmuls ---------------------------
    # z[kh, g*8+u, :] = input row (4u + kh + g) with lanes w*3 + ci, so
    # acc[g*8+u, q*128 + j*8 + co] = conv1(co, row 4u+g, col 2j+q).
    acc = None
    for kh in range(5):
        t = jnp.dot(z_ref[kh], w1t_ref[kh], preferred_element_type=f32)   # (32,256)
        acc = t if acc is None else acc + t
    a_even = jnp.maximum(acc[0:8, :], acc[8:16, :])      # row-tap pool, even pooled rows
    a_odd = jnp.maximum(acc[16:24, :], acc[24:32, :])    # row-tap pool, odd pooled rows
    b1 = b1_ref[...]
    # relu(max(taps) + b) == pool(relu(conv + b)) because b is tap-invariant.
    p1a_ref[...] = jnp.maximum(
        jnp.maximum(a_even[:, 0:128], a_even[:, 128:256]) + b1, 0.0)       # (8,128)
    p1b_ref[...] = jnp.maximum(
        jnp.maximum(a_odd[:, 0:128], a_odd[:, 128:256]) + b1, 0.0)         # (8,128)

    # --- conv2 + ReLU + 2x2 maxpool : 10 matmuls --------------------------
    # p1a[u] / p1b[u] hold conv1-pooled rows 2u / 2u+1, lanes j*8 + ci.
    pooled2 = None
    for p in (0, 1):
        acc = None
        for kh in range(5):
            o = p + kh                                   # 0..5
            src = p1a_ref if (o % 2) == 0 else p1b_ref
            rows = src[(o // 2):(o // 2) + 5, :]                            # (5,128)
            t = jnp.dot(rows, w2t_ref[kh], preferred_element_type=f32)      # (5,256)
            acc = t if acc is None else acc + t
        m = jnp.maximum(acc[:, 0:128], acc[:, 128:256])                     # col-tap pool
        pooled2 = m if pooled2 is None else jnp.maximum(pooled2, m)         # row-tap pool
    p2_ref[...] = jnp.maximum(pooled2 + b2_ref[...], 0.0)                   # (5,128)

    # --- fc1 + ReLU (NCHW flatten folded into the weight layout) ----------
    f1 = bfc1_ref[...]                                                      # (1,256)
    for r in range(5):
        f1 = f1 + jnp.dot(p2_ref[r:r + 1, :], wfc1_ref[r],
                          preferred_element_type=f32)
    f1 = jnp.maximum(f1, 0.0)

    # --- fc2 + ReLU, classifier (128 lane-dense outputs) ------------------
    f2 = jnp.maximum(jnp.dot(f1, wfc2_ref[...], preferred_element_type=f32)
                     + bfc2_ref[...], 0.0)                                  # (1,128)
    out_ref[...] = (jnp.dot(f2, wcls_ref[...], preferred_element_type=f32)
                    + bcls_ref[...])                                        # (1,128)


# ----------------------------------------------------------------------------
# One-time parameter re-layout (host side, outside the traced forward)
# ----------------------------------------------------------------------------
def _conv1_toeplitz(w1):
    # (6,3,5,5) -> (5, 96, 256): row wi*3 + ci, lane q*128 + j*8 + co
    T = np.zeros((5, 96, 256), np.float32)
    for kh in range(5):
        for q in range(2):
            for j in range(14):
                for kw in range(5):
                    wi = 2 * j + q + kw
                    T[kh, wi * 3: wi * 3 + 3,
                      q * 128 + j * C1P: q * 128 + j * C1P + 6] = w1[:, :, kh, kw].T
    return T


def _conv2_toeplitz(w2):
    # (16,6,5,5) -> (5, 128, 256): row wi*8 + ci, lane q*128 + j*16 + co
    T = np.zeros((5, 128, 256), np.float32)
    for kh in range(5):
        for q in range(2):
            for j in range(5):
                for kw in range(5):
                    wi = 2 * j + q + kw
                    T[kh, wi * C1P: wi * C1P + 6,
                      q * 128 + j * C2: q * 128 + j * C2 + 16] = w2[:, :, kh, kw].T
    return T


def prepare_params(params):
    w1 = np.asarray(params["conv1_w"], np.float32)     # (6, 3, 5, 5)
    b1 = np.asarray(params["conv1_b"], np.float32)     # (6,)
    w2 = np.asarray(params["conv2_w"], np.float32)     # (16, 6, 5, 5)
    b2 = np.asarray(params["conv2_b"], np.float32)     # (16,)
    fc1_w = np.asarray(params["fc1_w"], np.float32)    # (256, 400)
    fc2_w = np.asarray(params["fc2_w"], np.float32)    # (128, 256)
    cls_w = np.asarray(params["cls_w"], np.float32)    # (100, 128)

    w1t = _conv1_toeplitz(w1)                          # (5, 96, 256)
    w2t = _conv2_toeplitz(w2)                          # (5, 128, 256)

    b1_row = np.zeros((1, 128), np.float32)
    for j in range(14):
        b1_row[0, j * C1P: j * C1P + 6] = b1
    b2_row = np.zeros((1, 128), np.float32)
    for j in range(5):
        b2_row[0, j * C2: j * C2 + 16] = b2

    # fc1 input index (PyTorch flatten) = co*25 + r*5 + c -> (r, c*16+co, out)
    wfc1 = np.zeros((5, 128, 256), np.float32)         # K padded 80 -> 128
    wfc1[:, :80, :] = (fc1_w.reshape(256, 16, 5, 5)
                       .transpose(2, 3, 1, 0).reshape(5, 80, 256))
    bfc1 = np.asarray(params["fc1_b"], np.float32).reshape(1, 256)

    wfc2 = np.ascontiguousarray(fc2_w.T, np.float32)   # (256, 128)
    bfc2 = np.asarray(params["fc2_b"], np.float32).reshape(1, 128)

    wcls = np.zeros((128, 128), np.float32)            # pad 100 -> 128 outputs
    wcls[:, :100] = cls_w.T
    bcls = np.zeros((1, 128), np.float32)
    bcls[0, :100] = np.asarray(params["cls_b"], np.float32)

    prep = dict(w1t=w1t, b1=b1_row, w2t=w2t, b2=b2_row,
                wfc1=wfc1, bfc1=bfc1, wfc2=wfc2, bfc2=bfc2,
                wcls=wcls, bcls=bcls)
    return {k: jnp.asarray(v, jnp.float32) for k, v in prep.items()}


# conv1 row-gather table: z[kh, g*8+u] = input row (4u + kh + g); index 32 is
# a zero-pad row (the u == 7 slot is never consumed by the pool).
_CONV1_ROW_IDX = np.full((5, 32), 32, np.int32)
for _kh in range(5):
    for _g in range(4):
        for _u in range(7):
            _CONV1_ROW_IDX[_kh, _g * 8 + _u] = 4 * _u + _kh + _g


# ----------------------------------------------------------------------------
# Parameters (deterministic synthetic init, PyTorch-shaped)
# ----------------------------------------------------------------------------
def init_params(key):
    def uni(key, shape, fan_in):
        bound = 1.0 / jnp.sqrt(jnp.float32(fan_in))
        return jax.random.uniform(key, shape, jnp.float32, -bound, bound)

    ks = jax.random.split(key, 10)
    p = {}
    p["conv1_w"] = uni(ks[0], (6, 3, 5, 5), 3 * 5 * 5)
    p["conv1_b"] = uni(ks[1], (6,), 3 * 5 * 5)
    p["conv2_w"] = uni(ks[2], (16, 6, 5, 5), 6 * 5 * 5)
    p["conv2_b"] = uni(ks[3], (16,), 6 * 5 * 5)
    p["fc1_w"] = uni(ks[4], (256, 400), 400)
    p["fc1_b"] = uni(ks[5], (256,), 400)
    p["fc2_w"] = uni(ks[6], (128, 256), 256)
    p["fc2_b"] = uni(ks[7], (128,), 256)
    p["cls_w"] = uni(ks[8], (100, 128), 128)
    p["cls_b"] = uni(ks[9], (100,), 128)
    return p


# ----------------------------------------------------------------------------
# LeNet forward (single pallas_call)
# ----------------------------------------------------------------------------
def lenet_forward(x_nchw, prep):
    B, C, H, W = x_nchw.shape
    assert (C, H, W) == (3, 32, 32), "LeNet expects 3x32x32 inputs"

    # NCHW -> NHWC rows (B,32,96), then gather the 4 pooling/row-tap groups so
    # each conv1 tap is one contiguous 8-aligned (32,96) slab in the kernel.
    x = jnp.transpose(x_nchw, (0, 2, 3, 1)).reshape(B, 32, 32 * 3)
    xp = jnp.concatenate([x, jnp.zeros((B, 1, 96), x.dtype)], axis=1)   # +zero row
    z = xp[:, jnp.asarray(_CONV1_ROW_IDX), :]                           # (B,5,32,96)

    out_pad = pl.pallas_call(
        _lenet_kernel,
        out_shape=jax.ShapeDtypeStruct((B, 1, 128), jnp.float32),
        grid=(B,),
        in_specs=[
            pl.BlockSpec((None, 5, 32, 96), lambda b: (b, 0, 0, 0)),   # conv1 rows
            pl.BlockSpec((5, 96, 256), lambda b: (0, 0, 0)),           # conv1 Toeplitz
            pl.BlockSpec((1, 128), lambda b: (0, 0)),                  # conv1 bias row
            pl.BlockSpec((5, 128, 256), lambda b: (0, 0, 0)),          # conv2 Toeplitz
            pl.BlockSpec((1, 128), lambda b: (0, 0)),                  # conv2 bias row
            pl.BlockSpec((5, 128, 256), lambda b: (0, 0, 0)),          # fc1 (per row)
            pl.BlockSpec((1, 256), lambda b: (0, 0)),                  # fc1 bias
            pl.BlockSpec((256, 128), lambda b: (0, 0)),                # fc2
            pl.BlockSpec((1, 128), lambda b: (0, 0)),                  # fc2 bias
            pl.BlockSpec((128, 128), lambda b: (0, 0)),                # classifier
            pl.BlockSpec((1, 128), lambda b: (0, 0)),                  # classifier bias
        ],
        out_specs=pl.BlockSpec((None, 1, 128), lambda b: (b, 0, 0)),
        scratch_shapes=[
            pltpu.VMEM((8, 128), jnp.float32),   # pooled conv1, even pooled rows
            pltpu.VMEM((8, 128), jnp.float32),   # pooled conv1, odd pooled rows
            pltpu.VMEM((5, 128), jnp.float32),   # pooled conv2
        ],
        compiler_params=pltpu.CompilerParams(dimension_semantics=("parallel",)),
    )(z, prep["w1t"], prep["b1"], prep["w2t"], prep["b2"],
      prep["wfc1"], prep["bfc1"], prep["wfc2"], prep["bfc2"],
      prep["wcls"], prep["bcls"])

    out = out_pad.reshape(B, 128)[:, :100]

    shape_dict = {1: [B, 6, 14, 14], 2: [B, 16, 5, 5], 3: [B, 400],
                  4: [B, 256], 5: [B, 128], 6: [B, 100]}
    return out, shape_dict


# ----------------------------------------------------------------------------
# Pure-JAX reference (for correctness check only)
# ----------------------------------------------------------------------------
def lenet_reference(x_nchw, params):
    dn = lax.conv_dimension_numbers(x_nchw.shape, params["conv1_w"].shape,
                                    ("NCHW", "OIHW", "NCHW"))

    def conv_relu_pool(x, w, b):
        y = lax.conv_general_dilated(x, w, (1, 1), "VALID",
                                     dimension_numbers=dn)
        y = jax.nn.relu(y + b[None, :, None, None])
        return lax.reduce_window(y, -jnp.inf, lax.max,
                                 (1, 1, 2, 2), (1, 1, 2, 2), "VALID")

    y = conv_relu_pool(x_nchw, params["conv1_w"], params["conv1_b"])
    z = conv_relu_pool(y, params["conv2_w"], params["conv2_b"])
    flat = z.reshape(z.shape[0], -1)
    f1 = jax.nn.relu(flat @ params["fc1_w"].T + params["fc1_b"])
    f2 = jax.nn.relu(f1 @ params["fc2_w"].T + params["fc2_b"])
    return f2 @ params["cls_w"].T + params["cls_b"]


# ----------------------------------------------------------------------------
if __name__ == "__main__":
    key = jax.random.PRNGKey(0)
    pkey, xkey = jax.random.split(key)
    params = init_params(pkey)
    prep = prepare_params(params)          # one-time weight re-layout (hoisted)

    # LeNet requires 3x32x32 inputs (flatten dim 400 == 16*5*5); batch = 2.
    x = jax.random.normal(xkey, (2, 3, 32, 32), jnp.float32)          # NCHW

    out, shape_dict = jax.jit(lenet_forward)(x, prep)
    out = jax.block_until_ready(out)

    ref = jax.block_until_ready(jax.jit(lenet_reference)(x, params))

    expected_shapes = {1: [2, 6, 14, 14], 2: [2, 16, 5, 5], 3: [2, 400],
                       4: [2, 256], 5: [2, 128], 6: [2, 100]}
    assert {k: list(v) for k, v in shape_dict.items()} == expected_shapes, shape_dict
    assert out.shape == (2, 100) and out.dtype == jnp.float32
    max_err = float(jnp.max(jnp.abs(out - ref)))
    assert jnp.allclose(out, ref, rtol=2e-4, atol=2e-4), max_err

    print("KERNEL_OK")
</pallas_src>

<mosaic_0001>
module attributes {stable_mosaic.version = 11 : i64} {
  func.func @_lenet_kernel(%arg0: i32, %arg1: memref<1x5x32x96xf32, #tpu.memory_space<vmem>>, %arg2: memref<5x96x256xf32, #tpu.memory_space<vmem>>, %arg3: memref<1x128xf32, #tpu.memory_space<vmem>>, %arg4: memref<5x128x256xf32, #tpu.memory_space<vmem>>, %arg5: memref<1x128xf32, #tpu.memory_space<vmem>>, %arg6: memref<5x128x256xf32, #tpu.memory_space<vmem>>, %arg7: memref<1x256xf32, #tpu.memory_space<vmem>>, %arg8: memref<256x128xf32, #tpu.memory_space<vmem>>, %arg9: memref<1x128xf32, #tpu.memory_space<vmem>>, %arg10: memref<128x128xf32, #tpu.memory_space<vmem>>, %arg11: memref<1x128xf32, #tpu.memory_space<vmem>>, %arg12: memref<1x1x128xf32, #tpu.memory_space<vmem>>, %arg13: memref<8x128xf32, #tpu.memory_space<vmem>>, %arg14: memref<8x128xf32, #tpu.memory_space<vmem>>, %arg15: memref<5x128xf32, #tpu.memory_space<vmem>>) attributes {dimension_semantics = [#tpu.dimension_semantics<parallel>], iteration_bounds = array<i64: 2>, scalar_prefetch = 0 : i64, scratch_operands = 3 : i64, tpu.core_type = #tpu.core_type<tc>, window_params = [{transform_indices = @transform_0, window_bounds = array<i64: 1, 5, 32, 96>}, {pipeline_mode = #tpu.pipeline_mode<synchronous>, transform_indices = @transform_1, window_bounds = array<i64: 5, 96, 256>}, {pipeline_mode = #tpu.pipeline_mode<synchronous>, transform_indices = @transform_2, window_bounds = array<i64: 1, 128>}, {pipeline_mode = #tpu.pipeline_mode<synchronous>, transform_indices = @transform_3, window_bounds = array<i64: 5, 128, 256>}, {pipeline_mode = #tpu.pipeline_mode<synchronous>, transform_indices = @transform_4, window_bounds = array<i64: 1, 128>}, {pipeline_mode = #tpu.pipeline_mode<synchronous>, transform_indices = @transform_5, window_bounds = array<i64: 5, 128, 256>}, {pipeline_mode = #tpu.pipeline_mode<synchronous>, transform_indices = @transform_6, window_bounds = array<i64: 1, 256>}, {pipeline_mode = #tpu.pipeline_mode<synchronous>, transform_indices = @transform_7, window_bounds = array<i64: 256, 128>}, {pipeline_mode = #tpu.pipeline_mode<synchronous>, transform_indices = @transform_8, window_bounds = array<i64: 1, 128>}, {pipeline_mode = #tpu.pipeline_mode<synchronous>, transform_indices = @transform_9, window_bounds = array<i64: 128, 128>}, {pipeline_mode = #tpu.pipeline_mode<synchronous>, transform_indices = @transform_10, window_bounds = array<i64: 1, 128>}, {transform_indices = @transform_11, window_bounds = array<i64: 1, 1, 128>}]} {
    %c0 = arith.constant 0 : index
    %c0_0 = arith.constant 0 : index
    %c0_1 = arith.constant 0 : index
    %c0_2 = arith.constant 0 : index
    %0 = vector.load %arg1[%c0, %c0_0, %c0_1, %c0_2] : memref<1x5x32x96xf32, #tpu.memory_space<vmem>>, vector<1x1x32x96xf32>
    %1 = vector.shape_cast %0 : vector<1x1x32x96xf32> to vector<32x96xf32>
    %c0_3 = arith.constant 0 : index
    %c0_4 = arith.constant 0 : index
    %c0_5 = arith.constant 0 : index
    %2 = vector.load %arg2[%c0_3, %c0_4, %c0_5] : memref<5x96x256xf32, #tpu.memory_space<vmem>>, vector<1x96x256xf32>
    %3 = vector.shape_cast %2 : vector<1x96x256xf32> to vector<96x256xf32>
    %cst = arith.constant dense<0.000000e+00> : vector<32x256xf32>
    %4 = tpu.matmul %1, %3, %cst {dimension_numbers = #tpu.dot_dimension_numbers<[1], [0], [0], [1], [0, 0, 1, 1], [], []>} : vector<32x96xf32>, vector<96x256xf32>, vector<32x256xf32> -> vector<32x256xf32>
    %c0_6 = arith.constant 0 : index
    %c1 = arith.constant 1 : index
    %c0_7 = arith.constant 0 : index
    %c0_8 = arith.constant 0 : index
    %5 = vector.load %arg1[%c0_6, %c1, %c0_7, %c0_8] : memref<1x5x32x96xf32, #tpu.memory_space<vmem>>, vector<1x1x32x96xf32>
    %6 = vector.shape_cast %5 : vector<1x1x32x96xf32> to vector<32x96xf32>
    %c1_9 = arith.constant 1 : index
    %c0_10 = arith.constant 0 : index
    %c0_11 = arith.constant 0 : index
    %7 = vector.load %arg2[%c1_9, %c0_10, %c0_11] : memref<5x96x256xf32, #tpu.memory_space<vmem>>, vector<1x96x256xf32>
    %8 = vector.shape_cast %7 : vector<1x96x256xf32> to vector<96x256xf32>
    %cst_12 = arith.constant dense<0.000000e+00> : vector<32x256xf32>
    %9 = tpu.matmul %6, %8, %cst_12 {dimension_numbers = #tpu.dot_dimension_numbers<[1], [0], [0], [1], [0, 0, 1, 1], [], []>} : vector<32x96xf32>, vector<96x256xf32>, vector<32x256xf32> -> vector<32x256xf32>
    %10 = arith.addf %4, %9 : vector<32x256xf32>
    %c0_13 = arith.constant 0 : index
    %c2 = arith.constant 2 : index
    %c0_14 = arith.constant 0 : index
    %c0_15 = arith.constant 0 : index
    %11 = vector.load %arg1[%c0_13, %c2, %c0_14, %c0_15] : memref<1x5x32x96xf32, #tpu.memory_space<vmem>>, vector<1x1x32x96xf32>
    %12 = vector.shape_cast %11 : vector<1x1x32x96xf32> to vector<32x96xf32>
    %c2_16 = arith.constant 2 : index
    %c0_17 = arith.constant 0 : index
    %c0_18 = arith.constant 0 : index
    %13 = vector.load %arg2[%c2_16, %c0_17, %c0_18] : memref<5x96x256xf32, #tpu.memory_space<vmem>>, vector<1x96x256xf32>
    %14 = vector.shape_cast %13 : vector<1x96x256xf32> to vector<96x256xf32>
    %cst_19 = arith.constant dense<0.000000e+00> : vector<32x256xf32>
    %15 = tpu.matmul %12, %14, %cst_19 {dimension_numbers = #tpu.dot_dimension_numbers<[1], [0], [0], [1], [0, 0, 1, 1], [], []>} : vector<32x96xf32>, vector<96x256xf32>, vector<32x256xf32> -> vector<32x256xf32>
    %16 = arith.addf %10, %15 : vector<32x256xf32>
    %c0_20 = arith.constant 0 : index
    %c3 = arith.constant 3 : index
    %c0_21 = arith.constant 0 : index
    %c0_22 = arith.constant 0 : index
    %17 = vector.load %arg1[%c0_20, %c3, %c0_21, %c0_22] : memref<1x5x32x96xf32, #tpu.memory_space<vmem>>, vector<1x1x32x96xf32>
    %18 = vector.shape_cast %17 : vector<1x1x32x96xf32> to vector<32x96xf32>
    %c3_23 = arith.constant 3 : index
    %c0_24 = arith.constant 0 : index
    %c0_25 = arith.constant 0 : index
    %19 = vector.load %arg2[%c3_23, %c0_24, %c0_25] : memref<5x96x256xf32, #tpu.memory_space<vmem>>, vector<1x96x256xf32>
    %20 = vector.shape_cast %19 : vector<1x96x256xf32> to vector<96x256xf32>
    %cst_26 = arith.constant dense<0.000000e+00> : vector<32x256xf32>
    %21 = tpu.matmul %18, %20, %cst_26 {dimension_numbers = #tpu.dot_dimension_numbers<[1], [0], [0], [1], [0, 0, 1, 1], [], []>} : vector<32x96xf32>, vector<96x256xf32>, vector<32x256xf32> -> vector<32x256xf32>
    %22 = arith.addf %16, %21 : vector<32x256xf32>
    %c0_27 = arith.constant 0 : index
    %c4 = arith.constant 4 : index
    %c0_28 = arith.constant 0 : index
    %c0_29 = arith.constant 0 : index
    %23 = vector.load %arg1[%c0_27, %c4, %c0_28, %c0_29] : memref<1x5x32x96xf32, #tpu.memory_space<vmem>>, vector<1x1x32x96xf32>
    %24 = vector.shape_cast %23 : vector<1x1x32x96xf32> to vector<32x96xf32>
    %c4_30 = arith.constant 4 : index
    %c0_31 = arith.constant 0 : index
    %c0_32 = arith.constant 0 : index
    %25 = vector.load %arg2[%c4_30, %c0_31, %c0_32] : memref<5x96x256xf32, #tpu.memory_space<vmem>>, vector<1x96x256xf32>
    %26 = vector.shape_cast %25 : vector<1x96x256xf32> to vector<96x256xf32>
    %cst_33 = arith.constant dense<0.000000e+00> : vector<32x256xf32>
    %27 = tpu.matmul %24, %26, %cst_33 {dimension_numbers = #tpu.dot_dimension_numbers<[1], [0], [0], [1], [0, 0, 1, 1], [], []>} : vector<32x96xf32>, vector<96x256xf32>, vector<32x256xf32> -> vector<32x256xf32>
    %28 = arith.addf %22, %27 : vector<32x256xf32>
    %29 = vector.extract_strided_slice %28 {offsets = [0, 0], sizes = [8, 256], strides = [1, 1]} : vector<32x256xf32> to vector<8x256xf32>
    %30 = vector.extract_strided_slice %28 {offsets = [8, 0], sizes = [8, 256], strides = [1, 1]} : vector<32x256xf32> to vector<8x256xf32>
    %31 = arith.maximumf %29, %30 : vector<8x256xf32>
    %32 = vector.extract_strided_slice %28 {offsets = [16, 0], sizes = [8, 256], strides = [1, 1]} : vector<32x256xf32> to vector<8x256xf32>
    %33 = vector.extract_strided_slice %28 {offsets = [24, 0], sizes = [8, 256], strides = [1, 1]} : vector<32x256xf32> to vector<8x256xf32>
    %34 = arith.maximumf %32, %33 : vector<8x256xf32>
    %c0_34 = arith.constant 0 : index
    %c0_35 = arith.constant 0 : index
    %35 = vector.load %arg3[%c0_34, %c0_35] : memref<1x128xf32, #tpu.memory_space<vmem>>, vector<1x128xf32>
    %36 = vector.extract_strided_slice %31 {offsets = [0, 0], sizes = [8, 128], strides = [1, 1]} : vector<8x256xf32> to vector<8x128xf32>
    %37 = vector.extract_strided_slice %31 {offsets = [0, 128], sizes = [8, 128], strides = [1, 1]} : vector<8x256xf32> to vector<8x128xf32>
    %38 = arith.maximumf %36, %37 : vector<8x128xf32>
    %39 = vector.broadcast %35 : vector<1x128xf32> to vector<8x128xf32>
    %40 = arith.addf %38, %39 : vector<8x128xf32>
    %cst_36 = arith.constant 0.000000e+00 : f32
    %41 = vector.broadcast %cst_36 : f32 to vector<8x128xf32>
    %42 = arith.maximumf %40, %41 : vector<8x128xf32>
    %c0_37 = arith.constant 0 : index
    %c0_38 = arith.constant 0 : index
    %43 = vector.load %arg13[%c0_37, %c0_38] : memref<8x128xf32, #tpu.memory_space<vmem>>, vector<8x128xf32>
    tpu.vector_store %arg13[%c0_37, %c0_38], %42 {strides = array<i32>} : memref<8x128xf32, #tpu.memory_space<vmem>>, vector<8x128xf32>,
    %44 = vector.extract_strided_slice %34 {offsets = [0, 0], sizes = [8, 128], strides = [1, 1]} : vector<8x256xf32> to vector<8x128xf32>
    %45 = vector.extract_strided_slice %34 {offsets = [0, 128], sizes = [8, 128], strides = [1, 1]} : vector<8x256xf32> to vector<8x128xf32>
    %46 = arith.maximumf %44, %45 : vector<8x128xf32>
    %47 = vector.broadcast %35 : vector<1x128xf32> to vector<8x128xf32>
    %48 = arith.addf %46, %47 : vector<8x128xf32>
    %cst_39 = arith.constant 0.000000e+00 : f32
    %49 = vector.broadcast %cst_39 : f32 to vector<8x128xf32>
    %50 = arith.maximumf %48, %49 : vector<8x128xf32>
    %c0_40 = arith.constant 0 : index
    %c0_41 = arith.constant 0 : index
    %51 = vector.load %arg14[%c0_40, %c0_41] : memref<8x128xf32, #tpu.memory_space<vmem>>, vector<8x128xf32>
    tpu.vector_store %arg14[%c0_40, %c0_41], %50 {strides = array<i32>} : memref<8x128xf32, #tpu.memory_space<vmem>>, vector<8x128xf32>,
    %c0_42 = arith.constant 0 : index
    %c0_43 = arith.constant 0 : index
    %52 = vector.load %arg13[%c0_42, %c0_43] : memref<8x128xf32, #tpu.memory_space<vmem>>, vector<5x128xf32>
    %c0_44 = arith.constant 0 : index
    %c0_45 = arith.constant 0 : index
    %c0_46 = arith.constant 0 : index
    %53 = vector.load %arg4[%c0_44, %c0_45, %c0_46] : memref<5x128x256xf32, #tpu.memory_space<vmem>>, vector<1x128x256xf32>
    %54 = vector.shape_cast %53 : vector<1x128x256xf32> to vector<128x256xf32>
    %cst_47 = arith.constant dense<0.000000e+00> : vector<5x256xf32>
    %55 = tpu.matmul %52, %54, %cst_47 {dimension_numbers = #tpu.dot_dimension_numbers<[1], [0], [0], [1], [0, 0, 1, 1], [], []>} : vector<5x128xf32>, vector<128x256xf32>, vector<5x256xf32> -> vector<5x256xf32>
    %c0_48 = arith.constant 0 : index
    %c0_49 = arith.constant 0 : index
    %56 = vector.load %arg14[%c0_48, %c0_49] : memref<8x128xf32, #tpu.memory_space<vmem>>, vector<5x128xf32>
    %c1_50 = arith.constant 1 : index
    %c0_51 = arith.constant 0 : index
    %c0_52 = arith.constant 0 : index
    %57 = vector.load %arg4[%c1_50, %c0_51, %c0_52] : memref<5x128x256xf32, #tpu.memory_space<vmem>>, vector<1x128x256xf32>
    %58 = vector.shape_cast %57 : vector<1x128x256xf32> to vector<128x256xf32>
    %cst_53 = arith.constant dense<0.000000e+00> : vector<5x256xf32>
    %59 = tpu.matmul %56, %58, %cst_53 {dimension_numbers = #tpu.dot_dimension_numbers<[1], [0], [0], [1], [0, 0, 1, 1], [], []>} : vector<5x128xf32>, vector<128x256xf32>, vector<5x256xf32> -> vector<5x256xf32>
    %60 = arith.addf %55, %59 : vector<5x256xf32>
    %c1_54 = arith.constant 1 : index
    %c0_55 = arith.constant 0 : index
    %61 = vector.load %arg13[%c1_54, %c0_55] : memref<8x128xf32, #tpu.memory_space<vmem>>, vector<5x128xf32>
    %c2_56 = arith.constant 2 : index
    %c0_57 = arith.constant 0 : index
    %c0_58 = arith.constant 0 : index
    %62 = vector.load %arg4[%c2_56, %c0_57, %c0_58] : memref<5x128x256xf32, #tpu.memory_space<vmem>>, vector<1x128x256xf32>
    %63 = vector.shape_cast %62 : vector<1x128x256xf32> to vector<128x256xf32>
    %cst_59 = arith.constant dense<0.000000e+00> : vector<5x256xf32>
    %64 = tpu.matmul %61, %63, %cst_59 {dimension_numbers = #tpu.dot_dimension_numbers<[1], [0], [0], [1], [0, 0, 1, 1], [], []>} : vector<5x128xf32>, vector<128x256xf32>, vector<5x256xf32> -> vector<5x256xf32>
    %65 = arith.addf %60, %64 : vector<5x256xf32>
    %c1_60 = arith.constant 1 : index
    %c0_61 = arith.constant 0 : index
    %66 = vector.load %arg14[%c1_60, %c0_61] : memref<8x128xf32, #tpu.memory_space<vmem>>, vector<5x128xf32>
    %c3_62 = arith.constant 3 : index
    %c0_63 = arith.constant 0 : index
    %c0_64 = arith.constant 0 : index
    %67 = vector.load %arg4[%c3_62, %c0_63, %c0_64] : memref<5x128x256xf32, #tpu.memory_space<vmem>>, vector<1x128x256xf32>
    %68 = vector.shape_cast %67 : vector<1x128x256xf32> to vector<128x256xf32>
    %cst_65 = arith.constant dense<0.000000e+00> : vector<5x256xf32>
    %69 = tpu.matmul %66, %68, %cst_65 {dimension_numbers = #tpu.dot_dimension_numbers<[1], [0], [0], [1], [0, 0, 1, 1], [], []>} : vector<5x128xf32>, vector<128x256xf32>, vector<5x256xf32> -> vector<5x256xf32>
    %70 = arith.addf %65, %69 : vector<5x256xf32>
    %c2_66 = arith.constant 2 : index
    %c0_67 = arith.constant 0 : index
    %71 = vector.load %arg13[%c2_66, %c0_67] : memref<8x128xf32, #tpu.memory_space<vmem>>, vector<5x128xf32>
    %c4_68 = arith.constant 4 : index
    %c0_69 = arith.constant 0 : index
    %c0_70 = arith.constant 0 : index
    %72 = vector.load %arg4[%c4_68, %c0_69, %c0_70] : memref<5x128x256xf32, #tpu.memory_space<vmem>>, vector<1x128x256xf32>
    %73 = vector.shape_cast %72 : vector<1x128x256xf32> to vector<128x256xf32>
    %cst_71 = arith.constant dense<0.000000e+00> : vector<5x256xf32>
    %74 = tpu.matmul %71, %73, %cst_71 {dimension_numbers = #tpu.dot_dimension_numbers<[1], [0], [0], [1], [0, 0, 1, 1], [], []>} : vector<5x128xf32>, vector<128x256xf32>, vector<5x256xf32> -> vector<5x256xf32>
    %75 = arith.addf %70, %74 : vector<5x256xf32>
    %76 = vector.extract_strided_slice %75 {offsets = [0, 0], sizes = [5, 128], strides = [1, 1]} : vector<5x256xf32> to vector<5x128xf32>
    %77 = vector.extract_strided_slice %75 {offsets = [0, 128], sizes = [5, 128], strides = [1, 1]} : vector<5x256xf32> to vector<5x128xf32>
    %78 = arith.maximumf %76, %77 : vector<5x128xf32>
    %c0_72 = arith.constant 0 : index
    %c0_73 = arith.constant 0 : index
    %79 = vector.load %arg14[%c0_72, %c0_73] : memref<8x128xf32, #tpu.memory_space<vmem>>, vector<5x128xf32>
    %c0_74 = arith.constant 0 : index
    %c0_75 = arith.constant 0 : index
    %c0_76 = arith.constant 0 : index
    %80 = vector.load %arg4[%c0_74, %c0_75, %c0_76] : memref<5x128x256xf32, #tpu.memory_space<vmem>>, vector<1x128x256xf32>
    %81 = vector.shape_cast %80 : vector<1x128x256xf32> to vector<128x256xf32>
    %cst_77 = arith.constant dense<0.000000e+00> : vector<5x256xf32>
    %82 = tpu.matmul %79, %81, %cst_77 {dimension_numbers = #tpu.dot_dimension_numbers<[1], [0], [0], [1], [0, 0, 1, 1], [], []>} : vector<5x128xf32>, vector<128x256xf32>, vector<5x256xf32> -> vector<5x256xf32>
    %c1_78 = arith.constant 1 : index
    %c0_79 = arith.constant 0 : index
    %83 = vector.load %arg13[%c1_78, %c0_79] : memref<8x128xf32, #tpu.memory_space<vmem>>, vector<5x128xf32>
    %c1_80 = arith.constant 1 : index
    %c0_81 = arith.constant 0 : index
    %c0_82 = arith.constant 0 : index
    %84 = vector.load %arg4[%c1_80, %c0_81, %c0_82] : memref<5x128x256xf32, #tpu.memory_space<vmem>>, vector<1x128x256xf32>
    %85 = vector.shape_cast %84 : vector<1x128x256xf32> to vector<128x256xf32>
    %cst_83 = arith.constant dense<0.000000e+00> : vector<5x256xf32>
    %86 = tpu.matmul %83, %85, %cst_83 {dimension_numbers = #tpu.dot_dimension_numbers<[1], [0], [0], [1], [0, 0, 1, 1], [], []>} : vector<5x128xf32>, vector<128x256xf32>, vector<5x256xf32> -> vector<5x256xf32>
    %87 = arith.addf %82, %86 : vector<5x256xf32>
    %c1_84 = arith.constant 1 : index
    %c0_85 = arith.constant 0 : index
    %88 = vector.load %arg14[%c1_84, %c0_85] : memref<8x128xf32, #tpu.memory_space<vmem>>, vector<5x128xf32>
    %c2_86 = arith.constant 2 : index
    %c0_87 = arith.constant 0 : index
    %c0_88 = arith.constant 0 : index
    %89 = vector.load %arg4[%c2_86, %c0_87, %c0_88] : memref<5x128x256xf32, #tpu.memory_space<vmem>>, vector<1x128x256xf32>
    %90 = vector.shape_cast %89 : vector<1x128x256xf32> to vector<128x256xf32>
    %cst_89 = arith.constant dense<0.000000e+00> : vector<5x256xf32>
    %91 = tpu.matmul %88, %90, %cst_89 {dimension_numbers = #tpu.dot_dimension_numbers<[1], [0], [0], [1], [0, 0, 1, 1], [], []>} : vector<5x128xf32>, vector<128x256xf32>, vector<5x256xf32> -> vector<5x256xf32>
    %92 = arith.addf %87, %91 : vector<5x256xf32>
    %c2_90 = arith.constant 2 : index
    %c0_91 = arith.constant 0 : index
    %93 = vector.load %arg13[%c2_90, %c0_91] : memref<8x128xf32, #tpu.memory_space<vmem>>, vector<5x128xf32>
    %c3_92 = arith.constant 3 : index
    %c0_93 = arith.constant 0 : index
    %c0_94 = arith.constant 0 : index
    %94 = vector.load %arg4[%c3_92, %c0_93, %c0_94] : memref<5x128x256xf32, #tpu.memory_space<vmem>>, vector<1x128x256xf32>
    %95 = vector.shape_cast %94 : vector<1x128x256xf32> to vector<128x256xf32>
    %cst_95 = arith.constant dense<0.000000e+00> : vector<5x256xf32>
    %96 = tpu.matmul %93, %95, %cst_95 {dimension_numbers = #tpu.dot_dimension_numbers<[1], [0], [0], [1], [0, 0, 1, 1], [], []>} : vector<5x128xf32>, vector<128x256xf32>, vector<5x256xf32> -> vector<5x256xf32>
    %97 = arith.addf %92, %96 : vector<5x256xf32>
    %c2_96 = arith.constant 2 : index
    %c0_97 = arith.constant 0 : index
    %98 = vector.load %arg14[%c2_96, %c0_97] : memref<8x128xf32, #tpu.memory_space<vmem>>, vector<5x128xf32>
    %c4_98 = arith.constant 4 : index
    %c0_99 = arith.constant 0 : index
    %c0_100 = arith.constant 0 : index
    %99 = vector.load %arg4[%c4_98, %c0_99, %c0_100] : memref<5x128x256xf32, #tpu.memory_space<vmem>>, vector<1x128x256xf32>
    %100 = vector.shape_cast %99 : vector<1x128x256xf32> to vector<128x256xf32>
    %cst_101 = arith.constant dense<0.000000e+00> : vector<5x256xf32>
    %101 = tpu.matmul %98, %100, %cst_101 {dimension_numbers = #tpu.dot_dimension_numbers<[1], [0], [0], [1], [0, 0, 1, 1], [], []>} : vector<5x128xf32>, vector<128x256xf32>, vector<5x256xf32> -> vector<5x256xf32>
    %102 = arith.addf %97, %101 : vector<5x256xf32>
    %103 = vector.extract_strided_slice %102 {offsets = [0, 0], sizes = [5, 128], strides = [1, 1]} : vector<5x256xf32> to vector<5x128xf32>
    %104 = vector.extract_strided_slice %102 {offsets = [0, 128], sizes = [5, 128], strides = [1, 1]} : vector<5x256xf32> to vector<5x128xf32>
    %105 = arith.maximumf %103, %104 : vector<5x128xf32>
    %106 = arith.maximumf %78, %105 : vector<5x128xf32>
    %c0_102 = arith.constant 0 : index
    %c0_103 = arith.constant 0 : index
    %107 = vector.load %arg5[%c0_102, %c0_103] : memref<1x128xf32, #tpu.memory_space<vmem>>, vector<1x128xf32>
    %108 = vector.broadcast %107 : vector<1x128xf32> to vector<5x128xf32>
    %109 = arith.addf %106, %108 : vector<5x128xf32>
    %cst_104 = arith.constant 0.000000e+00 : f32
    %110 = vector.broadcast %cst_104 : f32 to vector<5x128xf32>
    %111 = arith.maximumf %109, %110 : vector<5x128xf32>
    %c0_105 = arith.constant 0 : index
    %c0_106 = arith.constant 0 : index
    %112 = vector.load %arg15[%c0_105, %c0_106] : memref<5x128xf32, #tpu.memory_space<vmem>>, vector<5x128xf32>
    tpu.vector_store %arg15[%c0_105, %c0_106], %111 {strides = array<i32>} : memref<5x128xf32, #tpu.memory_space<vmem>>, vector<5x128xf32>,
    %c0_107 = arith.constant 0 : index
    %c0_108 = arith.constant 0 : index
    %113 = vector.load %arg7[%c0_107, %c0_108] : memref<1x256xf32, #tpu.memory_space<vmem>>, vector<1x256xf32>
    %c0_109 = arith.constant 0 : index
    %c0_110 = arith.constant 0 : index
    %114 = vector.load %arg15[%c0_109, %c0_110] : memref<5x128xf32, #tpu.memory_space<vmem>>, vector<1x128xf32>
    %c0_111 = arith.constant 0 : index
    %c0_112 = arith.constant 0 : index
    %c0_113 = arith.constant 0 : index
    %115 = vector.load %arg6[%c0_111, %c0_112, %c0_113] : memref<5x128x256xf32, #tpu.memory_space<vmem>>, vector<1x128x256xf32>
    %116 = vector.shape_cast %115 : vector<1x128x256xf32> to vector<128x256xf32>
    %cst_114 = arith.constant dense<0.000000e+00> : vector<1x256xf32>
    %117 = tpu.matmul %114, %116, %cst_114 {dimension_numbers = #tpu.dot_dimension_numbers<[1], [0], [0], [1], [0, 0, 1, 1], [], []>} : vector<1x128xf32>, vector<128x256xf32>, vector<1x256xf32> -> vector<1x256xf32>
    %118 = arith.addf %113, %117 : vector<1x256xf32>
    %c1_115 = arith.constant 1 : index
    %c0_116 = arith.constant 0 : index
    %119 = vector.load %arg15[%c1_115, %c0_116] : memref<5x128xf32, #tpu.memory_space<vmem>>, vector<1x128xf32>
    %c1_117 = arith.constant 1 : index
    %c0_118 = arith.constant 0 : index
    %c0_119 = arith.constant 0 : index
    %120 = vector.load %arg6[%c1_117, %c0_118, %c0_119] : memref<5x128x256xf32, #tpu.memory_space<vmem>>, vector<1x128x256xf32>
    %121 = vector.shape_cast %120 : vector<1x128x256xf32> to vector<128x256xf32>
    %cst_120 = arith.constant dense<0.000000e+00> : vector<1x256xf32>
    %122 = tpu.matmul %119, %121, %cst_120 {dimension_numbers = #tpu.dot_dimension_numbers<[1], [0], [0], [1], [0, 0, 1, 1], [], []>} : vector<1x128xf32>, vector<128x256xf32>, vector<1x256xf32> -> vector<1x256xf32>
    %123 = arith.addf %118, %122 : vector<1x256xf32>
    %c2_121 = arith.constant 2 : index
    %c0_122 = arith.constant 0 : index
    %124 = vector.load %arg15[%c2_121, %c0_122] : memref<5x128xf32, #tpu.memory_space<vmem>>, vector<1x128xf32>
    %c2_123 = arith.constant 2 : index
    %c0_124 = arith.constant 0 : index
    %c0_125 = arith.constant 0 : index
    %125 = vector.load %arg6[%c2_123, %c0_124, %c0_125] : memref<5x128x256xf32, #tpu.memory_space<vmem>>, vector<1x128x256xf32>
    %126 = vector.shape_cast %125 : vector<1x128x256xf32> to vector<128x256xf32>
    %cst_126 = arith.constant dense<0.000000e+00> : vector<1x256xf32>
    %127 = tpu.matmul %124, %126, %cst_126 {dimension_numbers = #tpu.dot_dimension_numbers<[1], [0], [0], [1], [0, 0, 1, 1], [], []>} : vector<1x128xf32>, vector<128x256xf32>, vector<1x256xf32> -> vector<1x256xf32>
    %128 = arith.addf %123, %127 : vector<1x256xf32>
    %c3_127 = arith.constant 3 : index
    %c0_128 = arith.constant 0 : index
    %129 = vector.load %arg15[%c3_127, %c0_128] : memref<5x128xf32, #tpu.memory_space<vmem>>, vector<1x128xf32>
    %c3_129 = arith.constant 3 : index
    %c0_130 = arith.constant 0 : index
    %c0_131 = arith.constant 0 : index
    %130 = vector.load %arg6[%c3_129, %c0_130, %c0_131] : memref<5x128x256xf32, #tpu.memory_space<vmem>>, vector<1x128x256xf32>
    %131 = vector.shape_cast %130 : vector<1x128x256xf32> to vector<128x256xf32>
    %cst_132 = arith.constant dense<0.000000e+00> : vector<1x256xf32>
    %132 = tpu.matmul %129, %131, %cst_132 {dimension_numbers = #tpu.dot_dimension_numbers<[1], [0], [0], [1], [0, 0, 1, 1], [], []>} : vector<1x128xf32>, vector<128x256xf32>, vector<1x256xf32> -> vector<1x256xf32>
    %133 = arith.addf %128, %132 : vector<1x256xf32>
    %c4_133 = arith.constant 4 : index
    %c0_134 = arith.constant 0 : index
    %134 = vector.load %arg15[%c4_133, %c0_134] : memref<5x128xf32, #tpu.memory_space<vmem>>, vector<1x128xf32>
    %c4_135 = arith.constant 4 : index
    %c0_136 = arith.constant 0 : index
    %c0_137 = arith.constant 0 : index
    %135 = vector.load %arg6[%c4_135, %c0_136, %c0_137] : memref<5x128x256xf32, #tpu.memory_space<vmem>>, vector<1x128x256xf32>
    %136 = vector.shape_cast %135 : vector<1x128x256xf32> to vector<128x256xf32>
    %cst_138 = arith.constant dense<0.000000e+00> : vector<1x256xf32>
    %137 = tpu.matmul %134, %136, %cst_138 {dimension_numbers = #tpu.dot_dimension_numbers<[1], [0], [0], [1], [0, 0, 1, 1], [], []>} : vector<1x128xf32>, vector<128x256xf32>, vector<1x256xf32> -> vector<1x256xf32>
    %138 = arith.addf %133, %137 : vector<1x256xf32>
    %cst_139 = arith.constant 0.000000e+00 : f32
    %139 = vector.broadcast %cst_139 : f32 to vector<1x256xf32>
    %140 = arith.maximumf %138, %139 : vector<1x256xf32>
    %c0_140 = arith.constant 0 : index
    %c0_141 = arith.constant 0 : index
    %141 = vector.load %arg8[%c0_140, %c0_141] : memref<256x128xf32, #tpu.memory_space<vmem>>, vector<256x128xf32>
    %cst_142 = arith.constant dense<0.000000e+00> : vector<1x128xf32>
    %142 = tpu.matmul %140, %141, %cst_142 {dimension_numbers = #tpu.dot_dimension_numbers<[1], [0], [0], [1], [0, 0, 1, 1], [], []>} : vector<1x256xf32>, vector<256x128xf32>, vector<1x128xf32> -> vector<1x128xf32>
    %c0_143 = arith.constant 0 : index
    %c0_144 = arith.constant 0 : index
    %143 = vector.load %arg9[%c0_143, %c0_144] : memref<1x128xf32, #tpu.memory_space<vmem>>, vector<1x128xf32>
    %144 = arith.addf %142, %143 : vector<1x128xf32>
    %cst_145 = arith.constant 0.000000e+00 : f32
    %145 = vector.broadcast %cst_145 : f32 to vector<1x128xf32>
    %146 = arith.maximumf %144, %145 : vector<1x128xf32>
    %c0_146 = arith.constant 0 : index
    %c0_147 = arith.constant 0 : index
    %147 = vector.load %arg10[%c0_146, %c0_147] : memref<128x128xf32, #tpu.memory_space<vmem>>, vector<128x128xf32>
    %cst_148 = arith.constant dense<0.000000e+00> : vector<1x128xf32>
    %148 = tpu.matmul %146, %147, %cst_148 {dimension_numbers = #tpu.dot_dimension_numbers<[1], [0], [0], [1], [0, 0, 1, 1], [], []>} : vector<1x128xf32>, vector<128x128xf32>, vector<1x128xf32> -> vector<1x128xf32>
    %c0_149 = arith.constant 0 : index
    %c0_150 = arith.constant 0 : index
    %149 = vector.load %arg11[%c0_149, %c0_150] : memref<1x128xf32, #tpu.memory_space<vmem>>, vector<1x128xf32>
    %150 = arith.addf %148, %149 : vector<1x128xf32>
    %c0_151 = arith.constant 0 : index
    %c0_152 = arith.constant 0 : index
    %c0_153 = arith.constant 0 : index
    %151 = vector.load %arg12[%c0_151, %c0_152, %c0_153] : memref<1x1x128xf32, #tpu.memory_space<vmem>>, vector<1x1x128xf32>
    %152 = vector.shape_cast %151 : vector<1x1x128xf32> to vector<1x128xf32>
    %153 = vector.shape_cast %150 : vector<1x128xf32> to vector<1x1x128xf32>
    tpu.vector_store %arg12[%c0_151, %c0_152, %c0_153], %153 {strides = array<i32>} : memref<1x1x128xf32, #tpu.memory_space<vmem>>, vector<1x1x128xf32>,
    return
  }
  func.func @transform_0(%arg0: i32) -> (i32, i32, i32, i32) {
    %c0_i32 = arith.constant 0 : i32
    %c0_i32_0 = arith.constant 0 : i32
    %c0_i32_1 = arith.constant 0 : i32
    %c0_i32_2 = arith.constant 0 : i32
    return %arg0, %c0_i32, %c0_i32_0, %c0_i32_1 : i32, i32, i32, i32
  }
  func.func @transform_1(%arg0: i32) -> (i32, i32, i32) {
    %c0_i32 = arith.constant 0 : i32
    %c0_i32_0 = arith.constant 0 : i32
    %c0_i32_1 = arith.constant 0 : i32
    %c0_i32_2 = arith.constant 0 : i32
    return %c0_i32, %c0_i32_0, %c0_i32_1 : i32, i32, i32
  }
  func.func @transform_2(%arg0: i32) -> (i32, i32) {
    %c0_i32 = arith.constant 0 : i32
    %c0_i32_0 = arith.constant 0 : i32
    %c0_i32_1 = arith.constant 0 : i32
    return %c0_i32, %c0_i32_0 : i32, i32
  }
  func.func @transform_3(%arg0: i32) -> (i32, i32, i32) {
    %c0_i32 = arith.constant 0 : i32
    %c0_i32_0 = arith.constant 0 : i32
    %c0_i32_1 = arith.constant 0 : i32
    %c0_i32_2 = arith.constant 0 : i32
    return %c0_i32, %c0_i32_0, %c0_i32_1 : i32, i32, i32
  }
  func.func @transform_4(%arg0: i32) -> (i32, i32) {
    %c0_i32 = arith.constant 0 : i32
    %c0_i32_0 = arith.constant 0 : i32
    %c0_i32_1 = arith.constant 0 : i32
    return %c0_i32, %c0_i32_0 : i32, i32
  }
  func.func @transform_5(%arg0: i32) -> (i32, i32, i32) {
    %c0_i32 = arith.constant 0 : i32
    %c0_i32_0 = arith.constant 0 : i32
    %c0_i32_1 = arith.constant 0 : i32
    %c0_i32_2 = arith.constant 0 : i32
    return %c0_i32, %c0_i32_0, %c0_i32_1 : i32, i32, i32
  }
  func.func @transform_6(%arg0: i32) -> (i32, i32) {
    %c0_i32 = arith.constant 0 : i32
    %c0_i32_0 = arith.constant 0 : i32
    %c0_i32_1 = arith.constant 0 : i32
    return %c0_i32, %c0_i32_0 : i32, i32
  }
  func.func @transform_7(%arg0: i32) -> (i32, i32) {
    %c0_i32 = arith.constant 0 : i32
    %c0_i32_0 = arith.constant 0 : i32
    %c0_i32_1 = arith.constant 0 : i32
    return %c0_i32, %c0_i32_0 : i32, i32
  }
  func.func @transform_8(%arg0: i32) -> (i32, i32) {
    %c0_i32 = arith.constant 0 : i32
    %c0_i32_0 = arith.constant 0 : i32
    %c0_i32_1 = arith.constant 0 : i32
    return %c0_i32, %c0_i32_0 : i32, i32
  }
  func.func @transform_9(%arg0: i32) -> (i32, i32) {
    %c0_i32 = arith.constant 0 : i32
    %c0_i32_0 = arith.constant 0 : i32
    %c0_i32_1 = arith.constant 0 : i32
    return %c0_i32, %c0_i32_0 : i32, i32
  }
  func.func @transform_10(%arg0: i32) -> (i32, i32) {
    %c0_i32 = arith.constant 0 : i32
    %c0_i32_0 = arith.constant 0 : i32
    %c0_i32_1 = arith.constant 0 : i32
    return %c0_i32, %c0_i32_0 : i32, i32
  }
  func.func @transform_11(%arg0: i32) -> (i32, i32, i32) {
    %c0_i32 = arith.constant 0 : i32
    %c0_i32_0 = arith.constant 0 : i32
    %c0_i32_1 = arith.constant 0 : i32
    return %arg0, %c0_i32, %c0_i32_0 : i32, i32, i32
  }
}

</mosaic_0001>

<llo_original>
// kernel: lenet_forward.1
$region0: #{lenet_forward.1}
  #allocation0 [shape = 'u32[]', space=smem, size = 0x4, offset = 0x4, fixed_abs, tag = 'smem constant byte address 0x4 - core index']
  #allocation1 [shape = 'u32[144,128]{1,0:T(1,128)}', space=vmem, size = 0x12000, scoped, tag = 'internal scratch']
  #allocation2 [shape = 'f32[8,128]{1,0:T(8,128)}', space=vmem, size = 0x1000, scoped, tag = 'scratch operand']
  #allocation3 [shape = 'f32[8,128]{1,0:T(8,128)}', space=vmem, size = 0x1000, scoped, tag = 'scratch operand']
  #allocation4 [shape = 'f32[5,128]{1,0:T(8,128)}', space=vmem, size = 0x1000, scoped, tag = 'scratch operand']
  %s0 = inlined_call_operand.vmem [shape: f32[2,5,32,96], index: 0, kind: input, shape index: {}]
  %s1 = inlined_call_operand.hbm [shape: f32[5,96,256], index: 1, kind: input, shape index: {}]
  %s2 = inlined_call_operand.vmem [shape: f32[1,128], index: 2, kind: input, shape index: {}]
  %s3 = inlined_call_operand.vmem [shape: f32[5,128,256], index: 3, kind: input, shape index: {}]
  %s4 = inlined_call_operand.vmem [shape: f32[1,128], index: 4, kind: input, shape index: {}]
  %s5 = inlined_call_operand.hbm [shape: f32[5,128,256], index: 5, kind: input, shape index: {}]
  %s6 = inlined_call_operand.vmem [shape: f32[1,256], index: 6, kind: input, shape index: {}]
  %s7 = inlined_call_operand.vmem [shape: f32[256,128], index: 7, kind: input, shape index: {}]
  %s8 = inlined_call_operand.vmem [shape: f32[1,128], index: 8, kind: input, shape index: {}]
  %s9 = inlined_call_operand.vmem [shape: f32[128,128], index: 9, kind: input, shape index: {}]
  %s10 = inlined_call_operand.vmem [shape: f32[1,128], index: 10, kind: input, shape index: {}]
  %s11 = inlined_call_operand.hbm [shape: f32[2,1,128], index: 11, kind: output, shape index: {}]
  %s12 = sld [smem:[#allocation0]]
  $region85: #{lenet_forward.1} parent=0
    _
  %s14 = ssub.s32 1, %s12
  %s15 = scalar_select 0, %s14, %s12
  $region1: #{lenet_forward.1} parent=0
    #allocation5 [shape = 'u8[491520]{0}', space=vmem, size = 0x78000, scoped, tag = 'input window, operand 1, single buffered']
    #allocation6 [shape = 's32[2]{0}', space=sflag, size = 0x8, scoped, tag = 'scoped memory for lenet_forward.1']
    #allocation7 [shape = 's32[2]{0}', space=sflag, size = 0x8, scoped, tag = 'scoped memory for lenet_forward.1']
    #allocation8 [shape = 'u8[655360]{0}', space=vmem, size = 0xa0000, scoped, tag = 'input window, operand 5, single buffered']
    #allocation9 [shape = 's32[1]{0}', space=sflag, size = 0x4, scoped, tag = 'scoped memory for lenet_forward.1']
    #allocation10 [shape = 'u8[1024]{0}', space=vmem, size = 0x400, scoped, tag = 'output window, operand 0']
    %16 = vsyncpa [#allocation6], 0
    %17 = vsyncpa [#allocation9], 0
    %18 = vsyncpa [#allocation7], 0
    %s19 = scalar_lea.sflag [#allocation7], 1
    %20 = vsyncpa %s19, 0
    loop: start=0, step=1, limit=4
    $region2: #{lenet_forward.1} parent=1 // loop_pre_header
      _
    $region3: #{lenet_forward.1} parent=1 // loop_header
      %s22 = sphi 0, %s26
      %p23 = scmp.ge.s32.totalorder %s22, 4
      %s32 = sphi 0, %s34
      %s35 = sphi 0, %s32
      %s36 = sphi 0, %s35
      %s52 = sphi 0, %s36
      %s56 = sphi 0, %s56
      %s58 = sphi 0, %s56
      %s59 = sphi 0, %s58
      %s73 = sphi 0, %s59
      %s77 = sphi 0, %s77
      %s79 = sphi 0, %s77
      %s80 = sphi 0, %s79
      %s94 = sphi 0, %s80
      %s98 = sphi 0, %s98
      %s100 = sphi 0, %s98
      %s101 = sphi 0, %s100
      %s115 = sphi 0, %s101
      %s119 = sphi 0, %s119
      %s121 = sphi 0, %s119
      %s122 = sphi 0, %s121
      %s136 = sphi 0, %s122
      %s140 = sphi 0, %s140
      %s142 = sphi 0, %s140
      %s143 = sphi 0, %s142
      %s157 = sphi 0, %s143
      %s161 = sphi 0, %s161
      %s163 = sphi 0, %s161
      %s164 = sphi 0, %s163
      %s178 = sphi 0, %s164
      %s182 = sphi 0, %s182
      %s184 = sphi 0, %s182
      %s185 = sphi 0, %s184
      %s199 = sphi 0, %s185
      %s203 = sphi 0, %s203
      %s205 = sphi 0, %s203
      %s206 = sphi 0, %s205
      %s220 = sphi 0, %s206
      %s224 = sphi 0, %s224
      %s226 = sphi 0, %s224
      %s227 = sphi 0, %s226
      %s241 = sphi 0, %s227
      %s245 = sphi 0, %s245
      %s247 = sphi 0, %s245
      %s248 = sphi 0, %s247
      %s262 = sphi 0, %s248
      %s268 = sphi 0, %s270
      %s271 = sphi 0, %s268
      %s272 = sphi 0, %s271
      %s288 = sphi 0, %s272
    $region4: #{lenet_forward.1} parent=1 // loop_header_branch
      %25 = sbr.rel (%p23) target = $region8
    $region5: #{lenet_forward.1} parent=1 // loop_body
      %s27 = ssub.s32 %s22, 1
      %s28 = ssub.s32 %s22, 2
      %s29 = sadd.s32 %s22, 1
      %s30 = ssub.s32 %s22, %s29
      %p31 = scmp.eq.s32.totalorder %s30, 0
      %s33 = sadd.s32 %s32, 1
      %s34 = scalar_select %p31, %s32, %s33
      %p37 = pneg %p31
      %p38 = scmp.eq.s32.totalorder %s22, 1
      %p39 = por %p37, %p38
      %p40 = scmp.ne.s32.totalorder %s32, %s35
      %p41 = scmp.eq.s32.totalorder %s22, 0
      %p42 = por %p40, %p41
      %p43 = scmp.ne.s32.totalorder %s32, %s35
      %p44 = scmp.eq.s32.totalorder %s27, 1
      %p45 = por %p43, %p44
      %p46 = scmp.ne.s32.totalorder %s35, %s36
      %p47 = scmp.eq.s32.totalorder %s27, 0
      %p48 = por %p46, %p47
      %p49 = scmp.ne.s32.totalorder %s35, %s36
      %p50 = scmp.eq.s32.totalorder %s28, 1
      %p51 = por %p49, %p50
      %p53 = scmp.ne.s32.totalorder %s36, %s52
      %p54 = scmp.eq.s32.totalorder %s28, 0
      %p55 = por %p53, %p54
      %s57 = sadd.s32 %s56, 1
      %p60 = scmp.eq.s32.totalorder %s22, 1
      %p61 = scmp.ne.s32.totalorder %s56, %s58
      %p62 = scmp.eq.s32.totalorder %s22, 0
      %p63 = por %p61, %p62
      %p64 = scmp.ne.s32.totalorder %s56, %s58
      %p65 = scmp.eq.s32.totalorder %s27, 1
      %p66 = por %p64, %p65
      %p67 = scmp.ne.s32.totalorder %s58, %s59
      %p68 = scmp.eq.s32.totalorder %s27, 0
      %p69 = por %p67, %p68
      %p70 = scmp.ne.s32.totalorder %s58, %s59
      %p71 = scmp.eq.s32.totalorder %s28, 1
      %p72 = por %p70, %p71
      %p74 = scmp.ne.s32.totalorder %s59, %s73
      %p75 = scmp.eq.s32.totalorder %s28, 0
      %p76 = por %p74, %p75
      %s78 = sadd.s32 %s77, 1
      %p81 = scmp.eq.s32.totalorder %s22, 1
      %p82 = scmp.ne.s32.totalorder %s77, %s79
      %p83 = scmp.eq.s32.totalorder %s22, 0
      %p84 = por %p82, %p83
      %p85 = scmp.ne.s32.totalorder %s77, %s79
      %p86 = scmp.eq.s32.totalorder %s27, 1
      %p87 = por %p85, %p86
      %p88 = scmp.ne.s32.totalorder %s79, %s80
      %p89 = scmp.eq.s32.totalorder %s27, 0
      %p90 = por %p88, %p89
      %p91 = scmp.ne.s32.totalorder %s79, %s80
      %p92 = scmp.eq.s32.totalorder %s28, 1
      %p93 = por %p91, %p92
      %p95 = scmp.ne.s32.totalorder %s80, %s94
      %p96 = scmp.eq.s32.totalorder %s28, 0
      %p97 = por %p95, %p96
      %s99 = sadd.s32 %s98, 1
      %p102 = scmp.eq.s32.totalorder %s22, 1
      %p103 = scmp.ne.s32.totalorder %s98, %s100
      %p104 = scmp.eq.s32.totalorder %s22, 0
      %p105 = por %p103, %p104
      %p106 = scmp.ne.s32.totalorder %s98, %s100
      %p107 = scmp.eq.s32.totalorder %s27, 1
      %p108 = por %p106, %p107
      %p109 = scmp.ne.s32.totalorder %s100, %s101
      %p110 = scmp.eq.s32.totalorder %s27, 0
      %p111 = por %p109, %p110
      %p112 = scmp.ne.s32.totalorder %s100, %s101
      %p113 = scmp.eq.s32.totalorder %s28, 1
      %p114 = por %p112, %p113
      %p116 = scmp.ne.s32.totalorder %s101, %s115
      %p117 = scmp.eq.s32.totalorder %s28, 0
      %p118 = por %p116, %p117
      %s120 = sadd.s32 %s119, 1
      %p123 = scmp.eq.s32.totalorder %s22, 1
      %p124 = scmp.ne.s32.totalorder %s119, %s121
      %p125 = scmp.eq.s32.totalorder %s22, 0
      %p126 = por %p124, %p125
      %p127 = scmp.ne.s32.totalorder %s119, %s121
      %p128 = scmp.eq.s32.totalorder %s27, 1
      %p129 = por %p127, %p128
      %p130 = scmp.ne.s32.totalorder %s121, %s122
      %p131 = scmp.eq.s32.totalorder %s27, 0
      %p132 = por %p130, %p131
      %p133 = scmp.ne.s32.totalorder %s121, %s122
      %p134 = scmp.eq.s32.totalorder %s28, 1
      %p135 = por %p133, %p134
      %p137 = scmp.ne.s32.totalorder %s122, %s136
      %p138 = scmp.eq.s32.totalorder %s28, 0
      %p139 = por %p137, %p138
      %s141 = sadd.s32 %s140, 1
      %p144 = scmp.eq.s32.totalorder %s22, 1
      %p145 = scmp.ne.s32.totalorder %s140, %s142
      %p146 = scmp.eq.s32.totalorder %s22, 0
      %p147 = por %p145, %p146
      %p148 = scmp.ne.s32.totalorder %s140, %s142
      %p149 = scmp.eq.s32.totalorder %s27, 1
      %p150 = por %p148, %p149
      %p151 = scmp.ne.s32.totalorder %s142, %s143
      %p152 = scmp.eq.s32.totalorder %s27, 0
      %p153 = por %p151, %p152
      %p154 = scmp.ne.s32.totalorder %s142, %s143
      %p155 = scmp.eq.s32.totalorder %s28, 1
      %p156 = por %p154, %p155
      %p158 = scmp.ne.s32.totalorder %s143, %s157
      %p159 = scmp.eq.s32.totalorder %s28, 0
      %p160 = por %p158, %p159
      %s162 = sadd.s32 %s161, 1
      %p165 = scmp.eq.s32.totalorder %s22, 1
      %p166 = scmp.ne.s32.totalorder %s161, %s163
      %p167 = scmp.eq.s32.totalorder %s22, 0
      %p168 = por %p166, %p167
      %p169 = scmp.ne.s32.totalorder %s161, %s163
      %p170 = scmp.eq.s32.totalorder %s27, 1
      %p171 = por %p169, %p170
      %p172 = scmp.ne.s32.totalorder %s163, %s164
      %p173 = scmp.eq.s32.totalorder %s27, 0
      %p174 = por %p172, %p173
      %p175 = scmp.ne.s32.totalorder %s163, %s164
      %p176 = scmp.eq.s32.totalorder %s28, 1
      %p177 = por %p175, %p176
      %p179 = scmp.ne.s32.totalorder %s164, %s178
      %p180 = scmp.eq.s32.totalorder %s28, 0
      %p181 = por %p179, %p180
      %s183 = sadd.s32 %s182, 1
      %p186 = scmp.eq.s32.totalorder %s22, 1
      %p187 = scmp.ne.s32.totalorder %s182, %s184
      %p188 = scmp.eq.s32.totalorder %s22, 0
      %p189 = por %p187, %p188
      %p190 = scmp.ne.s32.totalorder %s182, %s184
      %p191 = scmp.eq.s32.totalorder %s27, 1
      %p192 = por %p190, %p191
      %p193 = scmp.ne.s32.totalorder %s184, %s185
      %p194 = scmp.eq.s32.totalorder %s27, 0
      %p195 = por %p193, %p194
      %p196 = scmp.ne.s32.totalorder %s184, %s185
      %p197 = scmp.eq.s32.totalorder %s28, 1
      %p198 = por %p196, %p197
      %p200 = scmp.ne.s32.totalorder %s185, %s199
      %p201 = scmp.eq.s32.totalorder %s28, 0
      %p202 = por %p200, %p201
      %s204 = sadd.s32 %s203, 1
      %p207 = scmp.eq.s32.totalorder %s22, 1
      %p208 = scmp.ne.s32.totalorder %s203, %s205
      %p209 = scmp.eq.s32.totalorder %s22, 0
      %p210 = por %p208, %p209
      %p211 = scmp.ne.s32.totalorder %s203, %s205
      %p212 = scmp.eq.s32.totalorder %s27, 1
      %p213 = por %p211, %p212
      %p214 = scmp.ne.s32.totalorder %s205, %s206
      %p215 = scmp.eq.s32.totalorder %s27, 0
      %p216 = por %p214, %p215
      %p217 = scmp.ne.s32.totalorder %s205, %s206
      %p218 = scmp.eq.s32.totalorder %s28, 1
      %p219 = por %p217, %p218
      %p221 = scmp.ne.s32.totalorder %s206, %s220
      %p222 = scmp.eq.s32.totalorder %s28, 0
      %p223 = por %p221, %p222
      %s225 = sadd.s32 %s224, 1
      %p228 = scmp.eq.s32.totalorder %s22, 1
      %p229 = scmp.ne.s32.totalorder %s224, %s226
      %p230 = scmp.eq.s32.totalorder %s22, 0
      %p231 = por %p229, %p230
      %p232 = scmp.ne.s32.totalorder %s224, %s226
      %p233 = scmp.eq.s32.totalorder %s27, 1
      %p234 = por %p232, %p233
      %p235 = scmp.ne.s32.totalorder %s226, %s227
      %p236 = scmp.eq.s32.totalorder %s27, 0
      %p237 = por %p235, %p236
      %p238 = scmp.ne.s32.totalorder %s226, %s227
      %p239 = scmp.eq.s32.totalorder %s28, 1
      %p240 = por %p238, %p239
      %p242 = scmp.ne.s32.totalorder %s227, %s241
      %p243 = scmp.eq.s32.totalorder %s28, 0
      %p244 = por %p242, %p243
      %s246 = sadd.s32 %s245, 1
      %p249 = scmp.eq.s32.totalorder %s22, 1
      %p250 = scmp.ne.s32.totalorder %s245, %s247
      %p251 = scmp.eq.s32.totalorder %s22, 0
      %p252 = por %p250, %p251
      %p253 = scmp.ne.s32.totalorder %s245, %s247
      %p254 = scmp.eq.s32.totalorder %s27, 1
      %p255 = por %p253, %p254
      %p256 = scmp.ne.s32.totalorder %s247, %s248
      %p257 = scmp.eq.s32.totalorder %s27, 0
      %p258 = por %p256, %p257
      %p259 = scmp.ne.s32.totalorder %s247, %s248
      %p260 = scmp.eq.s32.totalorder %s28, 1
      %p261 = por %p259, %p260
      %p263 = scmp.ne.s32.totalorder %s248, %s262
      %p264 = scmp.eq.s32.totalorder %s28, 0
      %p265 = por %p263, %p264
      %s266 = ssub.s32 %s22, %s29
      %p267 = scmp.eq.s32.totalorder %s266, 0
      %s269 = sadd.s32 %s268, 1
      %s270 = scalar_select %p267, %s268, %s269
      %p273 = pneg %p267
      %p274 = scmp.eq.s32.totalorder %s22, 1
      %p275 = por %p273, %p274
      %p276 = scmp.ne.s32.totalorder %s268, %s271
      %p277 = scmp.eq.s32.totalorder %s22, 0
      %p278 = por %p276, %p277
      %p279 = scmp.ne.s32.totalorder %s268, %s271
      %p280 = scmp.eq.s32.totalorder %s27, 1
      %p281 = por %p279, %p280
      %p282 = scmp.ne.s32.totalorder %s271, %s272
      %p283 = scmp.eq.s32.totalorder %s27, 0
      %p284 = por %p282, %p283
      %p285 = scmp.ne.s32.totalorder %s271, %s272
      %p286 = scmp.eq.s32.totalorder %s28, 1
      %p287 = por %p285, %p286
      %p289 = scmp.ne.s32.totalorder %s272, %s288
      %p290 = scmp.eq.s32.totalorder %s28, 0
      %p291 = por %p289, %p290
      %p292 = scmp.le.s32.totalorder 1, %s22
      %p293 = scmp.lt.s32.totalorder %s22, 3
      %p294 = pnand %p292, %p293
      %p295 = pneg %p294
      // Predicated region
      $region9: #{lenet_forward.1} parent=5 // pred_check
        _
      $region10: #{lenet_forward.1} parent=5 // pred_check_branch
        %297 = sbr.rel (%p294) target = $region12
      $region11: #{lenet_forward.1} parent=5 // pred_region
        %s298 = ssub.s32 %s22, 1
        // Predicated region
        $region13: #{lenet_forward.1} parent=11 // pred_check
          %p299 = pneg %p69
        $region14: #{lenet_forward.1} parent=11 // pred_check_branch
          %301 = sbr.rel (%p299) target = $region16
        $region15: #{lenet_forward.1} parent=11 // pred_region
          %s303 = ssub.s32 15360, 15360
          %304 = vsyncadd [#allocation6], %s303
          %s305 = sshll.u32 [#allocation5], 4
          %s306 = int_to_ptr.vmem [resolvable:$true] %s305
          %311 = dma.hbm_to_vmem [thread:$0]  %s1, 15360, %s306, [#allocation6], 256, 256, 16
        $region16: #{lenet_forward.1} parent=11 // pred_fallthru
          _
        // Predicated region
        $region17: #{lenet_forward.1} parent=11 // pred_check
          %p312 = pneg %p90
        $region18: #{lenet_forward.1} parent=11 // pred_check_branch
          %314 = sbr.rel (%p312) target = $region20
        $region19: #{lenet_forward.1} parent=11 // pred_region
          _
        $region20: #{lenet_forward.1} parent=11 // pred_fallthru
          _
        // Predicated region
        $region21: #{lenet_forward.1} parent=11 // pred_check
          %p315 = pneg %p111
        $region22: #{lenet_forward.1} parent=11 // pred_check_branch
          %317 = sbr.rel (%p315) target = $region24
        $region23: #{lenet_forward.1} parent=11 // pred_region
          _
        $region24: #{lenet_forward.1} parent=11 // pred_fallthru
          _
        // Predicated region
        $region25: #{lenet_forward.1} parent=11 // pred_check
          %p318 = pneg %p132
        $region26: #{lenet_forward.1} parent=11 // pred_check_branch
          %320 = sbr.rel (%p318) target = $region28
        $region27: #{lenet_forward.1} parent=11 // pred_region
          _
        $region28: #{lenet_forward.1} parent=11 // pred_fallthru
          _
        // Predicated region
        $region29: #{lenet_forward.1} parent=11 // pred_check
          %p321 = pneg %p153
        $region30: #{lenet_forward.1} parent=11 // pred_check_branch
          %323 = sbr.rel (%p321) target = $region32
        $region31: #{lenet_forward.1} parent=11 // pred_region
          %s325 = ssub.s32 20480, 20480
          %326 = vsyncadd [#allocation9], %s325
          %s327 = sshll.u32 [#allocation8], 4
          %s328 = int_to_ptr.vmem [resolvable:$true] %s327
          %333 = dma.hbm_to_vmem [thread:$0]  %s5, 20480, %s328, [#allocation9], 256, 256, 16
        $region32: #{lenet_forward.1} parent=11 // pred_fallthru
          _
        // Predicated region
        $region33: #{lenet_forward.1} parent=11 // pred_check
          %p334 = pneg %p174
        $region34: #{lenet_forward.1} parent=11 // pred_check_branch
          %336 = sbr.rel (%p334) target = $region36
        $region35: #{lenet_forward.1} parent=11 // pred_region
          _
        $region36: #{lenet_forward.1} parent=11 // pred_fallthru
          _
        // Predicated region
        $region37: #{lenet_forward.1} parent=11 // pred_check
          %p337 = pneg %p195
        $region38: #{lenet_forward.1} parent=11 // pred_check_branch
          %339 = sbr.rel (%p337) target = $region40
        $region39: #{lenet_forward.1} parent=11 // pred_region
          _
        $region40: #{lenet_forward.1} parent=11 // pred_fallthru
          _
        // Predicated region
        $region41: #{lenet_forward.1} parent=11 // pred_check
          %p340 = pneg %p216
        $region42: #{lenet_forward.1} parent=11 // pred_check_branch
          %342 = sbr.rel (%p340) target = $region44
        $region43: #{lenet_forward.1} parent=11 // pred_region
          _
        $region44: #{lenet_forward.1} parent=11 // pred_fallthru
          _
        // Predicated region
        $region45: #{lenet_forward.1} parent=11 // pred_check
          %p343 = pneg %p237
        $region46: #{lenet_forward.1} parent=11 // pred_check_branch
          %345 = sbr.rel (%p343) target = $region48
        $region47: #{lenet_forward.1} parent=11 // pred_region
          _
        $region48: #{lenet_forward.1} parent=11 // pred_fallthru
          _
        // Predicated region
        $region49: #{lenet_forward.1} parent=11 // pred_check
          %p346 = pneg %p258
        $region50: #{lenet_forward.1} parent=11 // pred_check_branch
          %348 = sbr.rel (%p346) target = $region52
        $region51: #{lenet_forward.1} parent=11 // pred_region
          _
        $region52: #{lenet_forward.1} parent=11 // pred_fallthru
          _
      $region12: #{lenet_forward.1} parent=5 // pred_fallthru
        _
      %p349 = scmp.lt.s32.totalorder %s22, 2
      // Predicated region
      $region53: #{lenet_forward.1} parent=5 // pred_check
        %p350 = pneg %p349
      $region54: #{lenet_forward.1} parent=5 // pred_check_branch
        %352 = sbr.rel (%p350) target = $region56
      $region55: #{lenet_forward.1} parent=5 // pred_region
        // Predicated region
        $region57: #{lenet_forward.1} parent=55 // pred_check
          %p353 = pneg %p42
        $region58: #{lenet_forward.1} parent=55 // pred_check_branch
          %355 = sbr.rel (%p353) target = $region60
        $region59: #{lenet_forward.1} parent=55 // pred_region
          %p356 = scmp.lt.s32.totalorder %s22, 1
          %s357 = scalar_select %p356, %s22, 1
          %s358 = smul.addr %s357, 20
          %s359 = smul.addr %s358, 8
          %s360 = scalar_lea.vmem %s0, %s359
        $region60: #{lenet_forward.1} parent=55 // pred_fallthru
          _
      $region56: #{lenet_forward.1} parent=5 // pred_fallthru
        _
      %p361 = scmp.le.s32.totalorder 1, %s22
      %p362 = scmp.lt.s32.totalorder %s22, 3
      %p363 = pnand %p361, %p362
      %p364 = pneg %p363
      // Predicated region
      $region61: #{lenet_forward.1} parent=5 // pred_check
        _
      $region62: #{lenet_forward.1} parent=5 // pred_check_branch
        %366 = sbr.rel (%p363) target = $region64
      $region63: #{lenet_forward.1} parent=5 // pred_region
        %s367 = ssub.s32 %s22, 1
        // Predicated region
        $region65: #{lenet_forward.1} parent=63 // pred_check
          %p368 = pneg %p69
        $region66: #{lenet_forward.1} parent=63 // pred_check_branch
          %370 = sbr.rel (%p368) target = $region68
        $region67: #{lenet_forward.1} parent=63 // pred_region
          %371 = dma.done [#allocation6], 15360
        $region68: #{lenet_forward.1} parent=63 // pred_fallthru
          _
        // Predicated region
        $region69: #{lenet_forward.1} parent=63 // pred_check
          %p372 = pneg %p153
        $region70: #{lenet_forward.1} parent=63 // pred_check_branch
          %374 = sbr.rel (%p372) target = $region72
        $region71: #{lenet_forward.1} parent=63 // pred_region
          %375 = dma.done [#allocation9], 20480
        $region72: #{lenet_forward.1} parent=63 // pred_fallthru
          _
        %p376 = scmp.lt.s32.totalorder %s27, 1
        %s377 = scalar_select %p376, %s27, 1
        %s378 = smul.addr %s377, 20
        %s379 = smul.addr %s378, 8
        %s380 = scalar_lea.vmem %s0, %s379
        %p381 = pneg %p48
        %p382 = pneg %p45
        %p383 = pneg %p69
        %p384 = pneg %p66
        %p385 = pneg %p90
        %p386 = pneg %p87
        %p387 = pneg %p111
        %p388 = pneg %p108
        %p389 = pneg %p132
        %p390 = pneg %p129
        %p391 = pneg %p153
        %p392 = pneg %p150
        %p393 = pneg %p174
        %p394 = pneg %p171
        %p395 = pneg %p195
        %p396 = pneg %p192
        %p397 = pneg %p216
        %p398 = pneg %p213
        %p399 = pneg %p237
        %p400 = pneg %p234
        %p401 = pneg %p258
        %p402 = pneg %p255
        %p403 = pneg %p284
        %p404 = pneg %p281
        %s405 = sand.u32 %s271, 1
        %s406 = scalar_lea.sflag [#allocation7], %s405
        %s407 = sand.u32 %s271, 1
        %s408 = scalar_lea.vmem [#allocation10], %s407
        %p409 = scmp.lt.s32.totalorder %s27, 1
        %s410 = scalar_select %p409, %s27, 1
        %s411 = smul.addr %s410, 20
        %s412 = smul.addr %s411, 8
        %s413 = scalar_lea.vmem %s0, %s412
        %v414 = vld [vmem:[%s413] sm:$0xff]
        %v415 = vld [vmem:[%s413 + $0x8] sm:$0xff]
        %v416 = vld [vmem:[%s413 + $0x10] sm:$0xff]
        %v417 = vld [vmem:[%s413 + $0x18] sm:$0xff]
        %v418 = vld [vmem:[#allocation5] sm:$0xff]
        %v419 = vld [vmem:[#allocation5 + $0x8] sm:$0xff]
        %v420 = vld [vmem:[#allocation5 + $0x10] sm:$0xff]
        %v421 = vld [vmem:[#allocation5 + $0x18] sm:$0xff]
        %v422 = vld [vmem:[#allocation5 + $0x20] sm:$0xff]
        %v423 = vld [vmem:[#allocation5 + $0x28] sm:$0xff]
        %v424 = vld [vmem:[#allocation5 + $0x30] sm:$0xff]
        %v425 = vld [vmem:[#allocation5 + $0x38] sm:$0xff]
        %v426 = vld [vmem:[#allocation5 + $0x40] sm:$0xff]
        %v427 = vld [vmem:[#allocation5 + $0x48] sm:$0xff]
        %v428 = vld [vmem:[#allocation5 + $0x50] sm:$0xff]
        %v429 = vld [vmem:[#allocation5 + $0x58] sm:$0xff]
        %v430 = vld [vmem:[#allocation5 + $0x60] sm:$0xff]
        %v431 = vld [vmem:[#allocation5 + $0x68] sm:$0xff]
        %v432 = vld [vmem:[#allocation5 + $0x70] sm:$0xff]
        %v433 = vld [vmem:[#allocation5 + $0x78] sm:$0xff]
        %v434 = vld [vmem:[#allocation5 + $0x80] sm:$0xff]
        %v435 = vld [vmem:[#allocation5 + $0x88] sm:$0xff]
        %v436 = vld [vmem:[#allocation5 + $0x90] sm:$0xff]
        %v437 = vld [vmem:[#allocation5 + $0x98] sm:$0xff]
        %v438 = vld [vmem:[#allocation5 + $0xa0] sm:$0xff]
        %v439 = vld [vmem:[#allocation5 + $0xa8] sm:$0xff]
        %v440 = vld [vmem:[#allocation5 + $0xb0] sm:$0xff]
        %v441 = vld [vmem:[#allocation5 + $0xb8] sm:$0xff]
        %s442 = scalar_lea.vmem %s413, 32
        %v443 = vld [vmem:[%s442] sm:$0xff]
        %v444 = vld [vmem:[%s442 + $0x8] sm:$0xff]
        %v445 = vld [vmem:[%s442 + $0x10] sm:$0xff]
        %v446 = vld [vmem:[%s442 + $0x18] sm:$0xff]
        %s447 = scalar_lea.vmem [#allocation5], 192
        %v448 = vld [vmem:[%s447] sm:$0xff]
        %v449 = vld [vmem:[%s447 + $0x8] sm:$0xff]
        %v450 = vld [vmem:[%s447 + $0x10] sm:$0xff]
        %v451 = vld [vmem:[%s447 + $0x18] sm:$0xff]
        %v452 = vld [vmem:[%s447 + $0x20] sm:$0xff]
        %v453 = vld [vmem:[%s447 + $0x28] sm:$0xff]
        %v454 = vld [vmem:[%s447 + $0x30] sm:$0xff]
        %v455 = vld [vmem:[%s447 + $0x38] sm:$0xff]
        %v456 = vld [vmem:[%s447 + $0x40] sm:$0xff]
        %v457 = vld [vmem:[%s447 + $0x48] sm:$0xff]
        %v458 = vld [vmem:[%s447 + $0x50] sm:$0xff]
        %v459 = vld [vmem:[%s447 + $0x58] sm:$0xff]
        %v460 = vld [vmem:[%s447 + $0x60] sm:$0xff]
        %v461 = vld [vmem:[%s447 + $0x68] sm:$0xff]
        %v462 = vld [vmem:[%s447 + $0x70] sm:$0xff]
        %v463 = vld [vmem:[%s447 + $0x78] sm:$0xff]
        %v464 = vld [vmem:[%s447 + $0x80] sm:$0xff]
        %v465 = vld [vmem:[%s447 + $0x88] sm:$0xff]
        %v466 = vld [vmem:[%s447 + $0x90] sm:$0xff]
        %v467 = vld [vmem:[%s447 + $0x98] sm:$0xff]
        %v468 = vld [vmem:[%s447 + $0xa0] sm:$0xff]
        %v469 = vld [vmem:[%s447 + $0xa8] sm:$0xff]
        %v470 = vld [vmem:[%s447 + $0xb0] sm:$0xff]
        %v471 = vld [vmem:[%s447 + $0xb8] sm:$0xff]
        %vm472 = vcmask 785408
        %v474 = vsel %vm472, %v443, 0
        %v477 = vsel %vm472, %v444, 0
        %v480 = vsel %vm472, %v445, 0
        %v483 = vsel %vm472, %v446, 0
        %485 = vmatprep.subr.mxu0 %v449
        %486 = vmatpush1.msra.mxu0 %v448
        %487 = vmatprep.subr.mxu0 %v451
        %488 = vmatpush1.msra.mxu0 %v450
        %489 = vmatprep.subr.mxu0 %v453
        %490 = vmatpush1.msra.mxu0 %v452
        %491 = vmatprep.subr.mxu0 %v455
        %492 = vmatpush1.msra.mxu0 %v454
        %493 = vmatprep.subr.mxu0 %v457
        %494 = vmatpush1.msra.mxu0 %v456
        %495 = vmatprep.subr.mxu0 %v459
        %496 = vmatpush1.msra.mxu0 %v458
        %497 = vmatprep.subr.mxu0 %v461
        %498 = vmatpush1.msra.mxu0 %v460
        %499 = vmatprep.subr.mxu0 %v463
        %500 = vmatpush1.msra.mxu0 %v462
        %501 = vmatprep.subr.mxu0 %v465
        %502 = vmatpush1.msra.mxu0 %v464
        %503 = vmatprep.subr.mxu0 %v467
        %504 = vmatpush1.msra.mxu0 %v466
        %505 = vmatprep.subr.mxu0 %v469
        %506 = vmatpush1.msra.mxu0 %v468
        %507 = vmatprep.subr.mxu0 %v471
        %508 = vmatpush1.msra.mxu0 %v470
        %509 = vmatprep.subr.mxu0 0.0
        %510 = vmatpush1.msra.mxu0 0.0
        %511 = vmatprep.subr.mxu0 0.0
        %512 = vmatpush1.msra.mxu0 0.0
        %513 = vmatprep.subr.mxu0 0.0
        %514 = vmatpush1.msra.mxu0 0.0
        %515 = vmatprep.subr.mxu0 0.0
        %516 = vmatpush1.msra.mxu0 0.0
        %517 = vmatprep.subr.mxu0 0.0
        %518 = vmatpush1.msra.mxu0 0.0
        %519 = vmatprep.subr.mxu0 0.0
        %520 = vmatpush1.msra.mxu0 0.0
        %521 = vmatprep.subr.mxu0 0.0
        %522 = vmatpush1.msra.mxu0 0.0
        %523 = vmatprep.subr.mxu0 0.0
        %524 = vmatpush1.msra.mxu0 0.0
        %525 = vmatprep.subr.mxu0 0.0
        %526 = vmatpush1.msra.mxu0 0.0
        %527 = vmatprep.subr.mxu0 0.0
        %528 = vmatpush1.msra.mxu0 0.0
        %529 = vmatprep.subr.mxu0 0.0
        %530 = vmatpush1.msra.mxu0 0.0
        %531 = vmatprep.subr.mxu0 0.0
        %532 = vmatpush1.msra.mxu0 0.0
        %533 = vmatprep.subr.mxu0 0.0
        %534 = vmatpush1.msra.mxu0 0.0
        %535 = vmatprep.subr.mxu0 0.0
        %536 = vmatpush1.msra.mxu0 0.0
        %537 = vmatprep.subr.mxu0 0.0
        %538 = vmatpush1.msra.mxu0 0.0
        %539 = vmatprep.subr.mxu0 0.0
        %540 = vmatpush1.msra.mxu0 0.0
        %541 = vmatprep.subr.mxu0 0.0
        %542 = vmatpush1.msra.mxu0 0.0
        %543 = vmatprep.subr.mxu0 0.0
        %544 = vmatpush1.msra.mxu0 0.0
        %545 = vmatprep.subr.mxu0 0.0
        %546 = vmatpush1.msra.mxu0 0.0
        %547 = vmatprep.subr.mxu0 0.0
        %548 = vmatpush1.msra.mxu0 0.0
        %549 = vmatprep.mubr.f32.mxu0 0.0
        %550 = vmatmul.mubr.f32.gmra.mrb[0].mxu0 %v474
        %v551 = vpop.f32.mrb[0].mxu0
        %v552 = vadd.f32 0.0, %v551
        %v553 = vpop.f32.mrb[0].mxu0
        %v554 = vadd.f32 0.0, %v553
        %555 = vmatprep.mubr.f32.mxu0 0.0
        %556 = vmatmul.mubr.f32.gmra.mrb[0].mxu0 %v477
        %v557 = vpop.f32.mrb[0].mxu0
        %v558 = vadd.f32 0.0, %v557
        %v559 = vpop.f32.mrb[0].mxu0
        %v560 = vadd.f32 0.0, %v559
        %561 = vmatprep.mubr.f32.mxu0 0.0
        %562 = vmatmul.mubr.f32.gmra.mrb[0].mxu0 %v480
        %v563 = vpop.f32.mrb[0].mxu0
        %v564 = vadd.f32 0.0, %v563
        %v565 = vpop.f32.mrb[0].mxu0
        %v566 = vadd.f32 0.0, %v565
        %567 = vmatprep.mubr.f32.mxu0 0.0
        %568 = vmatmul.mubr.f32.gmra.mrb[0].mxu0 %v483
        %v569 = vpop.f32.mrb[0].mxu0
        %v570 = vadd.f32 0.0, %v569
        %v571 = vpop.f32.mrb[0].mxu0
        %v572 = vadd.f32 0.0, %v571
        %573 = vdwg.mxu0
        %v575 = vsel %vm472, %v414, 0
        %v578 = vsel %vm472, %v415, 0
        %v581 = vsel %vm472, %v416, 0
        %v584 = vsel %vm472, %v417, 0
        %586 = vmatprep.subr.mxu0 %v419
        %587 = vmatpush1.msra.mxu0 %v418
        %588 = vmatprep.subr.mxu0 %v421
        %589 = vmatpush1.msra.mxu0 %v420
        %590 = vmatprep.subr.mxu0 %v423
        %591 = vmatpush1.msra.mxu0 %v422
        %592 = vmatprep.subr.mxu0 %v425
        %593 = vmatpush1.msra.mxu0 %v424
        %594 = vmatprep.subr.mxu0 %v427
        %595 = vmatpush1.msra.mxu0 %v426
        %596 = vmatprep.subr.mxu0 %v429
        %597 = vmatpush1.msra.mxu0 %v428
        %598 = vmatprep.subr.mxu0 %v431
        %599 = vmatpush1.msra.mxu0 %v430
        %600 = vmatprep.subr.mxu0 %v433
        %601 = vmatpush1.msra.mxu0 %v432
        %602 = vmatprep.subr.mxu0 %v435
        %603 = vmatpush1.msra.mxu0 %v434
        %604 = vmatprep.subr.mxu0 %v437
        %605 = vmatpush1.msra.mxu0 %v436
        %606 = vmatprep.subr.mxu0 %v439
        %607 = vmatpush1.msra.mxu0 %v438
        %608 = vmatprep.subr.mxu0 %v441
        %609 = vmatpush1.msra.mxu0 %v440
        %610 = vmatprep.subr.mxu0 0.0
        %611 = vmatpush1.msra.mxu0 0.0
        %612 = vmatprep.subr.mxu0 0.0
        %613 = vmatpush1.msra.mxu0 0.0
        %614 = vmatprep.subr.mxu0 0.0
        %615 = vmatpush1.msra.mxu0 0.0
        %616 = vmatprep.subr.mxu0 0.0
        %617 = vmatpush1.msra.mxu0 0.0
        %618 = vmatprep.subr.mxu0 0.0
        %619 = vmatpush1.msra.mxu0 0.0
        %620 = vmatprep.subr.mxu0 0.0
        %621 = vmatpush1.msra.mxu0 0.0
        %622 = vmatprep.subr.mxu0 0.0
        %623 = vmatpush1.msra.mxu0 0.0
        %624 = vmatprep.subr.mxu0 0.0
        %625 = vmatpush1.msra.mxu0 0.0
        %626 = vmatprep.subr.mxu0 0.0
        %627 = vmatpush1.msra.mxu0 0.0
        %628 = vmatprep.subr.mxu0 0.0
        %629 = vmatpush1.msra.mxu0 0.0
        %630 = vmatprep.subr.mxu0 0.0
        %631 = vmatpush1.msra.mxu0 0.0
        %632 = vmatprep.subr.mxu0 0.0
        %633 = vmatpush1.msra.mxu0 0.0
        %634 = vmatprep.subr.mxu0 0.0
        %635 = vmatpush1.msra.mxu0 0.0
        %636 = vmatprep.subr.mxu0 0.0
        %637 = vmatpush1.msra.mxu0 0.0
        %638 = vmatprep.subr.mxu0 0.0
        %639 = vmatpush1.msra.mxu0 0.0
        %640 = vmatprep.subr.mxu0 0.0
        %641 = vmatpush1.msra.mxu0 0.0
        %642 = vmatprep.subr.mxu0 0.0
        %643 = vmatpush1.msra.mxu0 0.0
        %644 = vmatprep.subr.mxu0 0.0
        %645 = vmatpush1.msra.mxu0 0.0
        %646 = vmatprep.subr.mxu0 0.0
        %647 = vmatpush1.msra.mxu0 0.0
        %648 = vmatprep.subr.mxu0 0.0
        %649 = vmatpush1.msra.mxu0 0.0
        %650 = vmatprep.mubr.f32.mxu0 0.0
        %651 = vmatmul.mubr.f32.gmra.mrb[0].mxu0 %v575
        %v652 = vpop.f32.mrb[0].mxu0
        %v653 = vadd.f32 %v552, %v652
        %v654 = vpop.f32.mrb[0].mxu0
        %v655 = vadd.f32 %v554, %v654
        %656 = vmatprep.mubr.f32.mxu0 0.0
        %657 = vmatmul.mubr.f32.gmra.mrb[0].mxu0 %v578
        %v658 = vpop.f32.mrb[0].mxu0
        %v659 = vadd.f32 %v558, %v658
        %v660 = vpop.f32.mrb[0].mxu0
        %v661 = vadd.f32 %v560, %v660
        %662 = vmatprep.mubr.f32.mxu0 0.0
        %663 = vmatmul.mubr.f32.gmra.mrb[0].mxu0 %v581
        %v664 = vpop.f32.mrb[0].mxu0
        %v665 = vadd.f32 %v564, %v664
        %v666 = vpop.f32.mrb[0].mxu0
        %v667 = vadd.f32 %v566, %v666
        %668 = vmatprep.mubr.f32.mxu0 0.0
        %669 = vmatmul.mubr.f32.gmra.mrb[0].mxu0 %v584
        %v670 = vpop.f32.mrb[0].mxu0
        %v671 = vadd.f32 %v570, %v670
        %v672 = vpop.f32.mrb[0].mxu0
        %v673 = vadd.f32 %v572, %v672
        %674 = vdwg.mxu0
        %s675 = scalar_lea.vmem %s413, 64
        %v676 = vld [vmem:[%s675] sm:$0xff]
        %v677 = vld [vmem:[%s675 + $0x8] sm:$0xff]
        %v678 = vld [vmem:[%s675 + $0x10] sm:$0xff]
        %v679 = vld [vmem:[%s675 + $0x18] sm:$0xff]
        %s680 = scalar_lea.vmem [#allocation5], 384
        %v681 = vld [vmem:[%s680] sm:$0xff]
        %v682 = vld [vmem:[%s680 + $0x8] sm:$0xff]
        %v683 = vld [vmem:[%s680 + $0x10] sm:$0xff]
        %v684 = vld [vmem:[%s680 + $0x18] sm:$0xff]
        %v685 = vld [vmem:[%s680 + $0x20] sm:$0xff]
        %v686 = vld [vmem:[%s680 + $0x28] sm:$0xff]
        %v687 = vld [vmem:[%s680 + $0x30] sm:$0xff]
        %v688 = vld [vmem:[%s680 + $0x38] sm:$0xff]
        %v689 = vld [vmem:[%s680 + $0x40] sm:$0xff]
        %v690 = vld [vmem:[%s680 + $0x48] sm:$0xff]
        %v691 = vld [vmem:[%s680 + $0x50] sm:$0xff]
        %v692 = vld [vmem:[%s680 + $0x58] sm:$0xff]
        %v693 = vld [vmem:[%s680 + $0x60] sm:$0xff]
        %v694 = vld [vmem:[%s680 + $0x68] sm:$0xff]
        %v695 = vld [vmem:[%s680 + $0x70] sm:$0xff]
        %v696 = vld [vmem:[%s680 + $0x78] sm:$0xff]
        %v697 = vld [vmem:[%s680 + $0x80] sm:$0xff]
        %v698 = vld [vmem:[%s680 + $0x88] sm:$0xff]
        %v699 = vld [vmem:[%s680 + $0x90] sm:$0xff]
        %v700 = vld [vmem:[%s680 + $0x98] sm:$0xff]
        %v701 = vld [vmem:[%s680 + $0xa0] sm:$0xff]
        %v702 = vld [vmem:[%s680 + $0xa8] sm:$0xff]
        %v703 = vld [vmem:[%s680 + $0xb0] sm:$0xff]
        %v704 = vld [vmem:[%s680 + $0xb8] sm:$0xff]
        %v706 = vsel %vm472, %v676, 0
        %v709 = vsel %vm472, %v677, 0
        %v712 = vsel %vm472, %v678, 0
        %v715 = vsel %vm472, %v679, 0
        %717 = vmatprep.subr.mxu0 %v682
        %718 = vmatpush1.msra.mxu0 %v681
        %719 = vmatprep.subr.mxu0 %v684
        %720 = vmatpush1.msra.mxu0 %v683
        %721 = vmatprep.subr.mxu0 %v686
        %722 = vmatpush1.msra.mxu0 %v685
        %723 = vmatprep.subr.mxu0 %v688
        %724 = vmatpush1.msra.mxu0 %v687
        %725 = vmatprep.subr.mxu0 %v690
        %726 = vmatpush1.msra.mxu0 %v689
        %727 = vmatprep.subr.mxu0 %v692
        %728 = vmatpush1.msra.mxu0 %v691
        %729 = vmatprep.subr.mxu0 %v694
        %730 = vmatpush1.msra.mxu0 %v693
        %731 = vmatprep.subr.mxu0 %v696
        %732 = vmatpush1.msra.mxu0 %v695
        %733 = vmatprep.subr.mxu0 %v698
        %734 = vmatpush1.msra.mxu0 %v697
        %735 = vmatprep.subr.mxu0 %v700
        %736 = vmatpush1.msra.mxu0 %v699
        %737 = vmatprep.subr.mxu0 %v702
        %738 = vmatpush1.msra.mxu0 %v701
        %739 = vmatprep.subr.mxu0 %v704
        %740 = vmatpush1.msra.mxu0 %v703
        %741 = vmatprep.subr.mxu0 0.0
        %742 = vmatpush1.msra.mxu0 0.0
        %743 = vmatprep.subr.mxu0 0.0
        %744 = vmatpush1.msra.mxu0 0.0
        %745 = vmatprep.subr.mxu0 0.0
        %746 = vmatpush1.msra.mxu0 0.0
        %747 = vmatprep.subr.mxu0 0.0
        %748 = vmatpush1.msra.mxu0 0.0
        %749 = vmatprep.subr.mxu0 0.0
        %750 = vmatpush1.msra.mxu0 0.0
        %751 = vmatprep.subr.mxu0 0.0
        %752 = vmatpush1.msra.mxu0 0.0
        %753 = vmatprep.subr.mxu0 0.0
        %754 = vmatpush1.msra.mxu0 0.0
        %755 = vmatprep.subr.mxu0 0.0
        %756 = vmatpush1.msra.mxu0 0.0
        %757 = vmatprep.subr.mxu0 0.0
        %758 = vmatpush1.msra.mxu0 0.0
        %759 = vmatprep.subr.mxu0 0.0
        %760 = vmatpush1.msra.mxu0 0.0
        %761 = vmatprep.subr.mxu0 0.0
        %762 = vmatpush1.msra.mxu0 0.0
        %763 = vmatprep.subr.mxu0 0.0
        %764 = vmatpush1.msra.mxu0 0.0
        %765 = vmatprep.subr.mxu0 0.0
        %766 = vmatpush1.msra.mxu0 0.0
        %767 = vmatprep.subr.mxu0 0.0
        %768 = vmatpush1.msra.mxu0 0.0
        %769 = vmatprep.subr.mxu0 0.0
        %770 = vmatpush1.msra.mxu0 0.0
        %771 = vmatprep.subr.mxu0 0.0
        %772 = vmatpush1.msra.mxu0 0.0
        %773 = vmatprep.subr.mxu0 0.0
        %774 = vmatpush1.msra.mxu0 0.0
        %775 = vmatprep.subr.mxu0 0.0
        %776 = vmatpush1.msra.mxu0 0.0
        %777 = vmatprep.subr.mxu0 0.0
        %778 = vmatpush1.msra.mxu0 0.0
        %779 = vmatprep.subr.mxu0 0.0
        %780 = vmatpush1.msra.mxu0 0.0
        %781 = vmatprep.mubr.f32.mxu0 0.0
        %782 = vmatmul.mubr.f32.gmra.mrb[0].mxu0 %v706
        %v783 = vpop.f32.mrb[0].mxu0
        %v784 = vadd.f32 0.0, %v783
        %v785 = vpop.f32.mrb[0].mxu0
        %v786 = vadd.f32 0.0, %v785
        %787 = vmatprep.mubr.f32.mxu0 0.0
        %788 = vmatmul.mubr.f32.gmra.mrb[0].mxu0 %v709
        %v789 = vpop.f32.mrb[0].mxu0
        %v790 = vadd.f32 0.0, %v789
        %v791 = vpop.f32.mrb[0].mxu0
        %v792 = vadd.f32 0.0, %v791
        %793 = vmatprep.mubr.f32.mxu0 0.0
        %794 = vmatmul.mubr.f32.gmra.mrb[0].mxu0 %v712
        %v795 = vpop.f32.mrb[0].mxu0
        %v796 = vadd.f32 0.0, %v795
        %v797 = vpop.f32.mrb[0].mxu0
        %v798 = vadd.f32 0.0, %v797
        %799 = vmatprep.mubr.f32.mxu0 0.0
        %800 = vmatmul.mubr.f32.gmra.mrb[0].mxu0 %v715
        %v801 = vpop.f32.mrb[0].mxu0
        %v802 = vadd.f32 0.0, %v801
        %v803 = vpop.f32.mrb[0].mxu0
        %v804 = vadd.f32 0.0, %v803
        %805 = vdwg.mxu0
        %v806 = vadd.f32 %v653, %v784
        %v807 = vadd.f32 %v655, %v786
        %v808 = vadd.f32 %v659, %v790
        %v809 = vadd.f32 %v661, %v792
        %v810 = vadd.f32 %v665, %v796
        %v811 = vadd.f32 %v667, %v798
        %v812 = vadd.f32 %v671, %v802
        %v813 = vadd.f32 %v673, %v804
        %s814 = scalar_lea.vmem %s413, 96
        %v815 = vld [vmem:[%s814] sm:$0xff]
        %v816 = vld [vmem:[%s814 + $0x8] sm:$0xff]
        %v817 = vld [vmem:[%s814 + $0x10] sm:$0xff]
        %v818 = vld [vmem:[%s814 + $0x18] sm:$0xff]
        %s819 = scalar_lea.vmem [#allocation5], 576
        %v820 = vld [vmem:[%s819] sm:$0xff]
        %v821 = vld [vmem:[%s819 + $0x8] sm:$0xff]
        %v822 = vld [vmem:[%s819 + $0x10] sm:$0xff]
        %v823 = vld [vmem:[%s819 + $0x18] sm:$0xff]
        %v824 = vld [vmem:[%s819 + $0x20] sm:$0xff]
        %v825 = vld [vmem:[%s819 + $0x28] sm:$0xff]
        %v826 = vld [vmem:[%s819 + $0x30] sm:$0xff]
        %v827 = vld [vmem:[%s819 + $0x38] sm:$0xff]
        %v828 = vld [vmem:[%s819 + $0x40] sm:$0xff]
        %v829 = vld [vmem:[%s819 + $0x48] sm:$0xff]
        %v830 = vld [vmem:[%s819 + $0x50] sm:$0xff]
        %v831 = vld [vmem:[%s819 + $0x58] sm:$0xff]
        %v832 = vld [vmem:[%s819 + $0x60] sm:$0xff]
        %v833 = vld [vmem:[%s819 + $0x68] sm:$0xff]
        %v834 = vld [vmem:[%s819 + $0x70] sm:$0xff]
        %v835 = vld [vmem:[%s819 + $0x78] sm:$0xff]
        %v836 = vld [vmem:[%s819 + $0x80] sm:$0xff]
        %v837 = vld [vmem:[%s819 + $0x88] sm:$0xff]
        %v838 = vld [vmem:[%s819 + $0x90] sm:$0xff]
        %v839 = vld [vmem:[%s819 + $0x98] sm:$0xff]
        %v840 = vld [vmem:[%s819 + $0xa0] sm:$0xff]
        %v841 = vld [vmem:[%s819 + $0xa8] sm:$0xff]
        %v842 = vld [vmem:[%s819 + $0xb0] sm:$0xff]
        %v843 = vld [vmem:[%s819 + $0xb8] sm:$0xff]
        %v845 = vsel %vm472, %v815, 0
        %v848 = vsel %vm472, %v816, 0
        %v851 = vsel %vm472, %v817, 0
        %v854 = vsel %vm472, %v818, 0
        %856 = vmatprep.subr.mxu0 %v821
        %857 = vmatpush1.msra.mxu0 %v820
        %858 = vmatprep.subr.mxu0 %v823
        %859 = vmatpush1.msra.mxu0 %v822
        %860 = vmatprep.subr.mxu0 %v825
        %861 = vmatpush1.msra.mxu0 %v824
        %862 = vmatprep.subr.mxu0 %v827
        %863 = vmatpush1.msra.mxu0 %v826
        %864 = vmatprep.subr.mxu0 %v829
        %865 = vmatpush1.msra.mxu0 %v828
        %866 = vmatprep.subr.mxu0 %v831
        %867 = vmatpush1.msra.mxu0 %v830
        %868 = vmatprep.subr.mxu0 %v833
        %869 = vmatpush1.msra.mxu0 %v832
        %870 = vmatprep.subr.mxu0 %v835
        %871 = vmatpush1.msra.mxu0 %v834
        %872 = vmatprep.subr.mxu0 %v837
        %873 = vmatpush1.msra.mxu0 %v836
        %874 = vmatprep.subr.mxu0 %v839
        %875 = vmatpush1.msra.mxu0 %v838
        %876 = vmatprep.subr.mxu0 %v841
        %877 = vmatpush1.msra.mxu0 %v840
        %878 = vmatprep.subr.mxu0 %v843
        %879 = vmatpush1.msra.mxu0 %v842
        %880 = vmatprep.subr.mxu0 0.0
        %881 = vmatpush1.msra.mxu0 0.0
        %882 = vmatprep.subr.mxu0 0.0
        %883 = vmatpush1.msra.mxu0 0.0
        %884 = vmatprep.subr.mxu0 0.0
        %885 = vmatpush1.msra.mxu0 0.0
        %886 = vmatprep.subr.mxu0 0.0
        %887 = vmatpush1.msra.mxu0 0.0
        %888 = vmatprep.subr.mxu0 0.0
        %889 = vmatpush1.msra.mxu0 0.0
        %890 = vmatprep.subr.mxu0 0.0
        %891 = vmatpush1.msra.mxu0 0.0
        %892 = vmatprep.subr.mxu0 0.0
        %893 = vmatpush1.msra.mxu0 0.0
        %894 = vmatprep.subr.mxu0 0.0
        %895 = vmatpush1.msra.mxu0 0.0
        %896 = vmatprep.subr.mxu0 0.0
        %897 = vmatpush1.msra.mxu0 0.0
        %898 = vmatprep.subr.mxu0 0.0
        %899 = vmatpush1.msra.mxu0 0.0
        %900 = vmatprep.subr.mxu0 0.0
        %901 = vmatpush1.msra.mxu0 0.0
        %902 = vmatprep.subr.mxu0 0.0
        %903 = vmatpush1.msra.mxu0 0.0
        %904 = vmatprep.subr.mxu0 0.0
        %905 = vmatpush1.msra.mxu0 0.0
        %906 = vmatprep.subr.mxu0 0.0
        %907 = vmatpush1.msra.mxu0 0.0
        %908 = vmatprep.subr.mxu0 0.0
        %909 = vmatpush1.msra.mxu0 0.0
        %910 = vmatprep.subr.mxu0 0.0
        %911 = vmatpush1.msra.mxu0 0.0
        %912 = vmatprep.subr.mxu0 0.0
        %913 = vmatpush1.msra.mxu0 0.0
        %914 = vmatprep.subr.mxu0 0.0
        %915 = vmatpush1.msra.mxu0 0.0
        %916 = vmatprep.subr.mxu0 0.0
        %917 = vmatpush1.msra.mxu0 0.0
        %918 = vmatprep.subr.mxu0 0.0
        %919 = vmatpush1.msra.mxu0 0.0
        %920 = vmatprep.mubr.f32.mxu0 0.0
        %921 = vmatmul.mubr.f32.gmra.mrb[0].mxu0 %v845
        %v922 = vpop.f32.mrb[0].mxu0
        %v923 = vadd.f32 0.0, %v922
        %v924 = vpop.f32.mrb[0].mxu0
        %v925 = vadd.f32 0.0, %v924
        %926 = vmatprep.mubr.f32.mxu0 0.0
        %927 = vmatmul.mubr.f32.gmra.mrb[0].mxu0 %v848
        %v928 = vpop.f32.mrb[0].mxu0
        %v929 = vadd.f32 0.0, %v928
        %v930 = vpop.f32.mrb[0].mxu0
        %v931 = vadd.f32 0.0, %v930
        %932 = vmatprep.mubr.f32.mxu0 0.0
        %933 = vmatmul.mubr.f32.gmra.mrb[0].mxu0 %v851
        %v934 = vpop.f32.mrb[0].mxu0
        %v935 = vadd.f32 0.0, %v934
        %v936 = vpop.f32.mrb[0].mxu0
        %v937 = vadd.f32 0.0, %v936
        %938 = vmatprep.mubr.f32.mxu0 0.0
        %939 = vmatmul.mubr.f32.gmra.mrb[0].mxu0 %v854
        %v940 = vpop.f32.mrb[0].mxu0
        %v941 = vadd.f32 0.0, %v940
        %v942 = vpop.f32.mrb[0].mxu0
        %v943 = vadd.f32 0.0, %v942
        %944 = vdwg.mxu0
        %v945 = vadd.f32 %v806, %v923
        %v946 = vadd.f32 %v807, %v925
        %v947 = vadd.f32 %v808, %v929
        %v948 = vadd.f32 %v809, %v931
        %v949 = vadd.f32 %v810, %v935
        %v950 = vadd.f32 %v811, %v937
        %v951 = vadd.f32 %v812, %v941
        %v952 = vadd.f32 %v813, %v943
        %s953 = scalar_lea.vmem %s413, 128
        %v954 = vld [vmem:[%s953] sm:$0xff]
        %v955 = vld [vmem:[%s953 + $0x8] sm:$0xff]
        %v956 = vld [vmem:[%s953 + $0x10] sm:$0xff]
        %v957 = vld [vmem:[%s953 + $0x18] sm:$0xff]
        %s958 = scalar_lea.vmem [#allocation5], 768
        %v959 = vld [vmem:[%s958] sm:$0xff]
        %v960 = vld [vmem:[%s958 + $0x8] sm:$0xff]
        %v961 = vld [vmem:[%s958 + $0x10] sm:$0xff]
        %v962 = vld [vmem:[%s958 + $0x18] sm:$0xff]
        %v963 = vld [vmem:[%s958 + $0x20] sm:$0xff]
        %v964 = vld [vmem:[%s958 + $0x28] sm:$0xff]
        %v965 = vld [vmem:[%s958 + $0x30] sm:$0xff]
        %v966 = vld [vmem:[%s958 + $0x38] sm:$0xff]
        %v967 = vld [vmem:[%s958 + $0x40] sm:$0xff]
        %v968 = vld [vmem:[%s958 + $0x48] sm:$0xff]
        %v969 = vld [vmem:[%s958 + $0x50] sm:$0xff]
        %v970 = vld [vmem:[%s958 + $0x58] sm:$0xff]
        %v971 = vld [vmem:[%s958 + $0x60] sm:$0xff]
        %v972 = vld [vmem:[%s958 + $0x68] sm:$0xff]
        %v973 = vld [vmem:[%s958 + $0x70] sm:$0xff]
        %v974 = vld [vmem:[%s958 + $0x78] sm:$0xff]
        %v975 = vld [vmem:[%s958 + $0x80] sm:$0xff]
        %v976 = vld [vmem:[%s958 + $0x88] sm:$0xff]
        %v977 = vld [vmem:[%s958 + $0x90] sm:$0xff]
        %v978 = vld [vmem:[%s958 + $0x98] sm:$0xff]
        %v979 = vld [vmem:[%s958 + $0xa0] sm:$0xff]
        %v980 = vld [vmem:[%s958 + $0xa8] sm:$0xff]
        %v981 = vld [vmem:[%s958 + $0xb0] sm:$0xff]
        %v982 = vld [vmem:[%s958 + $0xb8] sm:$0xff]
        %v984 = vsel %vm472, %v954, 0
        %v987 = vsel %vm472, %v955, 0
        %v990 = vsel %vm472, %v956, 0
        %v993 = vsel %vm472, %v957, 0
        %995 = vmatprep.subr.mxu0 %v960
        %996 = vmatpush1.msra.mxu0 %v959
        %997 = vmatprep.subr.mxu0 %v962
        %998 = vmatpush1.msra.mxu0 %v961
        %999 = vmatprep.subr.mxu0 %v964
        %1000 = vmatpush1.msra.mxu0 %v963
        %1001 = vmatprep.subr.mxu0 %v966
        %1002 = vmatpush1.msra.mxu0 %v965
        %1003 = vmatprep.subr.mxu0 %v968
        %1004 = vmatpush1.msra.mxu0 %v967
        %1005 = vmatprep.subr.mxu0 %v970
        %1006 = vmatpush1.msra.mxu0 %v969
        %1007 = vmatprep.subr.mxu0 %v972
        %1008 = vmatpush1.msra.mxu0 %v971
        %1009 = vmatprep.subr.mxu0 %v974
        %1010 = vmatpush1.msra.mxu0 %v973
        %1011 = vmatprep.subr.mxu0 %v976
        %1012 = vmatpush1.msra.mxu0 %v975
        %1013 = vmatprep.subr.mxu0 %v978
        %1014 = vmatpush1.msra.mxu0 %v977
        %1015 = vmatprep.subr.mxu0 %v980
        %1016 = vmatpush1.msra.mxu0 %v979
        %1017 = vmatprep.subr.mxu0 %v982
        %1018 = vmatpush1.msra.mxu0 %v981
        %1019 = vmatprep.subr.mxu0 0.0
        %1020 = vmatpush1.msra.mxu0 0.0
        %1021 = vmatprep.subr.mxu0 0.0
        %1022 = vmatpush1.msra.mxu0 0.0
        %1023 = vmatprep.subr.mxu0 0.0
        %1024 = vmatpush1.msra.mxu0 0.0
        %1025 = vmatprep.subr.mxu0 0.0
        %1026 = vmatpush1.msra.mxu0 0.0
        %1027 = vmatprep.subr.mxu0 0.0
        %1028 = vmatpush1.msra.mxu0 0.0
        %1029 = vmatprep.subr.mxu0 0.0
        %1030 = vmatpush1.msra.mxu0 0.0
        %1031 = vmatprep.subr.mxu0 0.0
        %1032 = vmatpush1.msra.mxu0 0.0
        %1033 = vmatprep.subr.mxu0 0.0
        %1034 = vmatpush1.msra.mxu0 0.0
        %1035 = vmatprep.subr.mxu0 0.0
        %1036 = vmatpush1.msra.mxu0 0.0
        %1037 = vmatprep.subr.mxu0 0.0
        %1038 = vmatpush1.msra.mxu0 0.0
        %1039 = vmatprep.subr.mxu0 0.0
        %1040 = vmatpush1.msra.mxu0 0.0
        %1041 = vmatprep.subr.mxu0 0.0
        %1042 = vmatpush1.msra.mxu0 0.0
        %1043 = vmatprep.subr.mxu0 0.0
        %1044 = vmatpush1.msra.mxu0 0.0
        %1045 = vmatprep.subr.mxu0 0.0
        %1046 = vmatpush1.msra.mxu0 0.0
        %1047 = vmatprep.subr.mxu0 0.0
        %1048 = vmatpush1.msra.mxu0 0.0
        %1049 = vmatprep.subr.mxu0 0.0
        %1050 = vmatpush1.msra.mxu0 0.0
        %1051 = vmatprep.subr.mxu0 0.0
        %1052 = vmatpush1.msra.mxu0 0.0
        %1053 = vmatprep.subr.mxu0 0.0
        %1054 = vmatpush1.msra.mxu0 0.0
        %1055 = vmatprep.subr.mxu0 0.0
        %1056 = vmatpush1.msra.mxu0 0.0
        %1057 = vmatprep.subr.mxu0 0.0
        %1058 = vmatpush1.msra.mxu0 0.0
        %1059 = vmatprep.mubr.f32.mxu0 0.0
        %1060 = vmatmul.mubr.f32.gmra.mrb[0].mxu0 %v984
        %v1061 = vpop.f32.mrb[0].mxu0
        %v1062 = vadd.f32 0.0, %v1061
        %v1063 = vpop.f32.mrb[0].mxu0
        %v1064 = vadd.f32 0.0, %v1063
        %1065 = vmatprep.mubr.f32.mxu0 0.0
        %1066 = vmatmul.mubr.f32.gmra.mrb[0].mxu0 %v987
        %v1067 = vpop.f32.mrb[0].mxu0
        %v1068 = vadd.f32 0.0, %v1067
        %v1069 = vpop.f32.mrb[0].mxu0
        %v1070 = vadd.f32 0.0, %v1069
        %1071 = vmatprep.mubr.f32.mxu0 0.0
        %1072 = vmatmul.mubr.f32.gmra.mrb[0].mxu0 %v990
        %v1073 = vpop.f32.mrb[0].mxu0
        %v1074 = vadd.f32 0.0, %v1073
        %v1075 = vpop.f32.mrb[0].mxu0
        %v1076 = vadd.f32 0.0, %v1075
        %1077 = vmatprep.mubr.f32.mxu0 0.0
        %1078 = vmatmul.mubr.f32.gmra.mrb[0].mxu0 %v993
        %v1079 = vpop.f32.mrb[0].mxu0
        %v1080 = vadd.f32 0.0, %v1079
        %v1081 = vpop.f32.mrb[0].mxu0
        %v1082 = vadd.f32 0.0, %v1081
        %1083 = vdwg.mxu0
        %v1084 = vadd.f32 %v945, %v1062
        %v1085 = vadd.f32 %v946, %v1064
        %v1086 = vadd.f32 %v947, %v1068
        %v1087 = vadd.f32 %v948, %v1070
        %v1088 = vadd.f32 %v949, %v1074
        %v1089 = vadd.f32 %v950, %v1076
        %v1090 = vadd.f32 %v951, %v1080
        %v1091 = vadd.f32 %v952, %v1082
        %v1092 = vmax.f32 %v1084, %v1086
        %v1093 = vmax.f32 %v1085, %v1087
        %v1094 = vmax.f32 %v1088, %v1090
        %v1095 = vmax.f32 %v1089, %v1091
        %v1096 = vld [vmem:[%s2] sm:$0x1]
        %v1097 = vmax.f32 %v1092, %v1093
        %v1099 = vlaneseq
        %v1100 = vshrl.u32 %v1099, 7
        %v1101 = vsub.s32 0, %v1100
        %v1102 = vrot.slane %v1096, %v1101
        %v1104 = vadd.f32 %v1097, %v1102
        %v1105 = vmax.f32 %v1104, 0.0
        %1106 = vst [vmem:[#allocation2] sm:$0xff] %v1105
        %v1107 = vmax.f32 %v1094, %v1095
        %v1108 = vadd.f32 %v1107, %v1102
        %v1109 = vmax.f32 %v1108, 0.0
        %1110 = vst [vmem:[#allocation3] sm:$0xff] %v1109
        %v1111 = vld [vmem:[#allocation2] sm:$0x1f]
        %v1112 = vld [vmem:[%s3] sm:$0xff]
        %v1113 = vld [vmem:[%s3 + $0x8] sm:$0xff]
        %v1114 = vld [vmem:[%s3 + $0x10] sm:$0xff]
        %v1115 = vld [vmem:[%s3 + $0x18] sm:$0xff]
        %v1116 = vld [vmem:[%s3 + $0x20] sm:$0xff]
        %v1117 = vld [vmem:[%s3 + $0x28] sm:$0xff]
        %v1118 = vld [vmem:[%s3 + $0x30] sm:$0xff]
        %v1119 = vld [vmem:[%s3 + $0x38] sm:$0xff]
        %v1120 = vld [vmem:[%s3 + $0x40] sm:$0xff]
        %v1121 = vld [vmem:[%s3 + $0x48] sm:$0xff]
        %v1122 = vld [vmem:[%s3 + $0x50] sm:$0xff]
        %v1123 = vld [vmem:[%s3 + $0x58] sm:$0xff]
        %v1124 = vld [vmem:[%s3 + $0x60] sm:$0xff]
        %v1125 = vld [vmem:[%s3 + $0x68] sm:$0xff]
        %v1126 = vld [vmem:[%s3 + $0x70] sm:$0xff]
        %v1127 = vld [vmem:[%s3 + $0x78] sm:$0xff]
        %v1128 = vld [vmem:[%s3 + $0x80] sm:$0xff]
        %v1129 = vld [vmem:[%s3 + $0x88] sm:$0xff]
        %v1130 = vld [vmem:[%s3 + $0x90] sm:$0xff]
        %v1131 = vld [vmem:[%s3 + $0x98] sm:$0xff]
        %v1132 = vld [vmem:[%s3 + $0xa0] sm:$0xff]
        %v1133 = vld [vmem:[%s3 + $0xa8] sm:$0xff]
        %v1134 = vld [vmem:[%s3 + $0xb0] sm:$0xff]
        %v1135 = vld [vmem:[%s3 + $0xb8] sm:$0xff]
        %v1136 = vld [vmem:[%s3 + $0xc0] sm:$0xff]
        %v1137 = vld [vmem:[%s3 + $0xc8] sm:$0xff]
        %v1138 = vld [vmem:[%s3 + $0xd0] sm:$0xff]
        %v1139 = vld [vmem:[%s3 + $0xd8] sm:$0xff]
        %v1140 = vld [vmem:[%s3 + $0xe0] sm:$0xff]
        %v1141 = vld [vmem:[%s3 + $0xe8] sm:$0xff]
        %v1142 = vld [vmem:[%s3 + $0xf0] sm:$0xff]
        %v1143 = vld [vmem:[%s3 + $0xf8] sm:$0xff]
        %v1144 = vld [vmem:[#allocation3] sm:$0x1f]
        %s1145 = scalar_lea.vmem %s3, 256
        %v1146 = vld [vmem:[%s1145] sm:$0xff]
        %v1147 = vld [vmem:[%s1145 + $0x8] sm:$0xff]
        %v1148 = vld [vmem:[%s1145 + $0x10] sm:$0xff]
        %v1149 = vld [vmem:[%s1145 + $0x18] sm:$0xff]
        %v1150 = vld [vmem:[%s1145 + $0x20] sm:$0xff]
        %v1151 = vld [vmem:[%s1145 + $0x28] sm:$0xff]
        %v1152 = vld [vmem:[%s1145 + $0x30] sm:$0xff]
        %v1153 = vld [vmem:[%s1145 + $0x38] sm:$0xff]
        %v1154 = vld [vmem:[%s1145 + $0x40] sm:$0xff]
        %v1155 = vld [vmem:[%s1145 + $0x48] sm:$0xff]
        %v1156 = vld [vmem:[%s1145 + $0x50] sm:$0xff]
        %v1157 = vld [vmem:[%s1145 + $0x58] sm:$0xff]
        %v1158 = vld [vmem:[%s1145 + $0x60] sm:$0xff]
        %v1159 = vld [vmem:[%s1145 + $0x68] sm:$0xff]
        %v1160 = vld [vmem:[%s1145 + $0x70] sm:$0xff]
        %v1161 = vld [vmem:[%s1145 + $0x78] sm:$0xff]
        %v1162 = vld [vmem:[%s1145 + $0x80] sm:$0xff]
        %v1163 = vld [vmem:[%s1145 + $0x88] sm:$0xff]
        %v1164 = vld [vmem:[%s1145 + $0x90] sm:$0xff]
        %v1165 = vld [vmem:[%s1145 + $0x98] sm:$0xff]
        %v1166 = vld [vmem:[%s1145 + $0xa0] sm:$0xff]
        %v1167 = vld [vmem:[%s1145 + $0xa8] sm:$0xff]
        %v1168 = vld [vmem:[%s1145 + $0xb0] sm:$0xff]
        %v1169 = vld [vmem:[%s1145 + $0xb8] sm:$0xff]
        %v1170 = vld [vmem:[%s1145 + $0xc0] sm:$0xff]
        %v1171 = vld [vmem:[%s1145 + $0xc8] sm:$0xff]
        %v1172 = vld [vmem:[%s1145 + $0xd0] sm:$0xff]
        %v1173 = vld [vmem:[%s1145 + $0xd8] sm:$0xff]
        %v1174 = vld [vmem:[%s1145 + $0xe0] sm:$0xff]
        %v1175 = vld [vmem:[%s1145 + $0xe8] sm:$0xff]
        %v1176 = vld [vmem:[%s1145 + $0xf0] sm:$0xff]
        %v1177 = vld [vmem:[%s1145 + $0xf8] sm:$0xff]
        %1178 = vmatprep.subr.mxu0 %v1147
        %1179 = vmatpush1.msra.mxu0 %v1146
        %1180 = vmatprep.subr.mxu0 %v1149
        %1181 = vmatpush1.msra.mxu0 %v1148
        %1182 = vmatprep.subr.mxu0 %v1151
        %1183 = vmatpush1.msra.mxu0 %v1150
        %1184 = vmatprep.subr.mxu0 %v1153
        %1185 = vmatpush1.msra.mxu0 %v1152
        %1186 = vmatprep.subr.mxu0 %v1155
        %1187 = vmatpush1.msra.mxu0 %v1154
        %1188 = vmatprep.subr.mxu0 %v1157
        %1189 = vmatpush1.msra.mxu0 %v1156
        %1190 = vmatprep.subr.mxu0 %v1159
        %1191 = vmatpush1.msra.mxu0 %v1158
        %1192 = vmatprep.subr.mxu0 %v1161
        %1193 = vmatpush1.msra.mxu0 %v1160
        %1194 = vmatprep.subr.mxu0 %v1163
        %1195 = vmatpush1.msra.mxu0 %v1162
        %1196 = vmatprep.subr.mxu0 %v1165
        %1197 = vmatpush1.msra.mxu0 %v1164
        %1198 = vmatprep.subr.mxu0 %v1167
        %1199 = vmatpush1.msra.mxu0 %v1166
        %1200 = vmatprep.subr.mxu0 %v1169
        %1201 = vmatpush1.msra.mxu0 %v1168
        %1202 = vmatprep.subr.mxu0 %v1171
        %1203 = vmatpush1.msra.mxu0 %v1170
        %1204 = vmatprep.subr.mxu0 %v1173
        %1205 = vmatpush1.msra.mxu0 %v1172
        %1206 = vmatprep.subr.mxu0 %v1175
        %1207 = vmatpush1.msra.mxu0 %v1174
        %1208 = vmatprep.subr.mxu0 %v1177
        %1209 = vmatpush1.msra.mxu0 %v1176
        %1210 = vmatprep.subr.mxu0 0.0
        %1211 = vmatpush1.msra.mxu0 0.0
        %1212 = vmatprep.subr.mxu0 0.0
        %1213 = vmatpush1.msra.mxu0 0.0
        %1214 = vmatprep.subr.mxu0 0.0
        %1215 = vmatpush1.msra.mxu0 0.0
        %1216 = vmatprep.subr.mxu0 0.0
        %1217 = vmatpush1.msra.mxu0 0.0
        %1218 = vmatprep.subr.mxu0 0.0
        %1219 = vmatpush1.msra.mxu0 0.0
        %1220 = vmatprep.subr.mxu0 0.0
        %1221 = vmatpush1.msra.mxu0 0.0
        %1222 = vmatprep.subr.mxu0 0.0
        %1223 = vmatpush1.msra.mxu0 0.0
        %1224 = vmatprep.subr.mxu0 0.0
        %1225 = vmatpush1.msra.mxu0 0.0
        %1226 = vmatprep.subr.mxu0 0.0
        %1227 = vmatpush1.msra.mxu0 0.0
        %1228 = vmatprep.subr.mxu0 0.0
        %1229 = vmatpush1.msra.mxu0 0.0
        %1230 = vmatprep.subr.mxu0 0.0
        %1231 = vmatpush1.msra.mxu0 0.0
        %1232 = vmatprep.subr.mxu0 0.0
        %1233 = vmatpush1.msra.mxu0 0.0
        %1234 = vmatprep.subr.mxu0 0.0
        %1235 = vmatpush1.msra.mxu0 0.0
        %1236 = vmatprep.subr.mxu0 0.0
        %1237 = vmatpush1.msra.mxu0 0.0
        %1238 = vmatprep.subr.mxu0 0.0
        %1239 = vmatpush1.msra.mxu0 0.0
        %1240 = vmatprep.subr.mxu0 0.0
        %1241 = vmatpush1.msra.mxu0 0.0
        %1242 = vmatprep.mubr.f32.mxu0 0.0
        %1243 = vmatmul.mubr.f32.gmra.mrb[0].mxu0 %v1144
        %v1244 = vpop.f32.mrb[0].mxu0
        %v1245 = vadd.f32 0.0, %v1244
        %v1246 = vpop.f32.mrb[0].mxu0
        %v1247 = vadd.f32 0.0, %v1246
        %1248 = vdwg.mxu0
        %1249 = vmatprep.subr.mxu0 %v1113
        %1250 = vmatpush1.msra.mxu0 %v1112
        %1251 = vmatprep.subr.mxu0 %v1115
        %1252 = vmatpush1.msra.mxu0 %v1114
        %1253 = vmatprep.subr.mxu0 %v1117
        %1254 = vmatpush1.msra.mxu0 %v1116
        %1255 = vmatprep.subr.mxu0 %v1119
        %1256 = vmatpush1.msra.mxu0 %v1118
        %1257 = vmatprep.subr.mxu0 %v1121
        %1258 = vmatpush1.msra.mxu0 %v1120
        %1259 = vmatprep.subr.mxu0 %v1123
        %1260 = vmatpush1.msra.mxu0 %v1122
        %1261 = vmatprep.subr.mxu0 %v1125
        %1262 = vmatpush1.msra.mxu0 %v1124
        %1263 = vmatprep.subr.mxu0 %v1127
        %1264 = vmatpush1.msra.mxu0 %v1126
        %1265 = vmatprep.subr.mxu0 %v1129
        %1266 = vmatpush1.msra.mxu0 %v1128
        %1267 = vmatprep.subr.mxu0 %v1131
        %1268 = vmatpush1.msra.mxu0 %v1130
        %1269 = vmatprep.subr.mxu0 %v1133
        %1270 = vmatpush1.msra.mxu0 %v1132
        %1271 = vmatprep.subr.mxu0 %v1135
        %1272 = vmatpush1.msra.mxu0 %v1134
        %1273 = vmatprep.subr.mxu0 %v1137
        %1274 = vmatpush1.msra.mxu0 %v1136
        %1275 = vmatprep.subr.mxu0 %v1139
        %1276 = vmatpush1.msra.mxu0 %v1138
        %1277 = vmatprep.subr.mxu0 %v1141
        %1278 = vmatpush1.msra.mxu0 %v1140
        %1279 = vmatprep.subr.mxu0 %v1143
        %1280 = vmatpush1.msra.mxu0 %v1142
        %1281 = vmatprep.subr.mxu0 0.0
        %1282 = vmatpush1.msra.mxu0 0.0
        %1283 = vmatprep.subr.mxu0 0.0
        %1284 = vmatpush1.msra.mxu0 0.0
        %1285 = vmatprep.subr.mxu0 0.0
        %1286 = vmatpush1.msra.mxu0 0.0
        %1287 = vmatprep.subr.mxu0 0.0
        %1288 = vmatpush1.msra.mxu0 0.0
        %1289 = vmatprep.subr.mxu0 0.0
        %1290 = vmatpush1.msra.mxu0 0.0
        %1291 = vmatprep.subr.mxu0 0.0
        %1292 = vmatpush1.msra.mxu0 0.0
        %1293 = vmatprep.subr.mxu0 0.0
        %1294 = vmatpush1.msra.mxu0 0.0
        %1295 = vmatprep.subr.mxu0 0.0
        %1296 = vmatpush1.msra.mxu0 0.0
        %1297 = vmatprep.subr.mxu0 0.0
        %1298 = vmatpush1.msra.mxu0 0.0
        %1299 = vmatprep.subr.mxu0 0.0
        %1300 = vmatpush1.msra.mxu0 0.0
        %1301 = vmatprep.subr.mxu0 0.0
        %1302 = vmatpush1.msra.mxu0 0.0
        %1303 = vmatprep.subr.mxu0 0.0
        %1304 = vmatpush1.msra.mxu0 0.0
        %1305 = vmatprep.subr.mxu0 0.0
        %1306 = vmatpush1.msra.mxu0 0.0
        %1307 = vmatprep.subr.mxu0 0.0
        %1308 = vmatpush1.msra.mxu0 0.0
        %1309 = vmatprep.subr.mxu0 0.0
        %1310 = vmatpush1.msra.mxu0 0.0
        %1311 = vmatprep.subr.mxu0 0.0
        %1312 = vmatpush1.msra.mxu0 0.0
        %1313 = vmatprep.mubr.f32.mxu0 0.0
        %1314 = vmatmul.mubr.f32.gmra.mrb[0].mxu0 %v1111
        %v1315 = vpop.f32.mrb[0].mxu0
        %v1316 = vadd.f32 %v1245, %v1315
        %v1317 = vpop.f32.mrb[0].mxu0
        %v1318 = vadd.f32 %v1247, %v1317
        %1319 = vdwg.mxu0
        %v1320 = vld [vmem:[#allocation2 + $0x1] sm:$0x1f]
        %s1321 = scalar_lea.vmem %s3, 512
        %v1322 = vld [vmem:[%s1321] sm:$0xff]
        %v1323 = vld [vmem:[%s1321 + $0x8] sm:$0xff]
        %v1324 = vld [vmem:[%s1321 + $0x10] sm:$0xff]
        %v1325 = vld [vmem:[%s1321 + $0x18] sm:$0xff]
        %v1326 = vld [vmem:[%s1321 + $0x20] sm:$0xff]
        %v1327 = vld [vmem:[%s1321 + $0x28] sm:$0xff]
        %v1328 = vld [vmem:[%s1321 + $0x30] sm:$0xff]
        %v1329 = vld [vmem:[%s1321 + $0x38] sm:$0xff]
        %v1330 = vld [vmem:[%s1321 + $0x40] sm:$0xff]
        %v1331 = vld [vmem:[%s1321 + $0x48] sm:$0xff]
        %v1332 = vld [vmem:[%s1321 + $0x50] sm:$0xff]
        %v1333 = vld [vmem:[%s1321 + $0x58] sm:$0xff]
        %v1334 = vld [vmem:[%s1321 + $0x60] sm:$0xff]
        %v1335 = vld [vmem:[%s1321 + $0x68] sm:$0xff]
        %v1336 = vld [vmem:[%s1321 + $0x70] sm:$0xff]
        %v1337 = vld [vmem:[%s1321 + $0x78] sm:$0xff]
        %v1338 = vld [vmem:[%s1321 + $0x80] sm:$0xff]
        %v1339 = vld [vmem:[%s1321 + $0x88] sm:$0xff]
        %v1340 = vld [vmem:[%s1321 + $0x90] sm:$0xff]
        %v1341 = vld [vmem:[%s1321 + $0x98] sm:$0xff]
        %v1342 = vld [vmem:[%s1321 + $0xa0] sm:$0xff]
        %v1343 = vld [vmem:[%s1321 + $0xa8] sm:$0xff]
        %v1344 = vld [vmem:[%s1321 + $0xb0] sm:$0xff]
        %v1345 = vld [vmem:[%s1321 + $0xb8] sm:$0xff]
        %v1346 = vld [vmem:[%s1321 + $0xc0] sm:$0xff]
        %v1347 = vld [vmem:[%s1321 + $0xc8] sm:$0xff]
        %v1348 = vld [vmem:[%s1321 + $0xd0] sm:$0xff]
        %v1349 = vld [vmem:[%s1321 + $0xd8] sm:$0xff]
        %v1350 = vld [vmem:[%s1321 + $0xe0] sm:$0xff]
        %v1351 = vld [vmem:[%s1321 + $0xe8] sm:$0xff]
        %v1352 = vld [vmem:[%s1321 + $0xf0] sm:$0xff]
        %v1353 = vld [vmem:[%s1321 + $0xf8] sm:$0xff]
        %1354 = vmatprep.subr.mxu0 %v1323
        %1355 = vmatpush1.msra.mxu0 %v1322
        %1356 = vmatprep.subr.mxu0 %v1325
        %1357 = vmatpush1.msra.mxu0 %v1324
        %1358 = vmatprep.subr.mxu0 %v1327
        %1359 = vmatpush1.msra.mxu0 %v1326
        %1360 = vmatprep.subr.mxu0 %v1329
        %1361 = vmatpush1.msra.mxu0 %v1328
        %1362 = vmatprep.subr.mxu0 %v1331
        %1363 = vmatpush1.msra.mxu0 %v1330
        %1364 = vmatprep.subr.mxu0 %v1333
        %1365 = vmatpush1.msra.mxu0 %v1332
        %1366 = vmatprep.subr.mxu0 %v1335
        %1367 = vmatpush1.msra.mxu0 %v1334
        %1368 = vmatprep.subr.mxu0 %v1337
        %1369 = vmatpush1.msra.mxu0 %v1336
        %1370 = vmatprep.subr.mxu0 %v1339
        %1371 = vmatpush1.msra.mxu0 %v1338
        %1372 = vmatprep.subr.mxu0 %v1341
        %1373 = vmatpush1.msra.mxu0 %v1340
        %1374 = vmatprep.subr.mxu0 %v1343
        %1375 = vmatpush1.msra.mxu0 %v1342
        %1376 = vmatprep.subr.mxu0 %v1345
        %1377 = vmatpush1.msra.mxu0 %v1344
        %1378 = vmatprep.subr.mxu0 %v1347
        %1379 = vmatpush1.msra.mxu0 %v1346
        %1380 = vmatprep.subr.mxu0 %v1349
        %1381 = vmatpush1.msra.mxu0 %v1348
        %1382 = vmatprep.subr.mxu0 %v1351
        %1383 = vmatpush1.msra.mxu0 %v1350
        %1384 = vmatprep.subr.mxu0 %v1353
        %1385 = vmatpush1.msra.mxu0 %v1352
        %1386 = vmatprep.subr.mxu0 0.0
        %1387 = vmatpush1.msra.mxu0 0.0
        %1388 = vmatprep.subr.mxu0 0.0
        %1389 = vmatpush1.msra.mxu0 0.0
        %1390 = vmatprep.subr.mxu0 0.0
        %1391 = vmatpush1.msra.mxu0 0.0
        %1392 = vmatprep.subr.mxu0 0.0
        %1393 = vmatpush1.msra.mxu0 0.0
        %1394 = vmatprep.subr.mxu0 0.0
        %1395 = vmatpush1.msra.mxu0 0.0
        %1396 = vmatprep.subr.mxu0 0.0
        %1397 = vmatpush1.msra.mxu0 0.0
        %1398 = vmatprep.subr.mxu0 0.0
        %1399 = vmatpush1.msra.mxu0 0.0
        %1400 = vmatprep.subr.mxu0 0.0
        %1401 = vmatpush1.msra.mxu0 0.0
        %1402 = vmatprep.subr.mxu0 0.0
        %1403 = vmatpush1.msra.mxu0 0.0
        %1404 = vmatprep.subr.mxu0 0.0
        %1405 = vmatpush1.msra.mxu0 0.0
        %1406 = vmatprep.subr.mxu0 0.0
        %1407 = vmatpush1.msra.mxu0 0.0
        %1408 = vmatprep.subr.mxu0 0.0
        %1409 = vmatpush1.msra.mxu0 0.0
        %1410 = vmatprep.subr.mxu0 0.0
        %1411 = vmatpush1.msra.mxu0 0.0
        %1412 = vmatprep.subr.mxu0 0.0
        %1413 = vmatpush1.msra.mxu0 0.0
        %1414 = vmatprep.subr.mxu0 0.0
        %1415 = vmatpush1.msra.mxu0 0.0
        %1416 = vmatprep.subr.mxu0 0.0
        %1417 = vmatpush1.msra.mxu0 0.0
        %1418 = vmatprep.mubr.f32.mxu0 0.0
        %1419 = vmatmul.mubr.f32.gmra.mrb[0].mxu0 %v1320
        %v1420 = vpop.f32.mrb[0].mxu0
        %v1421 = vadd.f32 0.0, %v1420
        %v1422 = vpop.f32.mrb[0].mxu0
        %v1423 = vadd.f32 0.0, %v1422
        %1424 = vdwg.mxu0
        %v1425 = vadd.f32 %v1316, %v1421
        %v1426 = vadd.f32 %v1318, %v1423
        %v1427 = vld [vmem:[#allocation3 + $0x1] sm:$0x1f]
        %s1428 = scalar_lea.vmem %s3, 768
        %v1429 = vld [vmem:[%s1428] sm:$0xff]
        %v1430 = vld [vmem:[%s1428 + $0x8] sm:$0xff]
        %v1431 = vld [vmem:[%s1428 + $0x10] sm:$0xff]
        %v1432 = vld [vmem:[%s1428 + $0x18] sm:$0xff]
        %v1433 = vld [vmem:[%s1428 + $0x20] sm:$0xff]
        %v1434 = vld [vmem:[%s1428 + $0x28] sm:$0xff]
        %v1435 = vld [vmem:[%s1428 + $0x30] sm:$0xff]
        %v1436 = vld [vmem:[%s1428 + $0x38] sm:$0xff]
        %v1437 = vld [vmem:[%s1428 + $0x40] sm:$0xff]
        %v1438 = vld [vmem:[%s1428 + $0x48] sm:$0xff]
        %v1439 = vld [vmem:[%s1428 + $0x50] sm:$0xff]
        %v1440 = vld [vmem:[%s1428 + $0x58] sm:$0xff]
        %v1441 = vld [vmem:[%s1428 + $0x60] sm:$0xff]
        %v1442 = vld [vmem:[%s1428 + $0x68] sm:$0xff]
        %v1443 = vld [vmem:[%s1428 + $0x70] sm:$0xff]
        %v1444 = vld [vmem:[%s1428 + $0x78] sm:$0xff]
        %v1445 = vld [vmem:[%s1428 + $0x80] sm:$0xff]
        %v1446 = vld [vmem:[%s1428 + $0x88] sm:$0xff]
        %v1447 = vld [vmem:[%s1428 + $0x90] sm:$0xff]
        %v1448 = vld [vmem:[%s1428 + $0x98] sm:$0xff]
        %v1449 = vld [vmem:[%s1428 + $0xa0] sm:$0xff]
        %v1450 = vld [vmem:[%s1428 + $0xa8] sm:$0xff]
        %v1451 = vld [vmem:[%s1428 + $0xb0] sm:$0xff]
        %v1452 = vld [vmem:[%s1428 + $0xb8] sm:$0xff]
        %v1453 = vld [vmem:[%s1428 + $0xc0] sm:$0xff]
        %v1454 = vld [vmem:[%s1428 + $0xc8] sm:$0xff]
        %v1455 = vld [vmem:[%s1428 + $0xd0] sm:$0xff]
        %v1456 = vld [vmem:[%s1428 + $0xd8] sm:$0xff]
        %v1457 = vld [vmem:[%s1428 + $0xe0] sm:$0xff]
        %v1458 = vld [vmem:[%s1428 + $0xe8] sm:$0xff]
        %v1459 = vld [vmem:[%s1428 + $0xf0] sm:$0xff]
        %v1460 = vld [vmem:[%s1428 + $0xf8] sm:$0xff]
        %1461 = vmatprep.subr.mxu0 %v1430
        %1462 = vmatpush1.msra.mxu0 %v1429
        %1463 = vmatprep.subr.mxu0 %v1432
        %1464 = vmatpush1.msra.mxu0 %v1431
        %1465 = vmatprep.subr.mxu0 %v1434
        %1466 = vmatpush1.msra.mxu0 %v1433
        %1467 = vmatprep.subr.mxu0 %v1436
        %1468 = vmatpush1.msra.mxu0 %v1435
        %1469 = vmatprep.subr.mxu0 %v1438
        %1470 = vmatpush1.msra.mxu0 %v1437
        %1471 = vmatprep.subr.mxu0 %v1440
        %1472 = vmatpush1.msra.mxu0 %v1439
        %1473 = vmatprep.subr.mxu0 %v1442
        %1474 = vmatpush1.msra.mxu0 %v1441
        %1475 = vmatprep.subr.mxu0 %v1444
        %1476 = vmatpush1.msra.mxu0 %v1443
        %1477 = vmatprep.subr.mxu0 %v1446
        %1478 = vmatpush1.msra.mxu0 %v1445
        %1479 = vmatprep.subr.mxu0 %v1448
        %1480 = vmatpush1.msra.mxu0 %v1447
        %1481 = vmatprep.subr.mxu0 %v1450
        %1482 = vmatpush1.msra.mxu0 %v1449
        %1483 = vmatprep.subr.mxu0 %v1452
        %1484 = vmatpush1.msra.mxu0 %v1451
        %1485 = vmatprep.subr.mxu0 %v1454
        %1486 = vmatpush1.msra.mxu0 %v1453
        %1487 = vmatprep.subr.mxu0 %v1456
        %1488 = vmatpush1.msra.mxu0 %v1455
        %1489 = vmatprep.subr.mxu0 %v1458
        %1490 = vmatpush1.msra.mxu0 %v1457
        %1491 = vmatprep.subr.mxu0 %v1460
        %1492 = vmatpush1.msra.mxu0 %v1459
        %1493 = vmatprep.subr.mxu0 0.0
        %1494 = vmatpush1.msra.mxu0 0.0
        %1495 = vmatprep.subr.mxu0 0.0
        %1496 = vmatpush1.msra.mxu0 0.0
        %1497 = vmatprep.subr.mxu0 0.0
        %1498 = vmatpush1.msra.mxu0 0.0
        %1499 = vmatprep.subr.mxu0 0.0
        %1500 = vmatpush1.msra.mxu0 0.0
        %1501 = vmatprep.subr.mxu0 0.0
        %1502 = vmatpush1.msra.mxu0 0.0
        %1503 = vmatprep.subr.mxu0 0.0
        %1504 = vmatpush1.msra.mxu0 0.0
        %1505 = vmatprep.subr.mxu0 0.0
        %1506 = vmatpush1.msra.mxu0 0.0
        %1507 = vmatprep.subr.mxu0 0.0
        %1508 = vmatpush1.msra.mxu0 0.0
        %1509 = vmatprep.subr.mxu0 0.0
        %1510 = vmatpush1.msra.mxu0 0.0
        %1511 = vmatprep.subr.mxu0 0.0
        %1512 = vmatpush1.msra.mxu0 0.0
        %1513 = vmatprep.subr.mxu0 0.0
        %1514 = vmatpush1.msra.mxu0 0.0
        %1515 = vmatprep.subr.mxu0 0.0
        %1516 = vmatpush1.msra.mxu0 0.0
        %1517 = vmatprep.subr.mxu0 0.0
        %1518 = vmatpush1.msra.mxu0 0.0
        %1519 = vmatprep.subr.mxu0 0.0
        %1520 = vmatpush1.msra.mxu0 0.0
        %1521 = vmatprep.subr.mxu0 0.0
        %1522 = vmatpush1.msra.mxu0 0.0
        %1523 = vmatprep.subr.mxu0 0.0
        %1524 = vmatpush1.msra.mxu0 0.0
        %1525 = vmatprep.mubr.f32.mxu0 0.0
        %1526 = vmatmul.mubr.f32.gmra.mrb[0].mxu0 %v1427
        %v1527 = vpop.f32.mrb[0].mxu0
        %v1528 = vadd.f32 0.0, %v1527
        %v1529 = vpop.f32.mrb[0].mxu0
        %v1530 = vadd.f32 0.0, %v1529
        %1531 = vdwg.mxu0
        %v1532 = vadd.f32 %v1425, %v1528
        %v1533 = vadd.f32 %v1426, %v1530
        %v1534 = vld [vmem:[#allocation2 + $0x2] sm:$0x1f]
        %s1535 = scalar_lea.vmem %s3, 1024
        %v1536 = vld [vmem:[%s1535] sm:$0xff]
        %v1537 = vld [vmem:[%s1535 + $0x8] sm:$0xff]
        %v1538 = vld [vmem:[%s1535 + $0x10] sm:$0xff]
        %v1539 = vld [vmem:[%s1535 + $0x18] sm:$0xff]
        %v1540 = vld [vmem:[%s1535 + $0x20] sm:$0xff]
        %v1541 = vld [vmem:[%s1535 + $0x28] sm:$0xff]
        %v1542 = vld [vmem:[%s1535 + $0x30] sm:$0xff]
        %v1543 = vld [vmem:[%s1535 + $0x38] sm:$0xff]
        %v1544 = vld [vmem:[%s1535 + $0x40] sm:$0xff]
        %v1545 = vld [vmem:[%s1535 + $0x48] sm:$0xff]
        %v1546 = vld [vmem:[%s1535 + $0x50] sm:$0xff]
        %v1547 = vld [vmem:[%s1535 + $0x58] sm:$0xff]
        %v1548 = vld [vmem:[%s1535 + $0x60] sm:$0xff]
        %v1549 = vld [vmem:[%s1535 + $0x68] sm:$0xff]
        %v1550 = vld [vmem:[%s1535 + $0x70] sm:$0xff]
        %v1551 = vld [vmem:[%s1535 + $0x78] sm:$0xff]
        %v1552 = vld [vmem:[%s1535 + $0x80] sm:$0xff]
        %v1553 = vld [vmem:[%s1535 + $0x88] sm:$0xff]
        %v1554 = vld [vmem:[%s1535 + $0x90] sm:$0xff]
        %v1555 = vld [vmem:[%s1535 + $0x98] sm:$0xff]
        %v1556 = vld [vmem:[%s1535 + $0xa0] sm:$0xff]
        %v1557 = vld [vmem:[%s1535 + $0xa8] sm:$0xff]
        %v1558 = vld [vmem:[%s1535 + $0xb0] sm:$0xff]
        %v1559 = vld [vmem:[%s1535 + $0xb8] sm:$0xff]
        %v1560 = vld [vmem:[%s1535 + $0xc0] sm:$0xff]
        %v1561 = vld [vmem:[%s1535 + $0xc8] sm:$0xff]
        %v1562 = vld [vmem:[%s1535 + $0xd0] sm:$0xff]
        %v1563 = vld [vmem:[%s1535 + $0xd8] sm:$0xff]
        %v1564 = vld [vmem:[%s1535 + $0xe0] sm:$0xff]
        %v1565 = vld [vmem:[%s1535 + $0xe8] sm:$0xff]
        %v1566 = vld [vmem:[%s1535 + $0xf0] sm:$0xff]
        %v1567 = vld [vmem:[%s1535 + $0xf8] sm:$0xff]
        %1568 = vmatprep.subr.mxu0 %v1537
        %1569 = vmatpush1.msra.mxu0 %v1536
        %1570 = vmatprep.subr.mxu0 %v1539
        %1571 = vmatpush1.msra.mxu0 %v1538
        %1572 = vmatprep.subr.mxu0 %v1541
        %1573 = vmatpush1.msra.mxu0 %v1540
        %1574 = vmatprep.subr.mxu0 %v1543
        %1575 = vmatpush1.msra.mxu0 %v1542
        %1576 = vmatprep.subr.mxu0 %v1545
        %1577 = vmatpush1.msra.mxu0 %v1544
        %1578 = vmatprep.subr.mxu0 %v1547
        %1579 = vmatpush1.msra.mxu0 %v1546
        %1580 = vmatprep.subr.mxu0 %v1549
        %1581 = vmatpush1.msra.mxu0 %v1548
        %1582 = vmatprep.subr.mxu0 %v1551
        %1583 = vmatpush1.msra.mxu0 %v1550
        %1584 = vmatprep.subr.mxu0 %v1553
        %1585 = vmatpush1.msra.mxu0 %v1552
        %1586 = vmatprep.subr.mxu0 %v1555
        %1587 = vmatpush1.msra.mxu0 %v1554
        %1588 = vmatprep.subr.mxu0 %v1557
        %1589 = vmatpush1.msra.mxu0 %v1556
        %1590 = vmatprep.subr.mxu0 %v1559
        %1591 = vmatpush1.msra.mxu0 %v1558
        %1592 = vmatprep.subr.mxu0 %v1561
        %1593 = vmatpush1.msra.mxu0 %v1560
        %1594 = vmatprep.subr.mxu0 %v1563
        %1595 = vmatpush1.msra.mxu0 %v1562
        %1596 = vmatprep.subr.mxu0 %v1565
        %1597 = vmatpush1.msra.mxu0 %v1564
        %1598 = vmatprep.subr.mxu0 %v1567
        %1599 = vmatpush1.msra.mxu0 %v1566
        %1600 = vmatprep.subr.mxu0 0.0
        %1601 = vmatpush1.msra.mxu0 0.0
        %1602 = vmatprep.subr.mxu0 0.0
        %1603 = vmatpush1.msra.mxu0 0.0
        %1604 = vmatprep.subr.mxu0 0.0
        %1605 = vmatpush1.msra.mxu0 0.0
        %1606 = vmatprep.subr.mxu0 0.0
        %1607 = vmatpush1.msra.mxu0 0.0
        %1608 = vmatprep.subr.mxu0 0.0
        %1609 = vmatpush1.msra.mxu0 0.0
        %1610 = vmatprep.subr.mxu0 0.0
        %1611 = vmatpush1.msra.mxu0 0.0
        %1612 = vmatprep.subr.mxu0 0.0
        %1613 = vmatpush1.msra.mxu0 0.0
        %1614 = vmatprep.subr.mxu0 0.0
        %1615 = vmatpush1.msra.mxu0 0.0
        %1616 = vmatprep.subr.mxu0 0.0
        %1617 = vmatpush1.msra.mxu0 0.0
        %1618 = vmatprep.subr.mxu0 0.0
        %1619 = vmatpush1.msra.mxu0 0.0
        %1620 = vmatprep.subr.mxu0 0.0
        %1621 = vmatpush1.msra.mxu0 0.0
        %1622 = vmatprep.subr.mxu0 0.0
        %1623 = vmatpush1.msra.mxu0 0.0
        %1624 = vmatprep.subr.mxu0 0.0
        %1625 = vmatpush1.msra.mxu0 0.0
        %1626 = vmatprep.subr.mxu0 0.0
        %1627 = vmatpush1.msra.mxu0 0.0
        %1628 = vmatprep.subr.mxu0 0.0
        %1629 = vmatpush1.msra.mxu0 0.0
        %1630 = vmatprep.subr.mxu0 0.0
        %1631 = vmatpush1.msra.mxu0 0.0
        %1632 = vmatprep.mubr.f32.mxu0 0.0
        %1633 = vmatmul.mubr.f32.gmra.mrb[0].mxu0 %v1534
        %v1634 = vpop.f32.mrb[0].mxu0
        %v1635 = vadd.f32 0.0, %v1634
        %v1636 = vpop.f32.mrb[0].mxu0
        %v1637 = vadd.f32 0.0, %v1636
        %1638 = vdwg.mxu0
        %v1639 = vadd.f32 %v1532, %v1635
        %v1640 = vadd.f32 %v1533, %v1637
        %v1641 = vmax.f32 %v1639, %v1640
        %1642 = vmatprep.subr.mxu0 %v1147
        %1643 = vmatpush1.msra.mxu0 %v1146
        %1644 = vmatprep.subr.mxu0 %v1149
        %1645 = vmatpush1.msra.mxu0 %v1148
        %1646 = vmatprep.subr.mxu0 %v1151
        %1647 = vmatpush1.msra.mxu0 %v1150
        %1648 = vmatprep.subr.mxu0 %v1153
        %1649 = vmatpush1.msra.mxu0 %v1152
        %1650 = vmatprep.subr.mxu0 %v1155
        %1651 = vmatpush1.msra.mxu0 %v1154
        %1652 = vmatprep.subr.mxu0 %v1157
        %1653 = vmatpush1.msra.mxu0 %v1156
        %1654 = vmatprep.subr.mxu0 %v1159
        %1655 = vmatpush1.msra.mxu0 %v1158
        %1656 = vmatprep.subr.mxu0 %v1161
        %1657 = vmatpush1.msra.mxu0 %v1160
        %1658 = vmatprep.subr.mxu0 %v1163
        %1659 = vmatpush1.msra.mxu0 %v1162
        %1660 = vmatprep.subr.mxu0 %v1165
        %1661 = vmatpush1.msra.mxu0 %v1164
        %1662 = vmatprep.subr.mxu0 %v1167
        %1663 = vmatpush1.msra.mxu0 %v1166
        %1664 = vmatprep.subr.mxu0 %v1169
        %1665 = vmatpush1.msra.mxu0 %v1168
        %1666 = vmatprep.subr.mxu0 %v1171
        %1667 = vmatpush1.msra.mxu0 %v1170
        %1668 = vmatprep.subr.mxu0 %v1173
        %1669 = vmatpush1.msra.mxu0 %v1172
        %1670 = vmatprep.subr.mxu0 %v1175
        %1671 = vmatpush1.msra.mxu0 %v1174
        %1672 = vmatprep.subr.mxu0 %v1177
        %1673 = vmatpush1.msra.mxu0 %v1176
        %1674 = vmatprep.subr.mxu0 0.0
        %1675 = vmatpush1.msra.mxu0 0.0
        %1676 = vmatprep.subr.mxu0 0.0
        %1677 = vmatpush1.msra.mxu0 0.0
        %1678 = vmatprep.subr.mxu0 0.0
        %1679 = vmatpush1.msra.mxu0 0.0
        %1680 = vmatprep.subr.mxu0 0.0
        %1681 = vmatpush1.msra.mxu0 0.0
        %1682 = vmatprep.subr.mxu0 0.0
        %1683 = vmatpush1.msra.mxu0 0.0
        %1684 = vmatprep.subr.mxu0 0.0
        %1685 = vmatpush1.msra.mxu0 0.0
        %1686 = vmatprep.subr.mxu0 0.0
        %1687 = vmatpush1.msra.mxu0 0.0
        %1688 = vmatprep.subr.mxu0 0.0
        %1689 = vmatpush1.msra.mxu0 0.0
        %1690 = vmatprep.subr.mxu0 0.0
        %1691 = vmatpush1.msra.mxu0 0.0
        %1692 = vmatprep.subr.mxu0 0.0
        %1693 = vmatpush1.msra.mxu0 0.0
        %1694 = vmatprep.subr.mxu0 0.0
        %1695 = vmatpush1.msra.mxu0 0.0
        %1696 = vmatprep.subr.mxu0 0.0
        %1697 = vmatpush1.msra.mxu0 0.0
        %1698 = vmatprep.subr.mxu0 0.0
        %1699 = vmatpush1.msra.mxu0 0.0
        %1700 = vmatprep.subr.mxu0 0.0
        %1701 = vmatpush1.msra.mxu0 0.0
        %1702 = vmatprep.subr.mxu0 0.0
        %1703 = vmatpush1.msra.mxu0 0.0
        %1704 = vmatprep.subr.mxu0 0.0
        %1705 = vmatpush1.msra.mxu0 0.0
        %1706 = vmatprep.mubr.f32.mxu0 0.0
        %1707 = vmatmul.mubr.f32.gmra.mrb[0].mxu0 %v1320
        %v1708 = vpop.f32.mrb[0].mxu0
        %v1709 = vadd.f32 0.0, %v1708
        %v1710 = vpop.f32.mrb[0].mxu0
        %v1711 = vadd.f32 0.0, %v1710
        %1712 = vdwg.mxu0
        %1713 = vmatprep.subr.mxu0 %v1113
        %1714 = vmatpush1.msra.mxu0 %v1112
        %1715 = vmatprep.subr.mxu0 %v1115
        %1716 = vmatpush1.msra.mxu0 %v1114
        %1717 = vmatprep.subr.mxu0 %v1117
        %1718 = vmatpush1.msra.mxu0 %v1116
        %1719 = vmatprep.subr.mxu0 %v1119
        %1720 = vmatpush1.msra.mxu0 %v1118
        %1721 = vmatprep.subr.mxu0 %v1121
        %1722 = vmatpush1.msra.mxu0 %v1120
        %1723 = vmatprep.subr.mxu0 %v1123
        %1724 = vmatpush1.msra.mxu0 %v1122
        %1725 = vmatprep.subr.mxu0 %v1125
        %1726 = vmatpush1.msra.mxu0 %v1124
        %1727 = vmatprep.subr.mxu0 %v1127
        %1728 = vmatpush1.msra.mxu0 %v1126
        %1729 = vmatprep.subr.mxu0 %v1129
        %1730 = vmatpush1.msra.mxu0 %v1128
        %1731 = vmatprep.subr.mxu0 %v1131
        %1732 = vmatpush1.msra.mxu0 %v1130
        %1733 = vmatprep.subr.mxu0 %v1133
        %1734 = vmatpush1.msra.mxu0 %v1132
        %1735 = vmatprep.subr.mxu0 %v1135
        %1736 = vmatpush1.msra.mxu0 %v1134
        %1737 = vmatprep.subr.mxu0 %v1137
        %1738 = vmatpush1.msra.mxu0 %v1136
        %1739 = vmatprep.subr.mxu0 %v1139
        %1740 = vmatpush1.msra.mxu0 %v1138
        %1741 = vmatprep.subr.mxu0 %v1141
        %1742 = vmatpush1.msra.mxu0 %v1140
        %1743 = vmatprep.subr.mxu0 %v1143
        %1744 = vmatpush1.msra.mxu0 %v1142
        %1745 = vmatprep.subr.mxu0 0.0
        %1746 = vmatpush1.msra.mxu0 0.0
        %1747 = vmatprep.subr.mxu0 0.0
        %1748 = vmatpush1.msra.mxu0 0.0
        %1749 = vmatprep.subr.mxu0 0.0
        %1750 = vmatpush1.msra.mxu0 0.0
        %1751 = vmatprep.subr.mxu0 0.0
        %1752 = vmatpush1.msra.mxu0 0.0
        %1753 = vmatprep.subr.mxu0 0.0
        %1754 = vmatpush1.msra.mxu0 0.0
        %1755 = vmatprep.subr.mxu0 0.0
        %1756 = vmatpush1.msra.mxu0 0.0
        %1757 = vmatprep.subr.mxu0 0.0
        %1758 = vmatpush1.msra.mxu0 0.0
        %1759 = vmatprep.subr.mxu0 0.0
        %1760 = vmatpush1.msra.mxu0 0.0
        %1761 = vmatprep.subr.mxu0 0.0
        %1762 = vmatpush1.msra.mxu0 0.0
        %1763 = vmatprep.subr.mxu0 0.0
        %1764 = vmatpush1.msra.mxu0 0.0
        %1765 = vmatprep.subr.mxu0 0.0
        %1766 = vmatpush1.msra.mxu0 0.0
        %1767 = vmatprep.subr.mxu0 0.0
        %1768 = vmatpush1.msra.mxu0 0.0
        %1769 = vmatprep.subr.mxu0 0.0
        %1770 = vmatpush1.msra.mxu0 0.0
        %1771 = vmatprep.subr.mxu0 0.0
        %1772 = vmatpush1.msra.mxu0 0.0
        %1773 = vmatprep.subr.mxu0 0.0
        %1774 = vmatpush1.msra.mxu0 0.0
        %1775 = vmatprep.subr.mxu0 0.0
        %1776 = vmatpush1.msra.mxu0 0.0
        %1777 = vmatprep.mubr.f32.mxu0 0.0
        %1778 = vmatmul.mubr.f32.gmra.mrb[0].mxu0 %v1144
        %v1779 = vpop.f32.mrb[0].mxu0
        %v1780 = vadd.f32 %v1709, %v1779
        %v1781 = vpop.f32.mrb[0].mxu0
        %v1782 = vadd.f32 %v1711, %v1781
        %1783 = vdwg.mxu0
        %1784 = vmatprep.subr.mxu0 %v1323
        %1785 = vmatpush1.msra.mxu0 %v1322
        %1786 = vmatprep.subr.mxu0 %v1325
        %1787 = vmatpush1.msra.mxu0 %v1324
        %1788 = vmatprep.subr.mxu0 %v1327
        %1789 = vmatpush1.msra.mxu0 %v1326
        %1790 = vmatprep.subr.mxu0 %v1329
        %1791 = vmatpush1.msra.mxu0 %v1328
        %1792 = vmatprep.subr.mxu0 %v1331
        %1793 = vmatpush1.msra.mxu0 %v1330
        %1794 = vmatprep.subr.mxu0 %v1333
        %1795 = vmatpush1.msra.mxu0 %v1332
        %1796 = vmatprep.subr.mxu0 %v1335
        %1797 = vmatpush1.msra.mxu0 %v1334
        %1798 = vmatprep.subr.mxu0 %v1337
        %1799 = vmatpush1.msra.mxu0 %v1336
        %1800 = vmatprep.subr.mxu0 %v1339
        %1801 = vmatpush1.msra.mxu0 %v1338
        %1802 = vmatprep.subr.mxu0 %v1341
        %1803 = vmatpush1.msra.mxu0 %v1340
        %1804 = vmatprep.subr.mxu0 %v1343
        %1805 = vmatpush1.msra.mxu0 %v1342
        %1806 = vmatprep.subr.mxu0 %v1345
        %1807 = vmatpush1.msra.mxu0 %v1344
        %1808 = vmatprep.subr.mxu0 %v1347
        %1809 = vmatpush1.msra.mxu0 %v1346
        %1810 = vmatprep.subr.mxu0 %v1349
        %1811 = vmatpush1.msra.mxu0 %v1348
        %1812 = vmatprep.subr.mxu0 %v1351
        %1813 = vmatpush1.msra.mxu0 %v1350
        %1814 = vmatprep.subr.mxu0 %v1353
        %1815 = vmatpush1.msra.mxu0 %v1352
        %1816 = vmatprep.subr.mxu0 0.0
        %1817 = vmatpush1.msra.mxu0 0.0
        %1818 = vmatprep.subr.mxu0 0.0
        %1819 = vmatpush1.msra.mxu0 0.0
        %1820 = vmatprep.subr.mxu0 0.0
        %1821 = vmatpush1.msra.mxu0 0.0
        %1822 = vmatprep.subr.mxu0 0.0
        %1823 = vmatpush1.msra.mxu0 0.0
        %1824 = vmatprep.subr.mxu0 0.0
        %1825 = vmatpush1.msra.mxu0 0.0
        %1826 = vmatprep.subr.mxu0 0.0
        %1827 = vmatpush1.msra.mxu0 0.0
        %1828 = vmatprep.subr.mxu0 0.0
        %1829 = vmatpush1.msra.mxu0 0.0
        %1830 = vmatprep.subr.mxu0 0.0
        %1831 = vmatpush1.msra.mxu0 0.0
        %1832 = vmatprep.subr.mxu0 0.0
        %1833 = vmatpush1.msra.mxu0 0.0
        %1834 = vmatprep.subr.mxu0 0.0
        %1835 = vmatpush1.msra.mxu0 0.0
        %1836 = vmatprep.subr.mxu0 0.0
        %1837 = vmatpush1.msra.mxu0 0.0
        %1838 = vmatprep.subr.mxu0 0.0
        %1839 = vmatpush1.msra.mxu0 0.0
        %1840 = vmatprep.subr.mxu0 0.0
        %1841 = vmatpush1.msra.mxu0 0.0
        %1842 = vmatprep.subr.mxu0 0.0
        %1843 = vmatpush1.msra.mxu0 0.0
        %1844 = vmatprep.subr.mxu0 0.0
        %1845 = vmatpush1.msra.mxu0 0.0
        %1846 = vmatprep.subr.mxu0 0.0
        %1847 = vmatpush1.msra.mxu0 0.0
        %1848 = vmatprep.mubr.f32.mxu0 0.0
        %1849 = vmatmul.mubr.f32.gmra.mrb[0].mxu0 %v1427
        %v1850 = vpop.f32.mrb[0].mxu0
        %v1851 = vadd.f32 0.0, %v1850
        %v1852 = vpop.f32.mrb[0].mxu0
        %v1853 = vadd.f32 0.0, %v1852
        %1854 = vdwg.mxu0
        %v1855 = vadd.f32 %v1780, %v1851
        %v1856 = vadd.f32 %v1782, %v1853
        %1857 = vmatprep.subr.mxu0 %v1430
        %1858 = vmatpush1.msra.mxu0 %v1429
        %1859 = vmatprep.subr.mxu0 %v1432
        %1860 = vmatpush1.msra.mxu0 %v1431
        %1861 = vmatprep.subr.mxu0 %v1434
        %1862 = vmatpush1.msra.mxu0 %v1433
        %1863 = vmatprep.subr.mxu0 %v1436
        %1864 = vmatpush1.msra.mxu0 %v1435
        %1865 = vmatprep.subr.mxu0 %v1438
        %1866 = vmatpush1.msra.mxu0 %v1437
        %1867 = vmatprep.subr.mxu0 %v1440
        %1868 = vmatpush1.msra.mxu0 %v1439
        %1869 = vmatprep.subr.mxu0 %v1442
        %1870 = vmatpush1.msra.mxu0 %v1441
        %1871 = vmatprep.subr.mxu0 %v1444
        %1872 = vmatpush1.msra.mxu0 %v1443
        %1873 = vmatprep.subr.mxu0 %v1446
        %1874 = vmatpush1.msra.mxu0 %v1445
        %1875 = vmatprep.subr.mxu0 %v1448
        %1876 = vmatpush1.msra.mxu0 %v1447
        %1877 = vmatprep.subr.mxu0 %v1450
        %1878 = vmatpush1.msra.mxu0 %v1449
        %1879 = vmatprep.subr.mxu0 %v1452
        %1880 = vmatpush1.msra.mxu0 %v1451
        %1881 = vmatprep.subr.mxu0 %v1454
        %1882 = vmatpush1.msra.mxu0 %v1453
        %1883 = vmatprep.subr.mxu0 %v1456
        %1884 = vmatpush1.msra.mxu0 %v1455
        %1885 = vmatprep.subr.mxu0 %v1458
        %1886 = vmatpush1.msra.mxu0 %v1457
        %1887 = vmatprep.subr.mxu0 %v1460
        %1888 = vmatpush1.msra.mxu0 %v1459
        %1889 = vmatprep.subr.mxu0 0.0
        %1890 = vmatpush1.msra.mxu0 0.0
        %1891 = vmatprep.subr.mxu0 0.0
        %1892 = vmatpush1.msra.mxu0 0.0
        %1893 = vmatprep.subr.mxu0 0.0
        %1894 = vmatpush1.msra.mxu0 0.0
        %1895 = vmatprep.subr.mxu0 0.0
        %1896 = vmatpush1.msra.mxu0 0.0
        %1897 = vmatprep.subr.mxu0 0.0
        %1898 = vmatpush1.msra.mxu0 0.0
        %1899 = vmatprep.subr.mxu0 0.0
        %1900 = vmatpush1.msra.mxu0 0.0
        %1901 = vmatprep.subr.mxu0 0.0
        %1902 = vmatpush1.msra.mxu0 0.0
        %1903 = vmatprep.subr.mxu0 0.0
        %1904 = vmatpush1.msra.mxu0 0.0
        %1905 = vmatprep.subr.mxu0 0.0
        %1906 = vmatpush1.msra.mxu0 0.0
        %1907 = vmatprep.subr.mxu0 0.0
        %1908 = vmatpush1.msra.mxu0 0.0
        %1909 = vmatprep.subr.mxu0 0.0
        %1910 = vmatpush1.msra.mxu0 0.0
        %1911 = vmatprep.subr.mxu0 0.0
        %1912 = vmatpush1.msra.mxu0 0.0
        %1913 = vmatprep.subr.mxu0 0.0
        %1914 = vmatpush1.msra.mxu0 0.0
        %1915 = vmatprep.subr.mxu0 0.0
        %1916 = vmatpush1.msra.mxu0 0.0
        %1917 = vmatprep.subr.mxu0 0.0
        %1918 = vmatpush1.msra.mxu0 0.0
        %1919 = vmatprep.subr.mxu0 0.0
        %1920 = vmatpush1.msra.mxu0 0.0
        %1921 = vmatprep.mubr.f32.mxu0 0.0
        %1922 = vmatmul.mubr.f32.gmra.mrb[0].mxu0 %v1534
        %v1923 = vpop.f32.mrb[0].mxu0
        %v1924 = vadd.f32 0.0, %v1923
        %v1925 = vpop.f32.mrb[0].mxu0
        %v1926 = vadd.f32 0.0, %v1925
        %1927 = vdwg.mxu0
        %v1928 = vadd.f32 %v1855, %v1924
        %v1929 = vadd.f32 %v1856, %v1926
        %v1930 = vld [vmem:[#allocation3 + $0x2] sm:$0x1f]
        %1931 = vmatprep.subr.mxu0 %v1537
        %1932 = vmatpush1.msra.mxu0 %v1536
        %1933 = vmatprep.subr.mxu0 %v1539
        %1934 = vmatpush1.msra.mxu0 %v1538
        %1935 = vmatprep.subr.mxu0 %v1541
        %1936 = vmatpush1.msra.mxu0 %v1540
        %1937 = vmatprep.subr.mxu0 %v1543
        %1938 = vmatpush1.msra.mxu0 %v1542
        %1939 = vmatprep.subr.mxu0 %v1545
        %1940 = vmatpush1.msra.mxu0 %v1544
        %1941 = vmatprep.subr.mxu0 %v1547
        %1942 = vmatpush1.msra.mxu0 %v1546
        %1943 = vmatprep.subr.mxu0 %v1549
        %1944 = vmatpush1.msra.mxu0 %v1548
        %1945 = vmatprep.subr.mxu0 %v1551
        %1946 = vmatpush1.msra.mxu0 %v1550
        %1947 = vmatprep.subr.mxu0 %v1553
        %1948 = vmatpush1.msra.mxu0 %v1552
        %1949 = vmatprep.subr.mxu0 %v1555
        %1950 = vmatpush1.msra.mxu0 %v1554
        %1951 = vmatprep.subr.mxu0 %v1557
        %1952 = vmatpush1.msra.mxu0 %v1556
        %1953 = vmatprep.subr.mxu0 %v1559
        %1954 = vmatpush1.msra.mxu0 %v1558
        %1955 = vmatprep.subr.mxu0 %v1561
        %1956 = vmatpush1.msra.mxu0 %v1560
        %1957 = vmatprep.subr.mxu0 %v1563
        %1958 = vmatpush1.msra.mxu0 %v1562
        %1959 = vmatprep.subr.mxu0 %v1565
        %1960 = vmatpush1.msra.mxu0 %v1564
        %1961 = vmatprep.subr.mxu0 %v1567
        %1962 = vmatpush1.msra.mxu0 %v1566
        %1963 = vmatprep.subr.mxu0 0.0
        %1964 = vmatpush1.msra.mxu0 0.0
        %1965 = vmatprep.subr.mxu0 0.0
        %1966 = vmatpush1.msra.mxu0 0.0
        %1967 = vmatprep.subr.mxu0 0.0
        %1968 = vmatpush1.msra.mxu0 0.0
        %1969 = vmatprep.subr.mxu0 0.0
        %1970 = vmatpush1.msra.mxu0 0.0
        %1971 = vmatprep.subr.mxu0 0.0
        %1972 = vmatpush1.msra.mxu0 0.0
        %1973 = vmatprep.subr.mxu0 0.0
        %1974 = vmatpush1.msra.mxu0 0.0
        %1975 = vmatprep.subr.mxu0 0.0
        %1976 = vmatpush1.msra.mxu0 0.0
        %1977 = vmatprep.subr.mxu0 0.0
        %1978 = vmatpush1.msra.mxu0 0.0
        %1979 = vmatprep.subr.mxu0 0.0
        %1980 = vmatpush1.msra.mxu0 0.0
        %1981 = vmatprep.subr.mxu0 0.0
        %1982 = vmatpush1.msra.mxu0 0.0
        %1983 = vmatprep.subr.mxu0 0.0
        %1984 = vmatpush1.msra.mxu0 0.0
        %1985 = vmatprep.subr.mxu0 0.0
        %1986 = vmatpush1.msra.mxu0 0.0
        %1987 = vmatprep.subr.mxu0 0.0
        %1988 = vmatpush1.msra.mxu0 0.0
        %1989 = vmatprep.subr.mxu0 0.0
        %1990 = vmatpush1.msra.mxu0 0.0
        %1991 = vmatprep.subr.mxu0 0.0
        %1992 = vmatpush1.msra.mxu0 0.0
        %1993 = vmatprep.subr.mxu0 0.0
        %1994 = vmatpush1.msra.mxu0 0.0
        %1995 = vmatprep.mubr.f32.mxu0 0.0
        %1996 = vmatmul.mubr.f32.gmra.mrb[0].mxu0 %v1930
        %v1997 = vpop.f32.mrb[0].mxu0
        %v1998 = vadd.f32 0.0, %v1997
        %v1999 = vpop.f32.mrb[0].mxu0
        %v2000 = vadd.f32 0.0, %v1999
        %2001 = vdwg.mxu0
        %v2002 = vadd.f32 %v1928, %v1998
        %v2003 = vadd.f32 %v1929, %v2000
        %v2004 = vmax.f32 %v2002, %v2003
        %v2005 = vmax.f32 %v1641, %v2004
        %v2006 = vld [vmem:[%s4] sm:$0x1]
        %v2008 = vlaneseq
        %v2009 = vshrl.u32 %v2008, 7
        %v2010 = vsub.s32 0, %v2009
        %v2011 = vrot.slane %v2006, %v2010
        %v2013 = vadd.f32 %v2005, %v2011
        %v2014 = vmax.f32 %v2013, 0.0
        %2015 = vst [vmem:[#allocation4] sm:$0x1f] %v2014
        %v2016 = vld [vmem:[%s6] sm:$0x3]
        %v2017 = vld [vmem:[#allocation4] sm:$0x1]
        %v2018 = vld [vmem:[#allocation8] sm:$0xff]
        %v2019 = vld [vmem:[#allocation8 + $0x8] sm:$0xff]
        %v2020 = vld [vmem:[#allocation8 + $0x10] sm:$0xff]
        %v2021 = vld [vmem:[#allocation8 + $0x18] sm:$0xff]
        %v2022 = vld [vmem:[#allocation8 + $0x20] sm:$0xff]
        %v2023 = vld [vmem:[#allocation8 + $0x28] sm:$0xff]
        %v2024 = vld [vmem:[#allocation8 + $0x30] sm:$0xff]
        %v2025 = vld [vmem:[#allocation8 + $0x38] sm:$0xff]
        %v2026 = vld [vmem:[#allocation8 + $0x40] sm:$0xff]
        %v2027 = vld [vmem:[#allocation8 + $0x48] sm:$0xff]
        %v2028 = vld [vmem:[#allocation8 + $0x50] sm:$0xff]
        %v2029 = vld [vmem:[#allocation8 + $0x58] sm:$0xff]
        %v2030 = vld [vmem:[#allocation8 + $0x60] sm:$0xff]
        %v2031 = vld [vmem:[#allocation8 + $0x68] sm:$0xff]
        %v2032 = vld [vmem:[#allocation8 + $0x70] sm:$0xff]
        %v2033 = vld [vmem:[#allocation8 + $0x78] sm:$0xff]
        %v2034 = vld [vmem:[#allocation8 + $0x80] sm:$0xff]
        %v2035 = vld [vmem:[#allocation8 + $0x88] sm:$0xff]
        %v2036 = vld [vmem:[#allocation8 + $0x90] sm:$0xff]
        %v2037 = vld [vmem:[#allocation8 + $0x98] sm:$0xff]
        %v2038 = vld [vmem:[#allocation8 + $0xa0] sm:$0xff]
        %v2039 = vld [vmem:[#allocation8 + $0xa8] sm:$0xff]
        %v2040 = vld [vmem:[#allocation8 + $0xb0] sm:$0xff]
        %v2041 = vld [vmem:[#allocation8 + $0xb8] sm:$0xff]
        %v2042 = vld [vmem:[#allocation8 + $0xc0] sm:$0xff]
        %v2043 = vld [vmem:[#allocation8 + $0xc8] sm:$0xff]
        %v2044 = vld [vmem:[#allocation8 + $0xd0] sm:$0xff]
        %v2045 = vld [vmem:[#allocation8 + $0xd8] sm:$0xff]
        %v2046 = vld [vmem:[#allocation8 + $0xe0] sm:$0xff]
        %v2047 = vld [vmem:[#allocation8 + $0xe8] sm:$0xff]
        %v2048 = vld [vmem:[#allocation8 + $0xf0] sm:$0xff]
        %v2049 = vld [vmem:[#allocation8 + $0xf8] sm:$0xff]
        %2050 = vmatprep.subr.mxu0 %v2019
        %2051 = vmatpush1.msra.mxu0 %v2018
        %2052 = vmatprep.subr.mxu0 %v2021
        %2053 = vmatpush1.msra.mxu0 %v2020
        %2054 = vmatprep.subr.mxu0 %v2023
        %2055 = vmatpush1.msra.mxu0 %v2022
        %2056 = vmatprep.subr.mxu0 %v2025
        %2057 = vmatpush1.msra.mxu0 %v2024
        %2058 = vmatprep.subr.mxu0 %v2027
        %2059 = vmatpush1.msra.mxu0 %v2026
        %2060 = vmatprep.subr.mxu0 %v2029
        %2061 = vmatpush1.msra.mxu0 %v2028
        %2062 = vmatprep.subr.mxu0 %v2031
        %2063 = vmatpush1.msra.mxu0 %v2030
        %2064 = vmatprep.subr.mxu0 %v2033
        %2065 = vmatpush1.msra.mxu0 %v2032
        %2066 = vmatprep.subr.mxu0 %v2035
        %2067 = vmatpush1.msra.mxu0 %v2034
        %2068 = vmatprep.subr.mxu0 %v2037
        %2069 = vmatpush1.msra.mxu0 %v2036
        %2070 = vmatprep.subr.mxu0 %v2039
        %2071 = vmatpush1.msra.mxu0 %v2038
        %2072 = vmatprep.subr.mxu0 %v2041
        %2073 = vmatpush1.msra.mxu0 %v2040
        %2074 = vmatprep.subr.mxu0 %v2043
        %2075 = vmatpush1.msra.mxu0 %v2042
        %2076 = vmatprep.subr.mxu0 %v2045
        %2077 = vmatpush1.msra.mxu0 %v2044
        %2078 = vmatprep.subr.mxu0 %v2047
        %2079 = vmatpush1.msra.mxu0 %v2046
        %2080 = vmatprep.subr.mxu0 %v2049
        %2081 = vmatpush1.msra.mxu0 %v2048
        %2082 = vmatprep.subr.mxu0 0.0
        %2083 = vmatpush1.msra.mxu0 0.0
        %2084 = vmatprep.subr.mxu0 0.0
        %2085 = vmatpush1.msra.mxu0 0.0
        %2086 = vmatprep.subr.mxu0 0.0
        %2087 = vmatpush1.msra.mxu0 0.0
        %2088 = vmatprep.subr.mxu0 0.0
        %2089 = vmatpush1.msra.mxu0 0.0
        %2090 = vmatprep.subr.mxu0 0.0
        %2091 = vmatpush1.msra.mxu0 0.0
        %2092 = vmatprep.subr.mxu0 0.0
        %2093 = vmatpush1.msra.mxu0 0.0
        %2094 = vmatprep.subr.mxu0 0.0
        %2095 = vmatpush1.msra.mxu0 0.0
        %2096 = vmatprep.subr.mxu0 0.0
        %2097 = vmatpush1.msra.mxu0 0.0
        %2098 = vmatprep.subr.mxu0 0.0
        %2099 = vmatpush1.msra.mxu0 0.0
        %2100 = vmatprep.subr.mxu0 0.0
        %2101 = vmatpush1.msra.mxu0 0.0
        %2102 = vmatprep.subr.mxu0 0.0
        %2103 = vmatpush1.msra.mxu0 0.0
        %2104 = vmatprep.subr.mxu0 0.0
        %2105 = vmatpush1.msra.mxu0 0.0
        %2106 = vmatprep.subr.mxu0 0.0
        %2107 = vmatpush1.msra.mxu0 0.0
        %2108 = vmatprep.subr.mxu0 0.0
        %2109 = vmatpush1.msra.mxu0 0.0
        %2110 = vmatprep.subr.mxu0 0.0
        %2111 = vmatpush1.msra.mxu0 0.0
        %2112 = vmatprep.subr.mxu0 0.0
        %2113 = vmatpush1.msra.mxu0 0.0
        %2114 = vmatprep.mubr.f32.mxu0 0.0
        %2115 = vmatmul.mubr.f32.gmra.mrb[0].mxu0 %v2017
        %v2116 = vpop.f32.mrb[0].mxu0
        %v2117 = vadd.f32 0.0, %v2116
        %v2118 = vpop.f32.mrb[0].mxu0
        %v2119 = vadd.f32 0.0, %v2118
        %2120 = vdwg.mxu0
        %v2123 = vcombine.low %v2117, %v2119
        %v2125 = vunpack.c.l.s4 1966171168
        %v2126 = vunpack.c.0.s8 %v2125
        %v2127 = vlaneseq
        %v2128 = vshrl.u32 %v2127, 7
        %v2129 = vsub.s32 %v2126, %v2128
        %v2130 = vrot.slane %v2123, %v2129
        %v2132 = vunpack.c.l.s4 1966171168
        %v2133 = vunpack.c.0.s8 %v2132
        %v2134 = vlaneseq
        %v2135 = vshrl.u32 %v2134, 7
        %v2136 = vsub.s32 %v2133, %v2135
        %v2137 = vrot.slane %v2130, %v2136
        %v2139 = vadd.f32 %v2016, %v2137
        %v2140 = vld [vmem:[#allocation4 + $0x1] sm:$0x1]
        %s2141 = scalar_lea.vmem [#allocation8], 256
        %v2142 = vld [vmem:[%s2141] sm:$0xff]
        %v2143 = vld [vmem:[%s2141 + $0x8] sm:$0xff]
        %v2144 = vld [vmem:[%s2141 + $0x10] sm:$0xff]
        %v2145 = vld [vmem:[%s2141 + $0x18] sm:$0xff]
        %v2146 = vld [vmem:[%s2141 + $0x20] sm:$0xff]
        %v2147 = vld [vmem:[%s2141 + $0x28] sm:$0xff]
        %v2148 = vld [vmem:[%s2141 + $0x30] sm:$0xff]
        %v2149 = vld [vmem:[%s2141 + $0x38] sm:$0xff]
        %v2150 = vld [vmem:[%s2141 + $0x40] sm:$0xff]
        %v2151 = vld [vmem:[%s2141 + $0x48] sm:$0xff]
        %v2152 = vld [vmem:[%s2141 + $0x50] sm:$0xff]
        %v2153 = vld [vmem:[%s2141 + $0x58] sm:$0xff]
        %v2154 = vld [vmem:[%s2141 + $0x60] sm:$0xff]
        %v2155 = vld [vmem:[%s2141 + $0x68] sm:$0xff]
        %v2156 = vld [vmem:[%s2141 + $0x70] sm:$0xff]
        %v2157 = vld [vmem:[%s2141 + $0x78] sm:$0xff]
        %v2158 = vld [vmem:[%s2141 + $0x80] sm:$0xff]
        %v2159 = vld [vmem:[%s2141 + $0x88] sm:$0xff]
        %v2160 = vld [vmem:[%s2141 + $0x90] sm:$0xff]
        %v2161 = vld [vmem:[%s2141 + $0x98] sm:$0xff]
        %v2162 = vld [vmem:[%s2141 + $0xa0] sm:$0xff]
        %v2163 = vld [vmem:[%s2141 + $0xa8] sm:$0xff]
        %v2164 = vld [vmem:[%s2141 + $0xb0] sm:$0xff]
        %v2165 = vld [vmem:[%s2141 + $0xb8] sm:$0xff]
        %v2166 = vld [vmem:[%s2141 + $0xc0] sm:$0xff]
        %v2167 = vld [vmem:[%s2141 + $0xc8] sm:$0xff]
        %v2168 = vld [vmem:[%s2141 + $0xd0] sm:$0xff]
        %v2169 = vld [vmem:[%s2141 + $0xd8] sm:$0xff]
        %v2170 = vld [vmem:[%s2141 + $0xe0] sm:$0xff]
        %v2171 = vld [vmem:[%s2141 + $0xe8] sm:$0xff]
        %v2172 = vld [vmem:[%s2141 + $0xf0] sm:$0xff]
        %v2173 = vld [vmem:[%s2141 + $0xf8] sm:$0xff]
        %2174 = vmatprep.subr.mxu0 %v2143
        %2175 = vmatpush1.msra.mxu0 %v2142
        %2176 = vmatprep.subr.mxu0 %v2145
        %2177 = vmatpush1.msra.mxu0 %v2144
        %2178 = vmatprep.subr.mxu0 %v2147
        %2179 = vmatpush1.msra.mxu0 %v2146
        %2180 = vmatprep.subr.mxu0 %v2149
        %2181 = vmatpush1.msra.mxu0 %v2148
        %2182 = vmatprep.subr.mxu0 %v2151
        %2183 = vmatpush1.msra.mxu0 %v2150
        %2184 = vmatprep.subr.mxu0 %v2153
        %2185 = vmatpush1.msra.mxu0 %v2152
        %2186 = vmatprep.subr.mxu0 %v2155
        %2187 = vmatpush1.msra.mxu0 %v2154
        %2188 = vmatprep.subr.mxu0 %v2157
        %2189 = vmatpush1.msra.mxu0 %v2156
        %2190 = vmatprep.subr.mxu0 %v2159
        %2191 = vmatpush1.msra.mxu0 %v2158
        %2192 = vmatprep.subr.mxu0 %v2161
        %2193 = vmatpush1.msra.mxu0 %v2160
        %2194 = vmatprep.subr.mxu0 %v2163
        %2195 = vmatpush1.msra.mxu0 %v2162
        %2196 = vmatprep.subr.mxu0 %v2165
        %2197 = vmatpush1.msra.mxu0 %v2164
        %2198 = vmatprep.subr.mxu0 %v2167
        %2199 = vmatpush1.msra.mxu0 %v2166
        %2200 = vmatprep.subr.mxu0 %v2169
        %2201 = vmatpush1.msra.mxu0 %v2168
        %2202 = vmatprep.subr.mxu0 %v2171
        %2203 = vmatpush1.msra.mxu0 %v2170
        %2204 = vmatprep.subr.mxu0 %v2173
        %2205 = vmatpush1.msra.mxu0 %v2172
        %2206 = vmatprep.subr.mxu0 0.0
        %2207 = vmatpush1.msra.mxu0 0.0
        %2208 = vmatprep.subr.mxu0 0.0
        %2209 = vmatpush1.msra.mxu0 0.0
        %2210 = vmatprep.subr.mxu0 0.0
        %2211 = vmatpush1.msra.mxu0 0.0
        %2212 = vmatprep.subr.mxu0 0.0
        %2213 = vmatpush1.msra.mxu0 0.0
        %2214 = vmatprep.subr.mxu0 0.0
        %2215 = vmatpush1.msra.mxu0 0.0
        %2216 = vmatprep.subr.mxu0 0.0
        %2217 = vmatpush1.msra.mxu0 0.0
        %2218 = vmatprep.subr.mxu0 0.0
        %2219 = vmatpush1.msra.mxu0 0.0
        %2220 = vmatprep.subr.mxu0 0.0
        %2221 = vmatpush1.msra.mxu0 0.0
        %2222 = vmatprep.subr.mxu0 0.0
        %2223 = vmatpush1.msra.mxu0 0.0
        %2224 = vmatprep.subr.mxu0 0.0
        %2225 = vmatpush1.msra.mxu0 0.0
        %2226 = vmatprep.subr.mxu0 0.0
        %2227 = vmatpush1.msra.mxu0 0.0
        %2228 = vmatprep.subr.mxu0 0.0
        %2229 = vmatpush1.msra.mxu0 0.0
        %2230 = vmatprep.subr.mxu0 0.0
        %2231 = vmatpush1.msra.mxu0 0.0
        %2232 = vmatprep.subr.mxu0 0.0
        %2233 = vmatpush1.msra.mxu0 0.0
        %2234 = vmatprep.subr.mxu0 0.0
        %2235 = vmatpush1.msra.mxu0 0.0
        %2236 = vmatprep.subr.mxu0 0.0
        %2237 = vmatpush1.msra.mxu0 0.0
        %2238 = vmatprep.mubr.f32.mxu0 0.0
        %2239 = vmatmul.mubr.f32.gmra.mrb[0].mxu0 %v2140
        %v2240 = vpop.f32.mrb[0].mxu0
        %v2241 = vadd.f32 0.0, %v2240
        %v2242 = vpop.f32.mrb[0].mxu0
        %v2243 = vadd.f32 0.0, %v2242
        %2244 = vdwg.mxu0
        %v2247 = vcombine.low %v2241, %v2243
        %v2249 = vunpack.c.l.s4 1966171168
        %v2250 = vunpack.c.0.s8 %v2249
        %v2251 = vlaneseq
        %v2252 = vshrl.u32 %v2251, 7
        %v2253 = vsub.s32 %v2250, %v2252
        %v2254 = vrot.slane %v2247, %v2253
        %v2256 = vunpack.c.l.s4 1966171168
        %v2257 = vunpack.c.0.s8 %v2256
        %v2258 = vlaneseq
        %v2259 = vshrl.u32 %v2258, 7
        %v2260 = vsub.s32 %v2257, %v2259
        %v2261 = vrot.slane %v2254, %v2260
        %v2263 = vadd.f32 %v2139, %v2261
        %v2264 = vld [vmem:[#allocation4 + $0x2] sm:$0x1]
        %s2265 = scalar_lea.vmem [#allocation8], 512
        %v2266 = vld [vmem:[%s2265] sm:$0xff]
        %v2267 = vld [vmem:[%s2265 + $0x8] sm:$0xff]
        %v2268 = vld [vmem:[%s2265 + $0x10] sm:$0xff]
        %v2269 = vld [vmem:[%s2265 + $0x18] sm:$0xff]
        %v2270 = vld [vmem:[%s2265 + $0x20] sm:$0xff]
        %v2271 = vld [vmem:[%s2265 + $0x28] sm:$0xff]
        %v2272 = vld [vmem:[%s2265 + $0x30] sm:$0xff]
        %v2273 = vld [vmem:[%s2265 + $0x38] sm:$0xff]
        %v2274 = vld [vmem:[%s2265 + $0x40] sm:$0xff]
        %v2275 = vld [vmem:[%s2265 + $0x48] sm:$0xff]
        %v2276 = vld [vmem:[%s2265 + $0x50] sm:$0xff]
        %v2277 = vld [vmem:[%s2265 + $0x58] sm:$0xff]
        %v2278 = vld [vmem:[%s2265 + $0x60] sm:$0xff]
        %v2279 = vld [vmem:[%s2265 + $0x68] sm:$0xff]
        %v2280 = vld [vmem:[%s2265 + $0x70] sm:$0xff]
        %v2281 = vld [vmem:[%s2265 + $0x78] sm:$0xff]
        %v2282 = vld [vmem:[%s2265 + $0x80] sm:$0xff]
        %v2283 = vld [vmem:[%s2265 + $0x88] sm:$0xff]
        %v2284 = vld [vmem:[%s2265 + $0x90] sm:$0xff]
        %v2285 = vld [vmem:[%s2265 + $0x98] sm:$0xff]
        %v2286 = vld [vmem:[%s2265 + $0xa0] sm:$0xff]
        %v2287 = vld [vmem:[%s2265 + $0xa8] sm:$0xff]
        %v2288 = vld [vmem:[%s2265 + $0xb0] sm:$0xff]
        %v2289 = vld [vmem:[%s2265 + $0xb8] sm:$0xff]
        %v2290 = vld [vmem:[%s2265 + $0xc0] sm:$0xff]
        %v2291 = vld [vmem:[%s2265 + $0xc8] sm:$0xff]
        %v2292 = vld [vmem:[%s2265 + $0xd0] sm:$0xff]
        %v2293 = vld [vmem:[%s2265 + $0xd8] sm:$0xff]
        %v2294 = vld [vmem:[%s2265 + $0xe0] sm:$0xff]
        %v2295 = vld [vmem:[%s2265 + $0xe8] sm:$0xff]
        %v2296 = vld [vmem:[%s2265 + $0xf0] sm:$0xff]
        %v2297 = vld [vmem:[%s2265 + $0xf8] sm:$0xff]
        %2298 = vmatprep.subr.mxu0 %v2267
        %2299 = vmatpush1.msra.mxu0 %v2266
        %2300 = vmatprep.subr.mxu0 %v2269
        %2301 = vmatpush1.msra.mxu0 %v2268
        %2302 = vmatprep.subr.mxu0 %v2271
        %2303 = vmatpush1.msra.mxu0 %v2270
        %2304 = vmatprep.subr.mxu0 %v2273
        %2305 = vmatpush1.msra.mxu0 %v2272
        %2306 = vmatprep.subr.mxu0 %v2275
        %2307 = vmatpush1.msra.mxu0 %v2274
        %2308 = vmatprep.subr.mxu0 %v2277
        %2309 = vmatpush1.msra.mxu0 %v2276
        %2310 = vmatprep.subr.mxu0 %v2279
        %2311 = vmatpush1.msra.mxu0 %v2278
        %2312 = vmatprep.subr.mxu0 %v2281
        %2313 = vmatpush1.msra.mxu0 %v2280
        %2314 = vmatprep.subr.mxu0 %v2283
        %2315 = vmatpush1.msra.mxu0 %v2282
        %2316 = vmatprep.subr.mxu0 %v2285
        %2317 = vmatpush1.msra.mxu0 %v2284
        %2318 = vmatprep.subr.mxu0 %v2287
        %2319 = vmatpush1.msra.mxu0 %v2286
        %2320 = vmatprep.subr.mxu0 %v2289
        %2321 = vmatpush1.msra.mxu0 %v2288
        %2322 = vmatprep.subr.mxu0 %v2291
        %2323 = vmatpush1.msra.mxu0 %v2290
        %2324 = vmatprep.subr.mxu0 %v2293
        %2325 = vmatpush1.msra.mxu0 %v2292
        %2326 = vmatprep.subr.mxu0 %v2295
        %2327 = vmatpush1.msra.mxu0 %v2294
        %2328 = vmatprep.subr.mxu0 %v2297
        %2329 = vmatpush1.msra.mxu0 %v2296
        %2330 = vmatprep.subr.mxu0 0.0
        %2331 = vmatpush1.msra.mxu0 0.0
        %2332 = vmatprep.subr.mxu0 0.0
        %2333 = vmatpush1.msra.mxu0 0.0
        %2334 = vmatprep.subr.mxu0 0.0
        %2335 = vmatpush1.msra.mxu0 0.0
        %2336 = vmatprep.subr.mxu0 0.0
        %2337 = vmatpush1.msra.mxu0 0.0
        %2338 = vmatprep.subr.mxu0 0.0
        %2339 = vmatpush1.msra.mxu0 0.0
        %2340 = vmatprep.subr.mxu0 0.0
        %2341 = vmatpush1.msra.mxu0 0.0
        %2342 = vmatprep.subr.mxu0 0.0
        %2343 = vmatpush1.msra.mxu0 0.0
        %2344 = vmatprep.subr.mxu0 0.0
        %2345 = vmatpush1.msra.mxu0 0.0
        %2346 = vmatprep.subr.mxu0 0.0
        %2347 = vmatpush1.msra.mxu0 0.0
        %2348 = vmatprep.subr.mxu0 0.0
        %2349 = vmatpush1.msra.mxu0 0.0
        %2350 = vmatprep.subr.mxu0 0.0
        %2351 = vmatpush1.msra.mxu0 0.0
        %2352 = vmatprep.subr.mxu0 0.0
        %2353 = vmatpush1.msra.mxu0 0.0
        %2354 = vmatprep.subr.mxu0 0.0
        %2355 = vmatpush1.msra.mxu0 0.0
        %2356 = vmatprep.subr.mxu0 0.0
        %2357 = vmatpush1.msra.mxu0 0.0
        %2358 = vmatprep.subr.mxu0 0.0
        %2359 = vmatpush1.msra.mxu0 0.0
        %2360 = vmatprep.subr.mxu0 0.0
        %2361 = vmatpush1.msra.mxu0 0.0
        %2362 = vmatprep.mubr.f32.mxu0 0.0
        %2363 = vmatmul.mubr.f32.gmra.mrb[0].mxu0 %v2264
        %v2364 = vpop.f32.mrb[0].mxu0
        %v2365 = vadd.f32 0.0, %v2364
        %v2366 = vpop.f32.mrb[0].mxu0
        %v2367 = vadd.f32 0.0, %v2366
        %2368 = vdwg.mxu0
        %v2371 = vcombine.low %v2365, %v2367
        %v2373 = vunpack.c.l.s4 1966171168
        %v2374 = vunpack.c.0.s8 %v2373
        %v2375 = vlaneseq
        %v2376 = vshrl.u32 %v2375, 7
        %v2377 = vsub.s32 %v2374, %v2376
        %v2378 = vrot.slane %v2371, %v2377
        %v2380 = vunpack.c.l.s4 1966171168
        %v2381 = vunpack.c.0.s8 %v2380
        %v2382 = vlaneseq
        %v2383 = vshrl.u32 %v2382, 7
        %v2384 = vsub.s32 %v2381, %v2383
        %v2385 = vrot.slane %v2378, %v2384
        %v2387 = vadd.f32 %v2263, %v2385
        %v2388 = vld [vmem:[#allocation4 + $0x3] sm:$0x1]
        %s2389 = scalar_lea.vmem [#allocation8], 768
        %v2390 = vld [vmem:[%s2389] sm:$0xff]
        %v2391 = vld [vmem:[%s2389 + $0x8] sm:$0xff]
        %v2392 = vld [vmem:[%s2389 + $0x10] sm:$0xff]
        %v2393 = vld [vmem:[%s2389 + $0x18] sm:$0xff]
        %v2394 = vld [vmem:[%s2389 + $0x20] sm:$0xff]
        %v2395 = vld [vmem:[%s2389 + $0x28] sm:$0xff]
        %v2396 = vld [vmem:[%s2389 + $0x30] sm:$0xff]
        %v2397 = vld [vmem:[%s2389 + $0x38] sm:$0xff]
        %v2398 = vld [vmem:[%s2389 + $0x40] sm:$0xff]
        %v2399 = vld [vmem:[%s2389 + $0x48] sm:$0xff]
        %v2400 = vld [vmem:[%s2389 + $0x50] sm:$0xff]
        %v2401 = vld [vmem:[%s2389 + $0x58] sm:$0xff]
        %v2402 = vld [vmem:[%s2389 + $0x60] sm:$0xff]
        %v2403 = vld [vmem:[%s2389 + $0x68] sm:$0xff]
        %v2404 = vld [vmem:[%s2389 + $0x70] sm:$0xff]
        %v2405 = vld [vmem:[%s2389 + $0x78] sm:$0xff]
        %v2406 = vld [vmem:[%s2389 + $0x80] sm:$0xff]
        %v2407 = vld [vmem:[%s2389 + $0x88] sm:$0xff]
        %v2408 = vld [vmem:[%s2389 + $0x90] sm:$0xff]
        %v2409 = vld [vmem:[%s2389 + $0x98] sm:$0xff]
        %v2410 = vld [vmem:[%s2389 + $0xa0] sm:$0xff]
        %v2411 = vld [vmem:[%s2389 + $0xa8] sm:$0xff]
        %v2412 = vld [vmem:[%s2389 + $0xb0] sm:$0xff]
        %v2413 = vld [vmem:[%s2389 + $0xb8] sm:$0xff]
        %v2414 = vld [vmem:[%s2389 + $0xc0] sm:$0xff]
        %v2415 = vld [vmem:[%s2389 + $0xc8] sm:$0xff]
        %v2416 = vld [vmem:[%s2389 + $0xd0] sm:$0xff]
        %v2417 = vld [vmem:[%s2389 + $0xd8] sm:$0xff]
        %v2418 = vld [vmem:[%s2389 + $0xe0] sm:$0xff]
        %v2419 = vld [vmem:[%s2389 + $0xe8] sm:$0xff]
        %v2420 = vld [vmem:[%s2389 + $0xf0] sm:$0xff]
        %v2421 = vld [vmem:[%s2389 + $0xf8] sm:$0xff]
        %2422 = vmatprep.subr.mxu0 %v2391
        %2423 = vmatpush1.msra.mxu0 %v2390
        %2424 = vmatprep.subr.mxu0 %v2393
        %2425 = vmatpush1.msra.mxu0 %v2392
        %2426 = vmatprep.subr.mxu0 %v2395
        %2427 = vmatpush1.msra.mxu0 %v2394
        %2428 = vmatprep.subr.mxu0 %v2397
        %2429 = vmatpush1.msra.mxu0 %v2396
        %2430 = vmatprep.subr.mxu0 %v2399
        %2431 = vmatpush1.msra.mxu0 %v2398
        %2432 = vmatprep.subr.mxu0 %v2401
        %2433 = vmatpush1.msra.mxu0 %v2400
        %2434 = vmatprep.subr.mxu0 %v2403
        %2435 = vmatpush1.msra.mxu0 %v2402
        %2436 = vmatprep.subr.mxu0 %v2405
        %2437 = vmatpush1.msra.mxu0 %v2404
        %2438 = vmatprep.subr.mxu0 %v2407
        %2439 = vmatpush1.msra.mxu0 %v2406
        %2440 = vmatprep.subr.mxu0 %v2409
        %2441 = vmatpush1.msra.mxu0 %v2408
        %2442 = vmatprep.subr.mxu0 %v2411
        %2443 = vmatpush1.msra.mxu0 %v2410
        %2444 = vmatprep.subr.mxu0 %v2413
        %2445 = vmatpush1.msra.mxu0 %v2412
        %2446 = vmatprep.subr.mxu0 %v2415
        %2447 = vmatpush1.msra.mxu0 %v2414
        %2448 = vmatprep.subr.mxu0 %v2417
        %2449 = vmatpush1.msra.mxu0 %v2416
        %2450 = vmatprep.subr.mxu0 %v2419
        %2451 = vmatpush1.msra.mxu0 %v2418
        %2452 = vmatprep.subr.mxu0 %v2421
        %2453 = vmatpush1.msra.mxu0 %v2420
        %2454 = vmatprep.subr.mxu0 0.0
        %2455 = vmatpush1.msra.mxu0 0.0
        %2456 = vmatprep.subr.mxu0 0.0
        %2457 = vmatpush1.msra.mxu0 0.0
        %2458 = vmatprep.subr.mxu0 0.0
        %2459 = vmatpush1.msra.mxu0 0.0
        %2460 = vmatprep.subr.mxu0 0.0
        %2461 = vmatpush1.msra.mxu0 0.0
        %2462 = vmatprep.subr.mxu0 0.0
        %2463 = vmatpush1.msra.mxu0 0.0
        %2464 = vmatprep.subr.mxu0 0.0
        %2465 = vmatpush1.msra.mxu0 0.0
        %2466 = vmatprep.subr.mxu0 0.0
        %2467 = vmatpush1.msra.mxu0 0.0
        %2468 = vmatprep.subr.mxu0 0.0
        %2469 = vmatpush1.msra.mxu0 0.0
        %2470 = vmatprep.subr.mxu0 0.0
        %2471 = vmatpush1.msra.mxu0 0.0
        %2472 = vmatprep.subr.mxu0 0.0
        %2473 = vmatpush1.msra.mxu0 0.0
        %2474 = vmatprep.subr.mxu0 0.0
        %2475 = vmatpush1.msra.mxu0 0.0
        %2476 = vmatprep.subr.mxu0 0.0
        %2477 = vmatpush1.msra.mxu0 0.0
        %2478 = vmatprep.subr.mxu0 0.0
        %2479 = vmatpush1.msra.mxu0 0.0
        %2480 = vmatprep.subr.mxu0 0.0
        %2481 = vmatpush1.msra.mxu0 0.0
        %2482 = vmatprep.subr.mxu0 0.0
        %2483 = vmatpush1.msra.mxu0 0.0
        %2484 = vmatprep.subr.mxu0 0.0
        %2485 = vmatpush1.msra.mxu0 0.0
        %2486 = vmatprep.mubr.f32.mxu0 0.0
        %2487 = vmatmul.mubr.f32.gmra.mrb[0].mxu0 %v2388
        %v2488 = vpop.f32.mrb[0].mxu0
        %v2489 = vadd.f32 0.0, %v2488
        %v2490 = vpop.f32.mrb[0].mxu0
        %v2491 = vadd.f32 0.0, %v2490
        %2492 = vdwg.mxu0
        %v2495 = vcombine.low %v2489, %v2491
        %v2497 = vunpack.c.l.s4 1966171168
        %v2498 = vunpack.c.0.s8 %v2497
        %v2499 = vlaneseq
        %v2500 = vshrl.u32 %v2499, 7
        %v2501 = vsub.s32 %v2498, %v2500
        %v2502 = vrot.slane %v2495, %v2501
        %v2504 = vunpack.c.l.s4 1966171168
        %v2505 = vunpack.c.0.s8 %v2504
        %v2506 = vlaneseq
        %v2507 = vshrl.u32 %v2506, 7
        %v2508 = vsub.s32 %v2505, %v2507
        %v2509 = vrot.slane %v2502, %v2508
        %v2511 = vadd.f32 %v2387, %v2509
        %v2512 = vld [vmem:[#allocation4 + $0x4] sm:$0x1]
        %s2513 = scalar_lea.vmem [#allocation8], 1024
        %v2514 = vld [vmem:[%s2513] sm:$0xff]
        %v2515 = vld [vmem:[%s2513 + $0x8] sm:$0xff]
        %v2516 = vld [vmem:[%s2513 + $0x10] sm:$0xff]
        %v2517 = vld [vmem:[%s2513 + $0x18] sm:$0xff]
        %v2518 = vld [vmem:[%s2513 + $0x20] sm:$0xff]
        %v2519 = vld [vmem:[%s2513 + $0x28] sm:$0xff]
        %v2520 = vld [vmem:[%s2513 + $0x30] sm:$0xff]
        %v2521 = vld [vmem:[%s2513 + $0x38] sm:$0xff]
        %v2522 = vld [vmem:[%s2513 + $0x40] sm:$0xff]
        %v2523 = vld [vmem:[%s2513 + $0x48] sm:$0xff]
        %v2524 = vld [vmem:[%s2513 + $0x50] sm:$0xff]
        %v2525 = vld [vmem:[%s2513 + $0x58] sm:$0xff]
        %v2526 = vld [vmem:[%s2513 + $0x60] sm:$0xff]
        %v2527 = vld [vmem:[%s2513 + $0x68] sm:$0xff]
        %v2528 = vld [vmem:[%s2513 + $0x70] sm:$0xff]
        %v2529 = vld [vmem:[%s2513 + $0x78] sm:$0xff]
        %v2530 = vld [vmem:[%s2513 + $0x80] sm:$0xff]
        %v2531 = vld [vmem:[%s2513 + $0x88] sm:$0xff]
        %v2532 = vld [vmem:[%s2513 + $0x90] sm:$0xff]
        %v2533 = vld [vmem:[%s2513 + $0x98] sm:$0xff]
        %v2534 = vld [vmem:[%s2513 + $0xa0] sm:$0xff]
        %v2535 = vld [vmem:[%s2513 + $0xa8] sm:$0xff]
        %v2536 = vld [vmem:[%s2513 + $0xb0] sm:$0xff]
        %v2537 = vld [vmem:[%s2513 + $0xb8] sm:$0xff]
        %v2538 = vld [vmem:[%s2513 + $0xc0] sm:$0xff]
        %v2539 = vld [vmem:[%s2513 + $0xc8] sm:$0xff]
        %v2540 = vld [vmem:[%s2513 + $0xd0] sm:$0xff]
        %v2541 = vld [vmem:[%s2513 + $0xd8] sm:$0xff]
        %v2542 = vld [vmem:[%s2513 + $0xe0] sm:$0xff]
        %v2543 = vld [vmem:[%s2513 + $0xe8] sm:$0xff]
        %v2544 = vld [vmem:[%s2513 + $0xf0] sm:$0xff]
        %v2545 = vld [vmem:[%s2513 + $0xf8] sm:$0xff]
        %2546 = vmatprep.subr.mxu0 %v2515
        %2547 = vmatpush1.msra.mxu0 %v2514
        %2548 = vmatprep.subr.mxu0 %v2517
        %2549 = vmatpush1.msra.mxu0 %v2516
        %2550 = vmatprep.subr.mxu0 %v2519
        %2551 = vmatpush1.msra.mxu0 %v2518
        %2552 = vmatprep.subr.mxu0 %v2521
        %2553 = vmatpush1.msra.mxu0 %v2520
        %2554 = vmatprep.subr.mxu0 %v2523
        %2555 = vmatpush1.msra.mxu0 %v2522
        %2556 = vmatprep.subr.mxu0 %v2525
        %2557 = vmatpush1.msra.mxu0 %v2524
        %2558 = vmatprep.subr.mxu0 %v2527
        %2559 = vmatpush1.msra.mxu0 %v2526
        %2560 = vmatprep.subr.mxu0 %v2529
        %2561 = vmatpush1.msra.mxu0 %v2528
        %2562 = vmatprep.subr.mxu0 %v2531
        %2563 = vmatpush1.msra.mxu0 %v2530
        %2564 = vmatprep.subr.mxu0 %v2533
        %2565 = vmatpush1.msra.mxu0 %v2532
        %2566 = vmatprep.subr.mxu0 %v2535
        %2567 = vmatpush1.msra.mxu0 %v2534
        %2568 = vmatprep.subr.mxu0 %v2537
        %2569 = vmatpush1.msra.mxu0 %v2536
        %2570 = vmatprep.subr.mxu0 %v2539
        %2571 = vmatpush1.msra.mxu0 %v2538
        %2572 = vmatprep.subr.mxu0 %v2541
        %2573 = vmatpush1.msra.mxu0 %v2540
        %2574 = vmatprep.subr.mxu0 %v2543
        %2575 = vmatpush1.msra.mxu0 %v2542
        %2576 = vmatprep.subr.mxu0 %v2545
        %2577 = vmatpush1.msra.mxu0 %v2544
        %2578 = vmatprep.subr.mxu0 0.0
        %2579 = vmatpush1.msra.mxu0 0.0
        %2580 = vmatprep.subr.mxu0 0.0
        %2581 = vmatpush1.msra.mxu0 0.0
        %2582 = vmatprep.subr.mxu0 0.0
        %2583 = vmatpush1.msra.mxu0 0.0
        %2584 = vmatprep.subr.mxu0 0.0
        %2585 = vmatpush1.msra.mxu0 0.0
        %2586 = vmatprep.subr.mxu0 0.0
        %2587 = vmatpush1.msra.mxu0 0.0
        %2588 = vmatprep.subr.mxu0 0.0
        %2589 = vmatpush1.msra.mxu0 0.0
        %2590 = vmatprep.subr.mxu0 0.0
        %2591 = vmatpush1.msra.mxu0 0.0
        %2592 = vmatprep.subr.mxu0 0.0
        %2593 = vmatpush1.msra.mxu0 0.0
        %2594 = vmatprep.subr.mxu0 0.0
        %2595 = vmatpush1.msra.mxu0 0.0
        %2596 = vmatprep.subr.mxu0 0.0
        %2597 = vmatpush1.msra.mxu0 0.0
        %2598 = vmatprep.subr.mxu0 0.0
        %2599 = vmatpush1.msra.mxu0 0.0
        %2600 = vmatprep.subr.mxu0 0.0
        %2601 = vmatpush1.msra.mxu0 0.0
        %2602 = vmatprep.subr.mxu0 0.0
        %2603 = vmatpush1.msra.mxu0 0.0
        %2604 = vmatprep.subr.mxu0 0.0
        %2605 = vmatpush1.msra.mxu0 0.0
        %2606 = vmatprep.subr.mxu0 0.0
        %2607 = vmatpush1.msra.mxu0 0.0
        %2608 = vmatprep.subr.mxu0 0.0
        %2609 = vmatpush1.msra.mxu0 0.0
        %2610 = vmatprep.mubr.f32.mxu0 0.0
        %2611 = vmatmul.mubr.f32.gmra.mrb[0].mxu0 %v2512
        %v2612 = vpop.f32.mrb[0].mxu0
        %v2613 = vadd.f32 0.0, %v2612
        %v2614 = vpop.f32.mrb[0].mxu0
        %v2615 = vadd.f32 0.0, %v2614
        %2616 = vdwg.mxu0
        %v2619 = vcombine.low %v2613, %v2615
        %v2621 = vunpack.c.l.s4 1966171168
        %v2622 = vunpack.c.0.s8 %v2621
        %v2623 = vlaneseq
        %v2624 = vshrl.u32 %v2623, 7
        %v2625 = vsub.s32 %v2622, %v2624
        %v2626 = vrot.slane %v2619, %v2625
        %v2628 = vunpack.c.l.s4 1966171168
        %v2629 = vunpack.c.0.s8 %v2628
        %v2630 = vlaneseq
        %v2631 = vshrl.u32 %v2630, 7
        %v2632 = vsub.s32 %v2629, %v2631
        %v2633 = vrot.slane %v2626, %v2632
        %v2635 = vadd.f32 %v2511, %v2633
        %v2636 = vmax.f32 %v2635, 0.0
        %v2637 = vld [vmem:[%s7] sm:$0xff]
        %v2638 = vld [vmem:[%s7 + $0x8] sm:$0xff]
        %v2639 = vld [vmem:[%s7 + $0x10] sm:$0xff]
        %v2640 = vld [vmem:[%s7 + $0x18] sm:$0xff]
        %v2641 = vld [vmem:[%s7 + $0x20] sm:$0xff]
        %v2642 = vld [vmem:[%s7 + $0x28] sm:$0xff]
        %v2643 = vld [vmem:[%s7 + $0x30] sm:$0xff]
        %v2644 = vld [vmem:[%s7 + $0x38] sm:$0xff]
        %v2645 = vld [vmem:[%s7 + $0x40] sm:$0xff]
        %v2646 = vld [vmem:[%s7 + $0x48] sm:$0xff]
        %v2647 = vld [vmem:[%s7 + $0x50] sm:$0xff]
        %v2648 = vld [vmem:[%s7 + $0x58] sm:$0xff]
        %v2649 = vld [vmem:[%s7 + $0x60] sm:$0xff]
        %v2650 = vld [vmem:[%s7 + $0x68] sm:$0xff]
        %v2651 = vld [vmem:[%s7 + $0x70] sm:$0xff]
        %v2652 = vld [vmem:[%s7 + $0x78] sm:$0xff]
        %v2653 = vld [vmem:[%s7 + $0x80] sm:$0xff]
        %v2654 = vld [vmem:[%s7 + $0x88] sm:$0xff]
        %v2655 = vld [vmem:[%s7 + $0x90] sm:$0xff]
        %v2656 = vld [vmem:[%s7 + $0x98] sm:$0xff]
        %v2657 = vld [vmem:[%s7 + $0xa0] sm:$0xff]
        %v2658 = vld [vmem:[%s7 + $0xa8] sm:$0xff]
        %v2659 = vld [vmem:[%s7 + $0xb0] sm:$0xff]
        %v2660 = vld [vmem:[%s7 + $0xb8] sm:$0xff]
        %v2661 = vld [vmem:[%s7 + $0xc0] sm:$0xff]
        %v2662 = vld [vmem:[%s7 + $0xc8] sm:$0xff]
        %v2663 = vld [vmem:[%s7 + $0xd0] sm:$0xff]
        %v2664 = vld [vmem:[%s7 + $0xd8] sm:$0xff]
        %v2665 = vld [vmem:[%s7 + $0xe0] sm:$0xff]
        %v2666 = vld [vmem:[%s7 + $0xe8] sm:$0xff]
        %v2667 = vld [vmem:[%s7 + $0xf0] sm:$0xff]
        %v2668 = vld [vmem:[%s7 + $0xf8] sm:$0xff]
        %v2669 = vld [vmem:[%s8] sm:$0x1]
        %v2671 = vlaneseq
        %v2672 = vshrl.u32 %v2671, 7
        %v2673 = vsub.s32 0, %v2672
        %v2674 = vrot.slane %v2636, %v2673
        %v2675 = vlaneseq
        %v2676 = vshrl.u32 %v2675, 7
        %v2677 = vsub.s32 1, %v2676
        %v2678 = vrot.slane %v2636, %v2677
        %2681 = vmatprep.subr.mxu0 0.0
        %2682 = vmatpush1.msra.mxu0 %v2637
        %2683 = vmatprep.subr.mxu0 0.0
        %2684 = vmatpush1.msra.mxu0 %v2638
        %2685 = vmatprep.subr.mxu0 0.0
        %2686 = vmatpush1.msra.mxu0 %v2639
        %2687 = vmatprep.subr.mxu0 0.0
        %2688 = vmatpush1.msra.mxu0 %v2640
        %2689 = vmatprep.subr.mxu0 0.0
        %2690 = vmatpush1.msra.mxu0 %v2641
        %2691 = vmatprep.subr.mxu0 0.0
        %2692 = vmatpush1.msra.mxu0 %v2642
        %2693 = vmatprep.subr.mxu0 0.0
        %2694 = vmatpush1.msra.mxu0 %v2643
        %2695 = vmatprep.subr.mxu0 0.0
        %2696 = vmatpush1.msra.mxu0 %v2644
        %2697 = vmatprep.subr.mxu0 0.0
        %2698 = vmatpush1.msra.mxu0 %v2645
        %2699 = vmatprep.subr.mxu0 0.0
        %2700 = vmatpush1.msra.mxu0 %v2646
        %2701 = vmatprep.subr.mxu0 0.0
        %2702 = vmatpush1.msra.mxu0 %v2647
        %2703 = vmatprep.subr.mxu0 0.0
        %2704 = vmatpush1.msra.mxu0 %v2648
        %2705 = vmatprep.subr.mxu0 0.0
        %2706 = vmatpush1.msra.mxu0 %v2649
        %2707 = vmatprep.subr.mxu0 0.0
        %2708 = vmatpush1.msra.mxu0 %v2650
        %2709 = vmatprep.subr.mxu0 0.0
        %2710 = vmatpush1.msra.mxu0 %v2651
        %2711 = vmatprep.subr.mxu0 0.0
        %2712 = vmatpush1.msra.mxu0 %v2652
        %2713 = vmatprep.subr.mxu0 0.0
        %2714 = vmatpush1.msra.mxu0 %v2653
        %2715 = vmatprep.subr.mxu0 0.0
        %2716 = vmatpush1.msra.mxu0 %v2654
        %2717 = vmatprep.subr.mxu0 0.0
        %2718 = vmatpush1.msra.mxu0 %v2655
        %2719 = vmatprep.subr.mxu0 0.0
        %2720 = vmatpush1.msra.mxu0 %v2656
        %2721 = vmatprep.subr.mxu0 0.0
        %2722 = vmatpush1.msra.mxu0 %v2657
        %2723 = vmatprep.subr.mxu0 0.0
        %2724 = vmatpush1.msra.mxu0 %v2658
        %2725 = vmatprep.subr.mxu0 0.0
        %2726 = vmatpush1.msra.mxu0 %v2659
        %2727 = vmatprep.subr.mxu0 0.0
        %2728 = vmatpush1.msra.mxu0 %v2660
        %2729 = vmatprep.subr.mxu0 0.0
        %2730 = vmatpush1.msra.mxu0 %v2661
        %2731 = vmatprep.subr.mxu0 0.0
        %2732 = vmatpush1.msra.mxu0 %v2662
        %2733 = vmatprep.subr.mxu0 0.0
        %2734 = vmatpush1.msra.mxu0 %v2663
        %2735 = vmatprep.subr.mxu0 0.0
        %2736 = vmatpush1.msra.mxu0 %v2664
        %2737 = vmatprep.subr.mxu0 0.0
        %2738 = vmatpush1.msra.mxu0 %v2665
        %2739 = vmatprep.subr.mxu0 0.0
        %2740 = vmatpush1.msra.mxu0 %v2666
        %2741 = vmatprep.subr.mxu0 0.0
        %2742 = vmatpush1.msra.mxu0 %v2667
        %2743 = vmatprep.subr.mxu0 0.0
        %2744 = vmatpush1.msra.mxu0 %v2668
        %2745 = vmatprep.mubr.f32.mxu0 %v2678
        %2746 = vmatmul.mubr.f32.gmra.mrb[0].mxu0 %v2674
        %v2747 = vpop.f32.mrb[0].mxu0
        %v2748 = vadd.f32 %v2669, %v2747
        %v2749 = vpop.f32.mrb[0].mxu0
        %2750 = vdwg.mxu0
        %v2751 = vmax.f32 %v2748, 0.0
        %v2752 = vld [vmem:[%s9] sm:$0xff]
        %v2753 = vld [vmem:[%s9 + $0x8] sm:$0xff]
        %v2754 = vld [vmem:[%s9 + $0x10] sm:$0xff]
        %v2755 = vld [vmem:[%s9 + $0x18] sm:$0xff]
        %v2756 = vld [vmem:[%s9 + $0x20] sm:$0xff]
        %v2757 = vld [vmem:[%s9 + $0x28] sm:$0xff]
        %v2758 = vld [vmem:[%s9 + $0x30] sm:$0xff]
        %v2759 = vld [vmem:[%s9 + $0x38] sm:$0xff]
        %v2760 = vld [vmem:[%s9 + $0x40] sm:$0xff]
        %v2761 = vld [vmem:[%s9 + $0x48] sm:$0xff]
        %v2762 = vld [vmem:[%s9 + $0x50] sm:$0xff]
        %v2763 = vld [vmem:[%s9 + $0x58] sm:$0xff]
        %v2764 = vld [vmem:[%s9 + $0x60] sm:$0xff]
        %v2765 = vld [vmem:[%s9 + $0x68] sm:$0xff]
        %v2766 = vld [vmem:[%s9 + $0x70] sm:$0xff]
        %v2767 = vld [vmem:[%s9 + $0x78] sm:$0xff]
        %v2768 = vld [vmem:[%s10] sm:$0x1]
        %2769 = vmatprep.subr.mxu0 0.0
        %2770 = vmatpush1.msra.mxu0 %v2752
        %2771 = vmatprep.subr.mxu0 0.0
        %2772 = vmatpush1.msra.mxu0 %v2753
        %2773 = vmatprep.subr.mxu0 0.0
        %2774 = vmatpush1.msra.mxu0 %v2754
        %2775 = vmatprep.subr.mxu0 0.0
        %2776 = vmatpush1.msra.mxu0 %v2755
        %2777 = vmatprep.subr.mxu0 0.0
        %2778 = vmatpush1.msra.mxu0 %v2756
        %2779 = vmatprep.subr.mxu0 0.0
        %2780 = vmatpush1.msra.mxu0 %v2757
        %2781 = vmatprep.subr.mxu0 0.0
        %2782 = vmatpush1.msra.mxu0 %v2758
        %2783 = vmatprep.subr.mxu0 0.0
        %2784 = vmatpush1.msra.mxu0 %v2759
        %2785 = vmatprep.subr.mxu0 0.0
        %2786 = vmatpush1.msra.mxu0 %v2760
        %2787 = vmatprep.subr.mxu0 0.0
        %2788 = vmatpush1.msra.mxu0 %v2761
        %2789 = vmatprep.subr.mxu0 0.0
        %2790 = vmatpush1.msra.mxu0 %v2762
        %2791 = vmatprep.subr.mxu0 0.0
        %2792 = vmatpush1.msra.mxu0 %v2763
        %2793 = vmatprep.subr.mxu0 0.0
        %2794 = vmatpush1.msra.mxu0 %v2764
        %2795 = vmatprep.subr.mxu0 0.0
        %2796 = vmatpush1.msra.mxu0 %v2765
        %2797 = vmatprep.subr.mxu0 0.0
        %2798 = vmatpush1.msra.mxu0 %v2766
        %2799 = vmatprep.subr.mxu0 0.0
        %2800 = vmatpush1.msra.mxu0 %v2767
        %2801 = vmatprep.subr.mxu0 0.0
        %2802 = vmatpush1.msra.mxu0 0.0
        %2803 = vmatprep.subr.mxu0 0.0
        %2804 = vmatpush1.msra.mxu0 0.0
        %2805 = vmatprep.subr.mxu0 0.0
        %2806 = vmatpush1.msra.mxu0 0.0
        %2807 = vmatprep.subr.mxu0 0.0
        %2808 = vmatpush1.msra.mxu0 0.0
        %2809 = vmatprep.subr.mxu0 0.0
        %2810 = vmatpush1.msra.mxu0 0.0
        %2811 = vmatprep.subr.mxu0 0.0
        %2812 = vmatpush1.msra.mxu0 0.0
        %2813 = vmatprep.subr.mxu0 0.0
        %2814 = vmatpush1.msra.mxu0 0.0
        %2815 = vmatprep.subr.mxu0 0.0
        %2816 = vmatpush1.msra.mxu0 0.0
        %2817 = vmatprep.subr.mxu0 0.0
        %2818 = vmatpush1.msra.mxu0 0.0
        %2819 = vmatprep.subr.mxu0 0.0
        %2820 = vmatpush1.msra.mxu0 0.0
        %2821 = vmatprep.subr.mxu0 0.0
        %2822 = vmatpush1.msra.mxu0 0.0
        %2823 = vmatprep.subr.mxu0 0.0
        %2824 = vmatpush1.msra.mxu0 0.0
        %2825 = vmatprep.subr.mxu0 0.0
        %2826 = vmatpush1.msra.mxu0 0.0
        %2827 = vmatprep.subr.mxu0 0.0
        %2828 = vmatpush1.msra.mxu0 0.0
        %2829 = vmatprep.subr.mxu0 0.0
        %2830 = vmatpush1.msra.mxu0 0.0
        %2831 = vmatprep.subr.mxu0 0.0
        %2832 = vmatpush1.msra.mxu0 0.0
        %2833 = vmatprep.mubr.f32.mxu0 0.0
        %2834 = vmatmul.mubr.f32.gmra.mrb[0].mxu0 %v2751
        %v2835 = vpop.f32.mrb[0].mxu0
        %v2836 = vadd.f32 %v2768, %v2835
        %v2837 = vpop.f32.mrb[0].mxu0
        %2838 = vdwg.mxu0
        %2839 = vst [vmem:[%s408] sm:$0x1] %v2836
        %s2840 = sand.u32 %s271, 1
        %s2841 = scalar_lea.sflag [#allocation7], %s2840
        %s2842 = sand.u32 %s271, 1
        %s2843 = scalar_lea.vmem [#allocation10], %s2842
        // Predicated region
        $region73: #{lenet_forward.1} parent=63 // pred_check
          %p2844 = pneg %p281
        $region74: #{lenet_forward.1} parent=63 // pred_check_branch
          %2846 = sbr.rel (%p2844) target = $region76
        $region75: #{lenet_forward.1} parent=63 // pred_region
          %s2848 = ssub.s32 16, 16
          %2849 = vsyncadd %s2841, %s2848
          %s2850 = smul.addr %s27, 16
          %s2851 = scalar_lea.hbm %s11, %s2850
          %s2853 = sshll.u32 %s2843, 4
          %s2854 = int_to_ptr.vmem [resolvable:$true] %s2853
          %2856 = dma.vmem_to_hbm [thread:$0]  %s2854, 16, %s2851, %s2841
        $region76: #{lenet_forward.1} parent=63 // pred_fallthru
          _
      $region64: #{lenet_forward.1} parent=5 // pred_fallthru
        _
      %p2857 = scmp.le.s32.totalorder 2, %s22
      // Predicated region
      $region77: #{lenet_forward.1} parent=5 // pred_check
        %p2858 = pneg %p2857
      $region78: #{lenet_forward.1} parent=5 // pred_check_branch
        %2860 = sbr.rel (%p2858) target = $region80
      $region79: #{lenet_forward.1} parent=5 // pred_region
        %s2861 = ssub.s32 %s22, 2
        // Predicated region
        $region81: #{lenet_forward.1} parent=79 // pred_check
          %p2862 = pneg %p287
        $region82: #{lenet_forward.1} parent=79 // pred_check_branch
          %2864 = sbr.rel (%p2862) target = $region84
        $region83: #{lenet_forward.1} parent=79 // pred_region
          %s2865 = sand.u32 %s272, 1
          %s2866 = scalar_lea.sflag [#allocation7], %s2865
          %s2867 = sand.u32 %s272, 1
          %s2868 = scalar_lea.vmem [#allocation10], %s2867
          %2869 = dma.done %s2866, 16
        $region84: #{lenet_forward.1} parent=79 // pred_fallthru
          _
      $region80: #{lenet_forward.1} parent=5 // pred_fallthru
        _
    $region6: #{lenet_forward.1} parent=1 // loop_footer
      %s26 = sadd.s32 1, %s22
    $region7: #{lenet_forward.1} parent=1 // loop_footer_branch
      %21 = sbr.rel target = $region3
    $region8: #{lenet_forward.1} parent=1 // loop_exit
      _
    %2870 = vsyncpa [#allocation6], 1
    %s2871 = scalar_lea.sflag [#allocation6], 1
    %2872 = vsyncpa %s2871, 1
    %2873 = vsyncpa [#allocation9], 1
    %2874 = vsyncpa [#allocation7], 1
    %s2875 = scalar_lea.sflag [#allocation7], 1
    %2876 = vsyncpa %s2875, 1

</llo_original>
